<compile_context>
chip_gen: v7x
topology: tpu7x:2x2x1
jax: 0.10.0
libtpu: 0.0.40
codegen_flags: <defaults>
</compile_context>

<pallas_src>
import functools

import numpy as np

import jax
import jax.numpy as jnp
from jax.experimental import pallas as pl
from jax.experimental.pallas import tpu as pltpu


# --------------------------------------------------------------------------
# Fused Pallas kernel: conv stack + head, fully VMEM-resident
# --------------------------------------------------------------------------
def _elu(x):
    # ELU with alpha=1.0 (PyTorch default). min() guards exp overflow for x>0 lane.
    return jnp.where(x > 0, x, jnp.exp(jnp.minimum(x, 0.0)) - 1.0)


def _fused_forward_kernel(x_ref,
                          sel0_ref, w0_ref, b0_ref,
                          sel1_ref, w1_ref, b1_ref,
                          sel2_ref, w2_ref, b2_ref,
                          sel3_ref, w3_ref, b3_ref,
                          pool_ref, fc1w_ref, fc1b_ref, fc2w_ref, fc2b_ref,
                          o_ref, *, apply_softmax):
    """Whole forward pass for one (B, L) batch of embedded tokens.

    x_ref    : (B*L0, E)  embedded sequence, batch flattened into rows.
    sel*_ref : (K, B*L_out, B*L_in)  constant 0/1 selection matrices.  Row
               b*L_out+t of tap j selects input row b*L_in + stride*t + j, so
               y = ELU( sum_j sel[j] @ (x @ W[j]) + b ) is exactly the PyTorch
               Conv1d (valid padding) in channels-last layout, with batch
               boundaries respected (block-diagonal).
    w*_ref   : (K, C_in, C_out)  conv weights, b*_ref: (1, C_out).
    pool_ref : (B, B*L_rem) rows of 1/L_rem -> avg_pool1d over remaining length.
    fc*      : fc1 (C,H)+(1,H), fc2 (H,NC)+(1,NC).
    o_ref    : (B, NC).
    """
    x = x_ref[...]
    layers = ((sel0_ref, w0_ref, b0_ref),
              (sel1_ref, w1_ref, b1_ref),
              (sel2_ref, w2_ref, b2_ref),
              (sel3_ref, w3_ref, b3_ref))
    for sel_ref, w_ref, b_ref in layers:
        k_taps = w_ref.shape[0]
        y = None
        for j in range(k_taps):                       # static unrolled K=3 taps
            p = jnp.dot(x, w_ref[j], preferred_element_type=jnp.float32)        # (M_in, C_out)
            t = jnp.dot(sel_ref[j], p, preferred_element_type=jnp.float32)      # (M_out, C_out)
            y = t if y is None else y + t
        x = _elu(y + b_ref[...])                      # bias (1, C_out) broadcast

    # avg_pool1d over remaining length as an MXU matmul (review item).
    pooled = jnp.dot(pool_ref[...], x, preferred_element_type=jnp.float32)      # (B, C)

    h = jnp.dot(pooled, fc1w_ref[...], preferred_element_type=jnp.float32) + fc1b_ref[...]
    h = jnp.maximum(h, 0.0)                           # ReLU
    logits = jnp.dot(h, fc2w_ref[...], preferred_element_type=jnp.float32) + fc2b_ref[...]

    if apply_softmax:
        m = jnp.max(logits, axis=1, keepdims=True)
        e = jnp.exp(logits - m)
        logits = e / jnp.sum(e, axis=1, keepdims=True)

    o_ref[...] = logits.astype(o_ref.dtype)


# --------------------------------------------------------------------------
# Static plan: selection matrices for conv taps/strides + pooling matrix
# --------------------------------------------------------------------------
@functools.lru_cache(maxsize=None)
def _conv_plan(batch, seq_len, strides=(1, 2, 2, 1), kernel_size=3):
    """Constant 0/1 matrices encoding im2col tap shift + stride + batch blocks."""
    sels = []
    length = seq_len
    for s in strides:
        l_out = (length - kernel_size) // s + 1
        sel = np.zeros((kernel_size, batch * l_out, batch * length), np.float32)
        for j in range(kernel_size):
            for b in range(batch):
                for t in range(l_out):
                    sel[j, b * l_out + t, b * length + s * t + j] = 1.0
        sels.append(sel)
        length = l_out
    pool = np.zeros((batch, batch * length), np.float32)
    for b in range(batch):
        pool[b, b * length:(b + 1) * length] = 1.0 / length
    return tuple(sels), pool, length


# --------------------------------------------------------------------------
# Params (stored directly in the kernel's compute layout: review item)
# --------------------------------------------------------------------------
def init_params(key, *, embedding_size, num_embeddings, num_channels,
                hidden_dim, num_classes, padding_idx=0):
    ks = jax.random.split(key, 11)
    E, V, C, H, NC = embedding_size, num_embeddings, num_channels, hidden_dim, num_classes
    emb = 0.1 * jax.random.normal(ks[0], (V, E), jnp.float32)
    emb = emb.at[padding_idx].set(0.0)            # nn.Embedding padding_idx behaviour
    params = {"emb": emb}
    conv_in = [E, C, C, C]
    for i, c_in in enumerate(conv_in):
        fan_in = c_in * 3
        # Matmul layout (K, C_in, C_out) == transpose((2,1,0)) of PyTorch (C_out, C_in, K).
        params[f"conv{i}_w"] = (jax.random.normal(ks[1 + 2 * i], (3, c_in, C), jnp.float32)
                                / np.sqrt(fan_in))
        params[f"conv{i}_b"] = 0.01 * jax.random.normal(ks[2 + 2 * i], (1, C), jnp.float32)
    params["fc1_w"] = jax.random.normal(ks[9], (C, H), jnp.float32) / np.sqrt(C)   # (in, out)
    params["fc1_b"] = jnp.zeros((1, H), jnp.float32)
    params["fc2_w"] = jax.random.normal(ks[10], (H, NC), jnp.float32) / np.sqrt(H)  # (in, out)
    params["fc2_b"] = jnp.zeros((1, NC), jnp.float32)
    return params


# --------------------------------------------------------------------------
# Forward: embedding gather (XLA glue) -> single fused Pallas call
# --------------------------------------------------------------------------
def review_classifier_forward(params, x_in, apply_softmax=False):
    """x_in: (B, L) int token ids. Returns (B, num_classes) float32."""
    B, L0 = x_in.shape
    E = params["emb"].shape[1]
    NC = params["fc2_b"].shape[-1]

    # Embedding lookup stays as XLA glue; the (B*L0, E) slab is the kernel's only
    # activation input (everything downstream stays in VMEM).
    x = jnp.take(params["emb"], x_in, axis=0).reshape(B * L0, E).astype(jnp.float32)

    sels, pool, _ = _conv_plan(B, L0)
    args = [x]
    for i in range(4):
        args += [jnp.asarray(sels[i]), params[f"conv{i}_w"], params[f"conv{i}_b"]]
    args += [jnp.asarray(pool), params["fc1_w"], params["fc1_b"],
             params["fc2_w"], params["fc2_b"]]

    kernel = functools.partial(_fused_forward_kernel, apply_softmax=apply_softmax)
    return pl.pallas_call(
        kernel,
        out_shape=jax.ShapeDtypeStruct((B, NC), jnp.float32),
        # Gridless: every operand (< ~200 KiB total) lives whole in VMEM.
        compiler_params=pltpu.CompilerParams(vmem_limit_bytes=16 * 1024 * 1024),
    )(*args)


# --------------------------------------------------------------------------
# Pure-numpy (float64) reference for a structural correctness check
# --------------------------------------------------------------------------
def _reference_forward(params, x_in, apply_softmax=False):
    emb = np.asarray(params["emb"], np.float64)
    x = emb[np.asarray(x_in)]                                   # (B, L, E) channels-last
    strides = (1, 2, 2, 1)
    for i, s in enumerate(strides):
        w = np.asarray(params[f"conv{i}_w"], np.float64)        # (K, C_in, C_out)
        b = np.asarray(params[f"conv{i}_b"], np.float64)        # (1, C_out)
        K = w.shape[0]
        B, L, _ = x.shape
        L_out = (L - K) // s + 1
        y = np.zeros((B, L_out, w.shape[2]), np.float64)
        for t in range(L_out):
            acc = np.array(b[0])
            for j in range(K):
                acc = acc + x[:, s * t + j, :] @ w[j]
            y[:, t, :] = acc
        x = np.where(y > 0, y, np.exp(np.minimum(y, 0.0)) - 1.0)
    pooled = x.mean(axis=1)
    h = np.maximum(pooled @ np.asarray(params["fc1_w"], np.float64)
                   + np.asarray(params["fc1_b"], np.float64), 0.0)
    logits = h @ np.asarray(params["fc2_w"], np.float64) + np.asarray(params["fc2_b"], np.float64)
    if apply_softmax:
        e = np.exp(logits - logits.max(axis=1, keepdims=True))
        logits = e / e.sum(axis=1, keepdims=True)
    return logits


# --------------------------------------------------------------------------
# Main
# --------------------------------------------------------------------------
if __name__ == "__main__":
    embedding_size = 16
    num_embeddings = 64
    num_channels = 16
    hidden_dim = 32
    num_classes = 4
    batch = 2
    seq_len = 32   # conv lengths: 32 -> 30 -> 14 -> 6 -> 4

    key = jax.random.PRNGKey(0)
    pkey, xkey = jax.random.split(key)
    params = init_params(pkey,
                         embedding_size=embedding_size,
                         num_embeddings=num_embeddings,
                         num_channels=num_channels,
                         hidden_dim=hidden_dim,
                         num_classes=num_classes)

    x_in = jax.random.randint(xkey, (batch, seq_len), 0, num_embeddings, dtype=jnp.int32)
    x_in = x_in.at[:, -4:].set(0)   # some padding tokens (padding_idx=0)

    logits = review_classifier_forward(params, x_in, apply_softmax=False)
    probs = review_classifier_forward(params, x_in, apply_softmax=True)
    jax.block_until_ready(logits)
    jax.block_until_ready(probs)

    assert logits.shape == (batch, num_classes)
    assert probs.shape == (batch, num_classes)

    # Structural sanity check against a float64 numpy reference (loose tolerance
    # to allow for MXU f32 accumulation differences).
    ref_logits = _reference_forward(params, x_in, apply_softmax=False)
    ref_probs = _reference_forward(params, x_in, apply_softmax=True)
    assert np.allclose(np.asarray(logits), ref_logits, rtol=1e-2, atol=1e-2)
    assert np.allclose(np.asarray(probs), ref_probs, rtol=1e-2, atol=1e-2)
    assert np.allclose(np.asarray(probs).sum(axis=1), 1.0, atol=1e-3)

    print("KERNEL_OK")
</pallas_src>

<mosaic_0001>
module attributes {stable_mosaic.version = 11 : i64} {
  func.func @_fused_forward_kernel(%arg0: memref<64x16xf32, #tpu.memory_space<vmem>>, %arg1: memref<3x60x64xf32, #tpu.memory_space<vmem>>, %arg2: memref<3x16x16xf32, #tpu.memory_space<vmem>>, %arg3: memref<1x16xf32, #tpu.memory_space<vmem>>, %arg4: memref<3x28x60xf32, #tpu.memory_space<vmem>>, %arg5: memref<3x16x16xf32, #tpu.memory_space<vmem>>, %arg6: memref<1x16xf32, #tpu.memory_space<vmem>>, %arg7: memref<3x12x28xf32, #tpu.memory_space<vmem>>, %arg8: memref<3x16x16xf32, #tpu.memory_space<vmem>>, %arg9: memref<1x16xf32, #tpu.memory_space<vmem>>, %arg10: memref<3x8x12xf32, #tpu.memory_space<vmem>>, %arg11: memref<3x16x16xf32, #tpu.memory_space<vmem>>, %arg12: memref<1x16xf32, #tpu.memory_space<vmem>>, %arg13: memref<2x8xf32, #tpu.memory_space<vmem>>, %arg14: memref<16x32xf32, #tpu.memory_space<vmem>>, %arg15: memref<1x32xf32, #tpu.memory_space<vmem>>, %arg16: memref<32x4xf32, #tpu.memory_space<vmem>>, %arg17: memref<1x4xf32, #tpu.memory_space<vmem>>, %arg18: memref<2x4xf32, #tpu.memory_space<vmem>>) attributes {dimension_semantics = [], scalar_prefetch = 0 : i64, scratch_operands = 0 : i64, tpu.core_type = #tpu.core_type<tc>} {
    %c0 = arith.constant 0 : index
    %c0_0 = arith.constant 0 : index
    %0 = vector.load %arg0[%c0, %c0_0] : memref<64x16xf32, #tpu.memory_space<vmem>>, vector<64x16xf32>
    %c0_1 = arith.constant 0 : index
    %c0_2 = arith.constant 0 : index
    %c0_3 = arith.constant 0 : index
    %1 = vector.load %arg2[%c0_1, %c0_2, %c0_3] : memref<3x16x16xf32, #tpu.memory_space<vmem>>, vector<1x16x16xf32>
    %2 = vector.shape_cast %1 : vector<1x16x16xf32> to vector<16x16xf32>
    %cst = arith.constant dense<0.000000e+00> : vector<64x16xf32>
    %3 = tpu.matmul %0, %2, %cst {dimension_numbers = #tpu.dot_dimension_numbers<[1], [0], [0], [1], [0, 0, 1, 1], [], []>} : vector<64x16xf32>, vector<16x16xf32>, vector<64x16xf32> -> vector<64x16xf32>
    %c0_4 = arith.constant 0 : index
    %c0_5 = arith.constant 0 : index
    %c0_6 = arith.constant 0 : index
    %4 = vector.load %arg1[%c0_4, %c0_5, %c0_6] : memref<3x60x64xf32, #tpu.memory_space<vmem>>, vector<1x60x64xf32>
    %5 = vector.shape_cast %4 : vector<1x60x64xf32> to vector<60x64xf32>
    %cst_7 = arith.constant dense<0.000000e+00> : vector<60x16xf32>
    %6 = tpu.matmul %5, %3, %cst_7 {dimension_numbers = #tpu.dot_dimension_numbers<[1], [0], [0], [1], [0, 0, 1, 1], [], []>} : vector<60x64xf32>, vector<64x16xf32>, vector<60x16xf32> -> vector<60x16xf32>
    %c1 = arith.constant 1 : index
    %c0_8 = arith.constant 0 : index
    %c0_9 = arith.constant 0 : index
    %7 = vector.load %arg2[%c1, %c0_8, %c0_9] : memref<3x16x16xf32, #tpu.memory_space<vmem>>, vector<1x16x16xf32>
    %8 = vector.shape_cast %7 : vector<1x16x16xf32> to vector<16x16xf32>
    %cst_10 = arith.constant dense<0.000000e+00> : vector<64x16xf32>
    %9 = tpu.matmul %0, %8, %cst_10 {dimension_numbers = #tpu.dot_dimension_numbers<[1], [0], [0], [1], [0, 0, 1, 1], [], []>} : vector<64x16xf32>, vector<16x16xf32>, vector<64x16xf32> -> vector<64x16xf32>
    %c1_11 = arith.constant 1 : index
    %c0_12 = arith.constant 0 : index
    %c0_13 = arith.constant 0 : index
    %10 = vector.load %arg1[%c1_11, %c0_12, %c0_13] : memref<3x60x64xf32, #tpu.memory_space<vmem>>, vector<1x60x64xf32>
    %11 = vector.shape_cast %10 : vector<1x60x64xf32> to vector<60x64xf32>
    %cst_14 = arith.constant dense<0.000000e+00> : vector<60x16xf32>
    %12 = tpu.matmul %11, %9, %cst_14 {dimension_numbers = #tpu.dot_dimension_numbers<[1], [0], [0], [1], [0, 0, 1, 1], [], []>} : vector<60x64xf32>, vector<64x16xf32>, vector<60x16xf32> -> vector<60x16xf32>
    %13 = arith.addf %6, %12 : vector<60x16xf32>
    %c2 = arith.constant 2 : index
    %c0_15 = arith.constant 0 : index
    %c0_16 = arith.constant 0 : index
    %14 = vector.load %arg2[%c2, %c0_15, %c0_16] : memref<3x16x16xf32, #tpu.memory_space<vmem>>, vector<1x16x16xf32>
    %15 = vector.shape_cast %14 : vector<1x16x16xf32> to vector<16x16xf32>
    %cst_17 = arith.constant dense<0.000000e+00> : vector<64x16xf32>
    %16 = tpu.matmul %0, %15, %cst_17 {dimension_numbers = #tpu.dot_dimension_numbers<[1], [0], [0], [1], [0, 0, 1, 1], [], []>} : vector<64x16xf32>, vector<16x16xf32>, vector<64x16xf32> -> vector<64x16xf32>
    %c2_18 = arith.constant 2 : index
    %c0_19 = arith.constant 0 : index
    %c0_20 = arith.constant 0 : index
    %17 = vector.load %arg1[%c2_18, %c0_19, %c0_20] : memref<3x60x64xf32, #tpu.memory_space<vmem>>, vector<1x60x64xf32>
    %18 = vector.shape_cast %17 : vector<1x60x64xf32> to vector<60x64xf32>
    %cst_21 = arith.constant dense<0.000000e+00> : vector<60x16xf32>
    %19 = tpu.matmul %18, %16, %cst_21 {dimension_numbers = #tpu.dot_dimension_numbers<[1], [0], [0], [1], [0, 0, 1, 1], [], []>} : vector<60x64xf32>, vector<64x16xf32>, vector<60x16xf32> -> vector<60x16xf32>
    %20 = arith.addf %13, %19 : vector<60x16xf32>
    %c0_22 = arith.constant 0 : index
    %c0_23 = arith.constant 0 : index
    %21 = vector.load %arg3[%c0_22, %c0_23] : memref<1x16xf32, #tpu.memory_space<vmem>>, vector<1x16xf32>
    %22 = vector.broadcast %21 : vector<1x16xf32> to vector<60x16xf32>
    %23 = arith.addf %20, %22 : vector<60x16xf32>
    %cst_24 = arith.constant 0.000000e+00 : f32
    %24 = vector.broadcast %cst_24 : f32 to vector<60x16xf32>
    %25 = arith.cmpf ogt, %23, %24 : vector<60x16xf32>
    %cst_25 = arith.constant 0.000000e+00 : f32
    %26 = vector.broadcast %cst_25 : f32 to vector<60x16xf32>
    %27 = arith.minimumf %23, %26 : vector<60x16xf32>
    %28 = math.exp %27 : vector<60x16xf32>
    %cst_26 = arith.constant 1.000000e+00 : f32
    %29 = vector.broadcast %cst_26 : f32 to vector<60x16xf32>
    %30 = arith.subf %28, %29 : vector<60x16xf32>
    %31 = arith.select %25, %23, %30 : vector<60x16xi1>, vector<60x16xf32>
    %c0_27 = arith.constant 0 : index
    %c0_28 = arith.constant 0 : index
    %c0_29 = arith.constant 0 : index
    %32 = vector.load %arg5[%c0_27, %c0_28, %c0_29] : memref<3x16x16xf32, #tpu.memory_space<vmem>>, vector<1x16x16xf32>
    %33 = vector.shape_cast %32 : vector<1x16x16xf32> to vector<16x16xf32>
    %cst_30 = arith.constant dense<0.000000e+00> : vector<60x16xf32>
    %34 = tpu.matmul %31, %33, %cst_30 {dimension_numbers = #tpu.dot_dimension_numbers<[1], [0], [0], [1], [0, 0, 1, 1], [], []>} : vector<60x16xf32>, vector<16x16xf32>, vector<60x16xf32> -> vector<60x16xf32>
    %c0_31 = arith.constant 0 : index
    %c0_32 = arith.constant 0 : index
    %c0_33 = arith.constant 0 : index
    %35 = vector.load %arg4[%c0_31, %c0_32, %c0_33] : memref<3x28x60xf32, #tpu.memory_space<vmem>>, vector<1x28x60xf32>
    %36 = vector.shape_cast %35 : vector<1x28x60xf32> to vector<28x60xf32>
    %cst_34 = arith.constant dense<0.000000e+00> : vector<28x16xf32>
    %37 = tpu.matmul %36, %34, %cst_34 {dimension_numbers = #tpu.dot_dimension_numbers<[1], [0], [0], [1], [0, 0, 1, 1], [], []>} : vector<28x60xf32>, vector<60x16xf32>, vector<28x16xf32> -> vector<28x16xf32>
    %c1_35 = arith.constant 1 : index
    %c0_36 = arith.constant 0 : index
    %c0_37 = arith.constant 0 : index
    %38 = vector.load %arg5[%c1_35, %c0_36, %c0_37] : memref<3x16x16xf32, #tpu.memory_space<vmem>>, vector<1x16x16xf32>
    %39 = vector.shape_cast %38 : vector<1x16x16xf32> to vector<16x16xf32>
    %cst_38 = arith.constant dense<0.000000e+00> : vector<60x16xf32>
    %40 = tpu.matmul %31, %39, %cst_38 {dimension_numbers = #tpu.dot_dimension_numbers<[1], [0], [0], [1], [0, 0, 1, 1], [], []>} : vector<60x16xf32>, vector<16x16xf32>, vector<60x16xf32> -> vector<60x16xf32>
    %c1_39 = arith.constant 1 : index
    %c0_40 = arith.constant 0 : index
    %c0_41 = arith.constant 0 : index
    %41 = vector.load %arg4[%c1_39, %c0_40, %c0_41] : memref<3x28x60xf32, #tpu.memory_space<vmem>>, vector<1x28x60xf32>
    %42 = vector.shape_cast %41 : vector<1x28x60xf32> to vector<28x60xf32>
    %cst_42 = arith.constant dense<0.000000e+00> : vector<28x16xf32>
    %43 = tpu.matmul %42, %40, %cst_42 {dimension_numbers = #tpu.dot_dimension_numbers<[1], [0], [0], [1], [0, 0, 1, 1], [], []>} : vector<28x60xf32>, vector<60x16xf32>, vector<28x16xf32> -> vector<28x16xf32>
    %44 = arith.addf %37, %43 : vector<28x16xf32>
    %c2_43 = arith.constant 2 : index
    %c0_44 = arith.constant 0 : index
    %c0_45 = arith.constant 0 : index
    %45 = vector.load %arg5[%c2_43, %c0_44, %c0_45] : memref<3x16x16xf32, #tpu.memory_space<vmem>>, vector<1x16x16xf32>
    %46 = vector.shape_cast %45 : vector<1x16x16xf32> to vector<16x16xf32>
    %cst_46 = arith.constant dense<0.000000e+00> : vector<60x16xf32>
    %47 = tpu.matmul %31, %46, %cst_46 {dimension_numbers = #tpu.dot_dimension_numbers<[1], [0], [0], [1], [0, 0, 1, 1], [], []>} : vector<60x16xf32>, vector<16x16xf32>, vector<60x16xf32> -> vector<60x16xf32>
    %c2_47 = arith.constant 2 : index
    %c0_48 = arith.constant 0 : index
    %c0_49 = arith.constant 0 : index
    %48 = vector.load %arg4[%c2_47, %c0_48, %c0_49] : memref<3x28x60xf32, #tpu.memory_space<vmem>>, vector<1x28x60xf32>
    %49 = vector.shape_cast %48 : vector<1x28x60xf32> to vector<28x60xf32>
    %cst_50 = arith.constant dense<0.000000e+00> : vector<28x16xf32>
    %50 = tpu.matmul %49, %47, %cst_50 {dimension_numbers = #tpu.dot_dimension_numbers<[1], [0], [0], [1], [0, 0, 1, 1], [], []>} : vector<28x60xf32>, vector<60x16xf32>, vector<28x16xf32> -> vector<28x16xf32>
    %51 = arith.addf %44, %50 : vector<28x16xf32>
    %c0_51 = arith.constant 0 : index
    %c0_52 = arith.constant 0 : index
    %52 = vector.load %arg6[%c0_51, %c0_52] : memref<1x16xf32, #tpu.memory_space<vmem>>, vector<1x16xf32>
    %53 = vector.broadcast %52 : vector<1x16xf32> to vector<28x16xf32>
    %54 = arith.addf %51, %53 : vector<28x16xf32>
    %cst_53 = arith.constant 0.000000e+00 : f32
    %55 = vector.broadcast %cst_53 : f32 to vector<28x16xf32>
    %56 = arith.cmpf ogt, %54, %55 : vector<28x16xf32>
    %cst_54 = arith.constant 0.000000e+00 : f32
    %57 = vector.broadcast %cst_54 : f32 to vector<28x16xf32>
    %58 = arith.minimumf %54, %57 : vector<28x16xf32>
    %59 = math.exp %58 : vector<28x16xf32>
    %cst_55 = arith.constant 1.000000e+00 : f32
    %60 = vector.broadcast %cst_55 : f32 to vector<28x16xf32>
    %61 = arith.subf %59, %60 : vector<28x16xf32>
    %62 = arith.select %56, %54, %61 : vector<28x16xi1>, vector<28x16xf32>
    %c0_56 = arith.constant 0 : index
    %c0_57 = arith.constant 0 : index
    %c0_58 = arith.constant 0 : index
    %63 = vector.load %arg8[%c0_56, %c0_57, %c0_58] : memref<3x16x16xf32, #tpu.memory_space<vmem>>, vector<1x16x16xf32>
    %64 = vector.shape_cast %63 : vector<1x16x16xf32> to vector<16x16xf32>
    %cst_59 = arith.constant dense<0.000000e+00> : vector<28x16xf32>
    %65 = tpu.matmul %62, %64, %cst_59 {dimension_numbers = #tpu.dot_dimension_numbers<[1], [0], [0], [1], [0, 0, 1, 1], [], []>} : vector<28x16xf32>, vector<16x16xf32>, vector<28x16xf32> -> vector<28x16xf32>
    %c0_60 = arith.constant 0 : index
    %c0_61 = arith.constant 0 : index
    %c0_62 = arith.constant 0 : index
    %66 = vector.load %arg7[%c0_60, %c0_61, %c0_62] : memref<3x12x28xf32, #tpu.memory_space<vmem>>, vector<1x12x28xf32>
    %67 = vector.shape_cast %66 : vector<1x12x28xf32> to vector<12x28xf32>
    %cst_63 = arith.constant dense<0.000000e+00> : vector<12x16xf32>
    %68 = tpu.matmul %67, %65, %cst_63 {dimension_numbers = #tpu.dot_dimension_numbers<[1], [0], [0], [1], [0, 0, 1, 1], [], []>} : vector<12x28xf32>, vector<28x16xf32>, vector<12x16xf32> -> vector<12x16xf32>
    %c1_64 = arith.constant 1 : index
    %c0_65 = arith.constant 0 : index
    %c0_66 = arith.constant 0 : index
    %69 = vector.load %arg8[%c1_64, %c0_65, %c0_66] : memref<3x16x16xf32, #tpu.memory_space<vmem>>, vector<1x16x16xf32>
    %70 = vector.shape_cast %69 : vector<1x16x16xf32> to vector<16x16xf32>
    %cst_67 = arith.constant dense<0.000000e+00> : vector<28x16xf32>
    %71 = tpu.matmul %62, %70, %cst_67 {dimension_numbers = #tpu.dot_dimension_numbers<[1], [0], [0], [1], [0, 0, 1, 1], [], []>} : vector<28x16xf32>, vector<16x16xf32>, vector<28x16xf32> -> vector<28x16xf32>
    %c1_68 = arith.constant 1 : index
    %c0_69 = arith.constant 0 : index
    %c0_70 = arith.constant 0 : index
    %72 = vector.load %arg7[%c1_68, %c0_69, %c0_70] : memref<3x12x28xf32, #tpu.memory_space<vmem>>, vector<1x12x28xf32>
    %73 = vector.shape_cast %72 : vector<1x12x28xf32> to vector<12x28xf32>
    %cst_71 = arith.constant dense<0.000000e+00> : vector<12x16xf32>
    %74 = tpu.matmul %73, %71, %cst_71 {dimension_numbers = #tpu.dot_dimension_numbers<[1], [0], [0], [1], [0, 0, 1, 1], [], []>} : vector<12x28xf32>, vector<28x16xf32>, vector<12x16xf32> -> vector<12x16xf32>
    %75 = arith.addf %68, %74 : vector<12x16xf32>
    %c2_72 = arith.constant 2 : index
    %c0_73 = arith.constant 0 : index
    %c0_74 = arith.constant 0 : index
    %76 = vector.load %arg8[%c2_72, %c0_73, %c0_74] : memref<3x16x16xf32, #tpu.memory_space<vmem>>, vector<1x16x16xf32>
    %77 = vector.shape_cast %76 : vector<1x16x16xf32> to vector<16x16xf32>
    %cst_75 = arith.constant dense<0.000000e+00> : vector<28x16xf32>
    %78 = tpu.matmul %62, %77, %cst_75 {dimension_numbers = #tpu.dot_dimension_numbers<[1], [0], [0], [1], [0, 0, 1, 1], [], []>} : vector<28x16xf32>, vector<16x16xf32>, vector<28x16xf32> -> vector<28x16xf32>
    %c2_76 = arith.constant 2 : index
    %c0_77 = arith.constant 0 : index
    %c0_78 = arith.constant 0 : index
    %79 = vector.load %arg7[%c2_76, %c0_77, %c0_78] : memref<3x12x28xf32, #tpu.memory_space<vmem>>, vector<1x12x28xf32>
    %80 = vector.shape_cast %79 : vector<1x12x28xf32> to vector<12x28xf32>
    %cst_79 = arith.constant dense<0.000000e+00> : vector<12x16xf32>
    %81 = tpu.matmul %80, %78, %cst_79 {dimension_numbers = #tpu.dot_dimension_numbers<[1], [0], [0], [1], [0, 0, 1, 1], [], []>} : vector<12x28xf32>, vector<28x16xf32>, vector<12x16xf32> -> vector<12x16xf32>
    %82 = arith.addf %75, %81 : vector<12x16xf32>
    %c0_80 = arith.constant 0 : index
    %c0_81 = arith.constant 0 : index
    %83 = vector.load %arg9[%c0_80, %c0_81] : memref<1x16xf32, #tpu.memory_space<vmem>>, vector<1x16xf32>
    %84 = vector.broadcast %83 : vector<1x16xf32> to vector<12x16xf32>
    %85 = arith.addf %82, %84 : vector<12x16xf32>
    %cst_82 = arith.constant 0.000000e+00 : f32
    %86 = vector.broadcast %cst_82 : f32 to vector<12x16xf32>
    %87 = arith.cmpf ogt, %85, %86 : vector<12x16xf32>
    %cst_83 = arith.constant 0.000000e+00 : f32
    %88 = vector.broadcast %cst_83 : f32 to vector<12x16xf32>
    %89 = arith.minimumf %85, %88 : vector<12x16xf32>
    %90 = math.exp %89 : vector<12x16xf32>
    %cst_84 = arith.constant 1.000000e+00 : f32
    %91 = vector.broadcast %cst_84 : f32 to vector<12x16xf32>
    %92 = arith.subf %90, %91 : vector<12x16xf32>
    %93 = arith.select %87, %85, %92 : vector<12x16xi1>, vector<12x16xf32>
    %c0_85 = arith.constant 0 : index
    %c0_86 = arith.constant 0 : index
    %c0_87 = arith.constant 0 : index
    %94 = vector.load %arg11[%c0_85, %c0_86, %c0_87] : memref<3x16x16xf32, #tpu.memory_space<vmem>>, vector<1x16x16xf32>
    %95 = vector.shape_cast %94 : vector<1x16x16xf32> to vector<16x16xf32>
    %cst_88 = arith.constant dense<0.000000e+00> : vector<12x16xf32>
    %96 = tpu.matmul %93, %95, %cst_88 {dimension_numbers = #tpu.dot_dimension_numbers<[1], [0], [0], [1], [0, 0, 1, 1], [], []>} : vector<12x16xf32>, vector<16x16xf32>, vector<12x16xf32> -> vector<12x16xf32>
    %c0_89 = arith.constant 0 : index
    %c0_90 = arith.constant 0 : index
    %c0_91 = arith.constant 0 : index
    %97 = vector.load %arg10[%c0_89, %c0_90, %c0_91] : memref<3x8x12xf32, #tpu.memory_space<vmem>>, vector<1x8x12xf32>
    %98 = vector.shape_cast %97 : vector<1x8x12xf32> to vector<8x12xf32>
    %cst_92 = arith.constant dense<0.000000e+00> : vector<8x16xf32>
    %99 = tpu.matmul %98, %96, %cst_92 {dimension_numbers = #tpu.dot_dimension_numbers<[1], [0], [0], [1], [0, 0, 1, 1], [], []>} : vector<8x12xf32>, vector<12x16xf32>, vector<8x16xf32> -> vector<8x16xf32>
    %c1_93 = arith.constant 1 : index
    %c0_94 = arith.constant 0 : index
    %c0_95 = arith.constant 0 : index
    %100 = vector.load %arg11[%c1_93, %c0_94, %c0_95] : memref<3x16x16xf32, #tpu.memory_space<vmem>>, vector<1x16x16xf32>
    %101 = vector.shape_cast %100 : vector<1x16x16xf32> to vector<16x16xf32>
    %cst_96 = arith.constant dense<0.000000e+00> : vector<12x16xf32>
    %102 = tpu.matmul %93, %101, %cst_96 {dimension_numbers = #tpu.dot_dimension_numbers<[1], [0], [0], [1], [0, 0, 1, 1], [], []>} : vector<12x16xf32>, vector<16x16xf32>, vector<12x16xf32> -> vector<12x16xf32>
    %c1_97 = arith.constant 1 : index
    %c0_98 = arith.constant 0 : index
    %c0_99 = arith.constant 0 : index
    %103 = vector.load %arg10[%c1_97, %c0_98, %c0_99] : memref<3x8x12xf32, #tpu.memory_space<vmem>>, vector<1x8x12xf32>
    %104 = vector.shape_cast %103 : vector<1x8x12xf32> to vector<8x12xf32>
    %cst_100 = arith.constant dense<0.000000e+00> : vector<8x16xf32>
    %105 = tpu.matmul %104, %102, %cst_100 {dimension_numbers = #tpu.dot_dimension_numbers<[1], [0], [0], [1], [0, 0, 1, 1], [], []>} : vector<8x12xf32>, vector<12x16xf32>, vector<8x16xf32> -> vector<8x16xf32>
    %106 = arith.addf %99, %105 : vector<8x16xf32>
    %c2_101 = arith.constant 2 : index
    %c0_102 = arith.constant 0 : index
    %c0_103 = arith.constant 0 : index
    %107 = vector.load %arg11[%c2_101, %c0_102, %c0_103] : memref<3x16x16xf32, #tpu.memory_space<vmem>>, vector<1x16x16xf32>
    %108 = vector.shape_cast %107 : vector<1x16x16xf32> to vector<16x16xf32>
    %cst_104 = arith.constant dense<0.000000e+00> : vector<12x16xf32>
    %109 = tpu.matmul %93, %108, %cst_104 {dimension_numbers = #tpu.dot_dimension_numbers<[1], [0], [0], [1], [0, 0, 1, 1], [], []>} : vector<12x16xf32>, vector<16x16xf32>, vector<12x16xf32> -> vector<12x16xf32>
    %c2_105 = arith.constant 2 : index
    %c0_106 = arith.constant 0 : index
    %c0_107 = arith.constant 0 : index
    %110 = vector.load %arg10[%c2_105, %c0_106, %c0_107] : memref<3x8x12xf32, #tpu.memory_space<vmem>>, vector<1x8x12xf32>
    %111 = vector.shape_cast %110 : vector<1x8x12xf32> to vector<8x12xf32>
    %cst_108 = arith.constant dense<0.000000e+00> : vector<8x16xf32>
    %112 = tpu.matmul %111, %109, %cst_108 {dimension_numbers = #tpu.dot_dimension_numbers<[1], [0], [0], [1], [0, 0, 1, 1], [], []>} : vector<8x12xf32>, vector<12x16xf32>, vector<8x16xf32> -> vector<8x16xf32>
    %113 = arith.addf %106, %112 : vector<8x16xf32>
    %c0_109 = arith.constant 0 : index
    %c0_110 = arith.constant 0 : index
    %114 = vector.load %arg12[%c0_109, %c0_110] : memref<1x16xf32, #tpu.memory_space<vmem>>, vector<1x16xf32>
    %115 = vector.broadcast %114 : vector<1x16xf32> to vector<8x16xf32>
    %116 = arith.addf %113, %115 : vector<8x16xf32>
    %cst_111 = arith.constant 0.000000e+00 : f32
    %117 = vector.broadcast %cst_111 : f32 to vector<8x16xf32>
    %118 = arith.cmpf ogt, %116, %117 : vector<8x16xf32>
    %cst_112 = arith.constant 0.000000e+00 : f32
    %119 = vector.broadcast %cst_112 : f32 to vector<8x16xf32>
    %120 = arith.minimumf %116, %119 : vector<8x16xf32>
    %121 = math.exp %120 : vector<8x16xf32>
    %cst_113 = arith.constant 1.000000e+00 : f32
    %122 = vector.broadcast %cst_113 : f32 to vector<8x16xf32>
    %123 = arith.subf %121, %122 : vector<8x16xf32>
    %124 = arith.select %118, %116, %123 : vector<8x16xi1>, vector<8x16xf32>
    %c0_114 = arith.constant 0 : index
    %c0_115 = arith.constant 0 : index
    %125 = vector.load %arg13[%c0_114, %c0_115] : memref<2x8xf32, #tpu.memory_space<vmem>>, vector<2x8xf32>
    %cst_116 = arith.constant dense<0.000000e+00> : vector<2x16xf32>
    %126 = tpu.matmul %125, %124, %cst_116 {dimension_numbers = #tpu.dot_dimension_numbers<[1], [0], [0], [1], [0, 0, 1, 1], [], []>} : vector<2x8xf32>, vector<8x16xf32>, vector<2x16xf32> -> vector<2x16xf32>
    %c0_117 = arith.constant 0 : index
    %c0_118 = arith.constant 0 : index
    %127 = vector.load %arg14[%c0_117, %c0_118] : memref<16x32xf32, #tpu.memory_space<vmem>>, vector<16x32xf32>
    %cst_119 = arith.constant dense<0.000000e+00> : vector<2x32xf32>
    %128 = tpu.matmul %126, %127, %cst_119 {dimension_numbers = #tpu.dot_dimension_numbers<[1], [0], [0], [1], [0, 0, 1, 1], [], []>} : vector<2x16xf32>, vector<16x32xf32>, vector<2x32xf32> -> vector<2x32xf32>
    %c0_120 = arith.constant 0 : index
    %c0_121 = arith.constant 0 : index
    %129 = vector.load %arg15[%c0_120, %c0_121] : memref<1x32xf32, #tpu.memory_space<vmem>>, vector<1x32xf32>
    %130 = vector.broadcast %129 : vector<1x32xf32> to vector<2x32xf32>
    %131 = arith.addf %128, %130 : vector<2x32xf32>
    %cst_122 = arith.constant 0.000000e+00 : f32
    %132 = vector.broadcast %cst_122 : f32 to vector<2x32xf32>
    %133 = arith.maximumf %131, %132 : vector<2x32xf32>
    %c0_123 = arith.constant 0 : index
    %c0_124 = arith.constant 0 : index
    %134 = vector.load %arg16[%c0_123, %c0_124] : memref<32x4xf32, #tpu.memory_space<vmem>>, vector<32x4xf32>
    %cst_125 = arith.constant dense<0.000000e+00> : vector<2x4xf32>
    %135 = tpu.matmul %133, %134, %cst_125 {dimension_numbers = #tpu.dot_dimension_numbers<[1], [0], [0], [1], [0, 0, 1, 1], [], []>} : vector<2x32xf32>, vector<32x4xf32>, vector<2x4xf32> -> vector<2x4xf32>
    %c0_126 = arith.constant 0 : index
    %c0_127 = arith.constant 0 : index
    %136 = vector.load %arg17[%c0_126, %c0_127] : memref<1x4xf32, #tpu.memory_space<vmem>>, vector<1x4xf32>
    %137 = vector.broadcast %136 : vector<1x4xf32> to vector<2x4xf32>
    %138 = arith.addf %135, %137 : vector<2x4xf32>
    %c0_128 = arith.constant 0 : index
    %c0_129 = arith.constant 0 : index
    %139 = vector.load %arg18[%c0_128, %c0_129] : memref<2x4xf32, #tpu.memory_space<vmem>>, vector<2x4xf32>
    tpu.vector_store %arg18[%c0_128, %c0_129], %138 {strides = array<i32>} : memref<2x4xf32, #tpu.memory_space<vmem>>, vector<2x4xf32>,
    return
  }
}

</mosaic_0001>

<llo_original>
// kernel: tpu_custom_call.1
$region0: #{tpu_custom_call.1}
  #allocation0 [shape = 'u32[]', space=smem, size = 0x4, offset = 0x4, fixed_abs, tag = 'smem constant byte address 0x4 - core index']
  #allocation1 [shape = 'u32[144,128]{1,0:T(1,128)}', space=vmem, size = 0x12000, scoped, tag = 'internal scratch']
  %s0 = inlined_call_operand.vmem [shape: f32[64,16], index: 0, kind: input, shape index: {}]
  %s1 = inlined_call_operand.hbm [shape: f32[3,60,64], index: 1, kind: input, shape index: {}]
  %s2 = inlined_call_operand.hbm [shape: f32[3,16,16], index: 2, kind: input, shape index: {}]
  %s3 = inlined_call_operand.vmem [shape: f32[1,16], index: 3, kind: input, shape index: {}]
  %s4 = inlined_call_operand.vmem [shape: f32[3,28,60], index: 4, kind: input, shape index: {}]
  %s5 = inlined_call_operand.hbm [shape: f32[3,16,16], index: 5, kind: input, shape index: {}]
  %s6 = inlined_call_operand.hbm [shape: f32[1,16], index: 6, kind: input, shape index: {}]
  %s7 = inlined_call_operand.hbm [shape: f32[3,12,28], index: 7, kind: input, shape index: {}]
  %s8 = inlined_call_operand.vmem [shape: f32[3,16,16], index: 8, kind: input, shape index: {}]
  %s9 = inlined_call_operand.hbm [shape: f32[1,16], index: 9, kind: input, shape index: {}]
  %s10 = inlined_call_operand.hbm [shape: f32[3,8,12], index: 10, kind: input, shape index: {}]
  %s11 = inlined_call_operand.hbm [shape: f32[3,16,16], index: 11, kind: input, shape index: {}]
  %s12 = inlined_call_operand.hbm [shape: f32[1,16], index: 12, kind: input, shape index: {}]
  %s13 = inlined_call_operand.hbm [shape: f32[2,8], index: 13, kind: input, shape index: {}]
  %s14 = inlined_call_operand.vmem [shape: f32[16,32], index: 14, kind: input, shape index: {}]
  %s15 = inlined_call_operand.vmem [shape: f32[1,32], index: 15, kind: input, shape index: {}]
  %s16 = inlined_call_operand.vmem [shape: f32[32,4], index: 16, kind: input, shape index: {}]
  %s17 = inlined_call_operand.vmem [shape: f32[1,4], index: 17, kind: input, shape index: {}]
  %s18 = inlined_call_operand.hbm [shape: f32[2,4], index: 18, kind: output, shape index: {}]
  %s19 = sld [smem:[#allocation0]]
  $region122: #{tpu_custom_call.1} parent=0
    _
  %s21 = ssub.s32 1, %s19
  %s22 = scalar_select 0, %s21, %s19
  $region1: #{tpu_custom_call.1} parent=0
    #allocation2 [shape = 'u8[98304]{0}', space=vmem, size = 0x18000, scoped, tag = 'input window, operand 1, single buffered']
    #allocation3 [shape = 's32[1]{0}', space=sflag, size = 0x4, scoped, tag = 'scoped memory for tpu_custom_call.1']
    #allocation4 [shape = 's32[1]{0}', space=sflag, size = 0x4, scoped, tag = 'scoped memory for tpu_custom_call.1']
    #allocation5 [shape = 'u8[24576]{0}', space=vmem, size = 0x6000, scoped, tag = 'input window, operand 2, single buffered']
    #allocation6 [shape = 's32[1]{0}', space=sflag, size = 0x4, scoped, tag = 'scoped memory for tpu_custom_call.1']
    #allocation7 [shape = 'u8[24576]{0}', space=vmem, size = 0x6000, scoped, tag = 'input window, operand 5, single buffered']
    #allocation8 [shape = 'u8[512]{0}', space=vmem, size = 0x400, scoped, tag = 'input window, operand 6, single buffered']
    #allocation9 [shape = 's32[1]{0}', space=sflag, size = 0x4, scoped, tag = 'scoped memory for tpu_custom_call.1']
    #allocation10 [shape = 'u8[24576]{0}', space=vmem, size = 0x6000, scoped, tag = 'input window, operand 7, single buffered']
    #allocation11 [shape = 'u8[512]{0}', space=vmem, size = 0x400, scoped, tag = 'input window, operand 9, single buffered']
    #allocation12 [shape = 's32[1]{0}', space=sflag, size = 0x4, scoped, tag = 'scoped memory for tpu_custom_call.1']
    #allocation13 [shape = 'u8[12288]{0}', space=vmem, size = 0x3000, scoped, tag = 'input window, operand 10, single buffered']
    #allocation14 [shape = 'u8[24576]{0}', space=vmem, size = 0x6000, scoped, tag = 'input window, operand 11, single buffered']
    #allocation15 [shape = 's32[1]{0}', space=sflag, size = 0x4, scoped, tag = 'scoped memory for tpu_custom_call.1']
    #allocation16 [shape = 'u8[512]{0}', space=vmem, size = 0x400, scoped, tag = 'input window, operand 12, single buffered']
    #allocation17 [shape = 'u8[1024]{0}', space=vmem, size = 0x400, scoped, tag = 'input window, operand 13, single buffered']
    #allocation18 [shape = 's32[1]{0}', space=sflag, size = 0x4, scoped, tag = 'scoped memory for tpu_custom_call.1']
    #allocation19 [shape = 'u8[1024]{0}', space=vmem, size = 0x400, scoped, tag = 'output window, operand 0, single buffered']
    %23 = vsyncpa [#allocation3], 0
    %24 = vsyncpa [#allocation6], 0
    %25 = vsyncpa [#allocation9], 0
    %26 = vsyncpa [#allocation12], 0
    %27 = vsyncpa [#allocation15], 0
    %28 = vsyncpa [#allocation18], 0
    %29 = vsyncpa [#allocation4], 0
    // Predicated region
    $region2: #{tpu_custom_call.1} parent=1 // pred_check
      _
    $region3: #{tpu_custom_call.1} parent=1 // pred_check_branch
      %31 = sbr.rel (0) target = $region5
    $region4: #{tpu_custom_call.1} parent=1 // pred_region
      _
    $region5: #{tpu_custom_call.1} parent=1 // pred_fallthru
      _
    // Predicated region
    $region6: #{tpu_custom_call.1} parent=1 // pred_check
      _
    $region7: #{tpu_custom_call.1} parent=1 // pred_check_branch
      %33 = sbr.rel (0) target = $region9
    $region8: #{tpu_custom_call.1} parent=1 // pred_region
      %s35 = ssub.s32 3072, 3072
      %36 = vsyncadd [#allocation3], %s35
      %s37 = sshll.u32 [#allocation2], 4
      %s38 = int_to_ptr.vmem [resolvable:$true] %s37
      %43 = dma.hbm_to_vmem [thread:$0]  %s1, 3072, %s38, [#allocation3], 128, 128, 8
    $region9: #{tpu_custom_call.1} parent=1 // pred_fallthru
      _
    // Predicated region
    $region10: #{tpu_custom_call.1} parent=1 // pred_check
      _
    $region11: #{tpu_custom_call.1} parent=1 // pred_check_branch
      %45 = sbr.rel (0) target = $region13
    $region12: #{tpu_custom_call.1} parent=1 // pred_region
      %s47 = ssub.s32 768, 768
      %48 = vsyncadd [#allocation6], %s47
      %s49 = sshll.u32 [#allocation5], 4
      %s50 = int_to_ptr.vmem [resolvable:$true] %s49
      %55 = dma.hbm_to_vmem [thread:$0]  %s2, 768, %s50, [#allocation6], 128, 128, 8
    $region13: #{tpu_custom_call.1} parent=1 // pred_fallthru
      _
    // Predicated region
    $region14: #{tpu_custom_call.1} parent=1 // pred_check
      _
    $region15: #{tpu_custom_call.1} parent=1 // pred_check_branch
      %57 = sbr.rel (0) target = $region17
    $region16: #{tpu_custom_call.1} parent=1 // pred_region
      _
    $region17: #{tpu_custom_call.1} parent=1 // pred_fallthru
      _
    // Predicated region
    $region18: #{tpu_custom_call.1} parent=1 // pred_check
      _
    $region19: #{tpu_custom_call.1} parent=1 // pred_check_branch
      %59 = sbr.rel (0) target = $region21
    $region20: #{tpu_custom_call.1} parent=1 // pred_region
      _
    $region21: #{tpu_custom_call.1} parent=1 // pred_fallthru
      _
    // Predicated region
    $region22: #{tpu_custom_call.1} parent=1 // pred_check
      _
    $region23: #{tpu_custom_call.1} parent=1 // pred_check_branch
      %61 = sbr.rel (0) target = $region25
    $region24: #{tpu_custom_call.1} parent=1 // pred_region
      %s63 = ssub.s32 768, 768
      %64 = vsyncadd [#allocation6], %s63
      %s65 = sshll.u32 [#allocation7], 4
      %s66 = int_to_ptr.vmem [resolvable:$true] %s65
      %71 = dma.hbm_to_vmem [thread:$0]  %s5, 768, %s66, [#allocation6], 128, 128, 8
    $region25: #{tpu_custom_call.1} parent=1 // pred_fallthru
      _
    // Predicated region
    $region26: #{tpu_custom_call.1} parent=1 // pred_check
      _
    $region27: #{tpu_custom_call.1} parent=1 // pred_check_branch
      %73 = sbr.rel (0) target = $region29
    $region28: #{tpu_custom_call.1} parent=1 // pred_region
      %s75 = ssub.s32 16, 16
      %76 = vsyncadd [#allocation9], %s75
      %s78 = sshll.u32 [#allocation8], 4
      %s79 = int_to_ptr.vmem [resolvable:$true] %s78
      %81 = dma.hbm_to_vmem [thread:$0]  %s6, 16, %s79, [#allocation9]
    $region29: #{tpu_custom_call.1} parent=1 // pred_fallthru
      _
    // Predicated region
    $region30: #{tpu_custom_call.1} parent=1 // pred_check
      _
    $region31: #{tpu_custom_call.1} parent=1 // pred_check_branch
      %83 = sbr.rel (0) target = $region33
    $region32: #{tpu_custom_call.1} parent=1 // pred_region
      %s85 = ssub.s32 768, 768
      %86 = vsyncadd [#allocation9], %s85
      %s87 = sshll.u32 [#allocation10], 4
      %s88 = int_to_ptr.vmem [resolvable:$true] %s87
      %93 = dma.hbm_to_vmem [thread:$0]  %s7, 768, %s88, [#allocation9], 128, 128, 8
    $region33: #{tpu_custom_call.1} parent=1 // pred_fallthru
      _
    // Predicated region
    $region34: #{tpu_custom_call.1} parent=1 // pred_check
      _
    $region35: #{tpu_custom_call.1} parent=1 // pred_check_branch
      %95 = sbr.rel (0) target = $region37
    $region36: #{tpu_custom_call.1} parent=1 // pred_region
      _
    $region37: #{tpu_custom_call.1} parent=1 // pred_fallthru
      _
    // Predicated region
    $region38: #{tpu_custom_call.1} parent=1 // pred_check
      _
    $region39: #{tpu_custom_call.1} parent=1 // pred_check_branch
      %97 = sbr.rel (0) target = $region41
    $region40: #{tpu_custom_call.1} parent=1 // pred_region
      %s99 = ssub.s32 16, 16
      %100 = vsyncadd [#allocation12], %s99
      %s102 = sshll.u32 [#allocation11], 4
      %s103 = int_to_ptr.vmem [resolvable:$true] %s102
      %105 = dma.hbm_to_vmem [thread:$0]  %s9, 16, %s103, [#allocation12]
    $region41: #{tpu_custom_call.1} parent=1 // pred_fallthru
      _
    // Predicated region
    $region42: #{tpu_custom_call.1} parent=1 // pred_check
      _
    $region43: #{tpu_custom_call.1} parent=1 // pred_check_branch
      %107 = sbr.rel (0) target = $region45
    $region44: #{tpu_custom_call.1} parent=1 // pred_region
      %s109 = ssub.s32 384, 384
      %110 = vsyncadd [#allocation12], %s109
      %s111 = sshll.u32 [#allocation13], 4
      %s112 = int_to_ptr.vmem [resolvable:$true] %s111
      %117 = dma.hbm_to_vmem [thread:$0]  %s10, 384, %s112, [#allocation12], 128, 128, 8
    $region45: #{tpu_custom_call.1} parent=1 // pred_fallthru
      _
    // Predicated region
    $region46: #{tpu_custom_call.1} parent=1 // pred_check
      _
    $region47: #{tpu_custom_call.1} parent=1 // pred_check_branch
      %119 = sbr.rel (0) target = $region49
    $region48: #{tpu_custom_call.1} parent=1 // pred_region
      %s121 = ssub.s32 768, 768
      %122 = vsyncadd [#allocation15], %s121
      %s123 = sshll.u32 [#allocation14], 4
      %s124 = int_to_ptr.vmem [resolvable:$true] %s123
      %129 = dma.hbm_to_vmem [thread:$0]  %s11, 768, %s124, [#allocation15], 128, 128, 8
    $region49: #{tpu_custom_call.1} parent=1 // pred_fallthru
      _
    // Predicated region
    $region50: #{tpu_custom_call.1} parent=1 // pred_check
      _
    $region51: #{tpu_custom_call.1} parent=1 // pred_check_branch
      %131 = sbr.rel (0) target = $region53
    $region52: #{tpu_custom_call.1} parent=1 // pred_region
      %s133 = ssub.s32 16, 16
      %134 = vsyncadd [#allocation15], %s133
      %s136 = sshll.u32 [#allocation16], 4
      %s137 = int_to_ptr.vmem [resolvable:$true] %s136
      %139 = dma.hbm_to_vmem [thread:$0]  %s12, 16, %s137, [#allocation15]
    $region53: #{tpu_custom_call.1} parent=1 // pred_fallthru
      _
    // Predicated region
    $region54: #{tpu_custom_call.1} parent=1 // pred_check
      _
    $region55: #{tpu_custom_call.1} parent=1 // pred_check_branch
      %141 = sbr.rel (0) target = $region57
    $region56: #{tpu_custom_call.1} parent=1 // pred_region
      %s143 = ssub.s32 32, 32
      %144 = vsyncadd [#allocation18], %s143
      %s146 = sshll.u32 [#allocation17], 4
      %s147 = int_to_ptr.vmem [resolvable:$true] %s146
      %149 = dma.hbm_to_vmem [thread:$0]  %s13, 32, %s147, [#allocation18]
    $region57: #{tpu_custom_call.1} parent=1 // pred_fallthru
      _
    // Predicated region
    $region58: #{tpu_custom_call.1} parent=1 // pred_check
      _
    $region59: #{tpu_custom_call.1} parent=1 // pred_check_branch
      %151 = sbr.rel (0) target = $region61
    $region60: #{tpu_custom_call.1} parent=1 // pred_region
      _
    $region61: #{tpu_custom_call.1} parent=1 // pred_fallthru
      _
    // Predicated region
    $region62: #{tpu_custom_call.1} parent=1 // pred_check
      _
    $region63: #{tpu_custom_call.1} parent=1 // pred_check_branch
      %153 = sbr.rel (0) target = $region65
    $region64: #{tpu_custom_call.1} parent=1 // pred_region
      _
    $region65: #{tpu_custom_call.1} parent=1 // pred_fallthru
      _
    // Predicated region
    $region66: #{tpu_custom_call.1} parent=1 // pred_check
      _
    $region67: #{tpu_custom_call.1} parent=1 // pred_check_branch
      %155 = sbr.rel (0) target = $region69
    $region68: #{tpu_custom_call.1} parent=1 // pred_region
      _
    $region69: #{tpu_custom_call.1} parent=1 // pred_fallthru
      _
    // Predicated region
    $region70: #{tpu_custom_call.1} parent=1 // pred_check
      _
    $region71: #{tpu_custom_call.1} parent=1 // pred_check_branch
      %157 = sbr.rel (0) target = $region73
    $region72: #{tpu_custom_call.1} parent=1 // pred_region
      _
    $region73: #{tpu_custom_call.1} parent=1 // pred_fallthru
      _
    // Predicated region
    $region74: #{tpu_custom_call.1} parent=1 // pred_check
      _
    $region75: #{tpu_custom_call.1} parent=1 // pred_check_branch
      %159 = sbr.rel (0) target = $region77
    $region76: #{tpu_custom_call.1} parent=1 // pred_region
      %160 = dma.done [#allocation3], 3072
    $region77: #{tpu_custom_call.1} parent=1 // pred_fallthru
      _
    // Predicated region
    $region78: #{tpu_custom_call.1} parent=1 // pred_check
      _
    $region79: #{tpu_custom_call.1} parent=1 // pred_check_branch
      %162 = sbr.rel (0) target = $region81
    $region80: #{tpu_custom_call.1} parent=1 // pred_region
      %163 = dma.done [#allocation6], 768
    $region81: #{tpu_custom_call.1} parent=1 // pred_fallthru
      _
    // Predicated region
    $region82: #{tpu_custom_call.1} parent=1 // pred_check
      _
    $region83: #{tpu_custom_call.1} parent=1 // pred_check_branch
      %165 = sbr.rel (0) target = $region85
    $region84: #{tpu_custom_call.1} parent=1 // pred_region
      %166 = dma.done [#allocation6], 768
    $region85: #{tpu_custom_call.1} parent=1 // pred_fallthru
      _
    // Predicated region
    $region86: #{tpu_custom_call.1} parent=1 // pred_check
      _
    $region87: #{tpu_custom_call.1} parent=1 // pred_check_branch
      %168 = sbr.rel (0) target = $region89
    $region88: #{tpu_custom_call.1} parent=1 // pred_region
      %169 = dma.done [#allocation9], 16
    $region89: #{tpu_custom_call.1} parent=1 // pred_fallthru
      _
    // Predicated region
    $region90: #{tpu_custom_call.1} parent=1 // pred_check
      _
    $region91: #{tpu_custom_call.1} parent=1 // pred_check_branch
      %171 = sbr.rel (0) target = $region93
    $region92: #{tpu_custom_call.1} parent=1 // pred_region
      %172 = dma.done [#allocation9], 768
    $region93: #{tpu_custom_call.1} parent=1 // pred_fallthru
      _
    // Predicated region
    $region94: #{tpu_custom_call.1} parent=1 // pred_check
      _
    $region95: #{tpu_custom_call.1} parent=1 // pred_check_branch
      %174 = sbr.rel (0) target = $region97
    $region96: #{tpu_custom_call.1} parent=1 // pred_region
      %175 = dma.done [#allocation12], 16
    $region97: #{tpu_custom_call.1} parent=1 // pred_fallthru
      _
    // Predicated region
    $region98: #{tpu_custom_call.1} parent=1 // pred_check
      _
    $region99: #{tpu_custom_call.1} parent=1 // pred_check_branch
      %177 = sbr.rel (0) target = $region101
    $region100: #{tpu_custom_call.1} parent=1 // pred_region
      %178 = dma.done [#allocation12], 384
    $region101: #{tpu_custom_call.1} parent=1 // pred_fallthru
      _
    // Predicated region
    $region102: #{tpu_custom_call.1} parent=1 // pred_check
      _
    $region103: #{tpu_custom_call.1} parent=1 // pred_check_branch
      %180 = sbr.rel (0) target = $region105
    $region104: #{tpu_custom_call.1} parent=1 // pred_region
      %181 = dma.done [#allocation15], 768
    $region105: #{tpu_custom_call.1} parent=1 // pred_fallthru
      _
    // Predicated region
    $region106: #{tpu_custom_call.1} parent=1 // pred_check
      _
    $region107: #{tpu_custom_call.1} parent=1 // pred_check_branch
      %183 = sbr.rel (0) target = $region109
    $region108: #{tpu_custom_call.1} parent=1 // pred_region
      %184 = dma.done [#allocation15], 16
    $region109: #{tpu_custom_call.1} parent=1 // pred_fallthru
      _
    // Predicated region
    $region110: #{tpu_custom_call.1} parent=1 // pred_check
      _
    $region111: #{tpu_custom_call.1} parent=1 // pred_check_branch
      %186 = sbr.rel (0) target = $region113
    $region112: #{tpu_custom_call.1} parent=1 // pred_region
      %187 = dma.done [#allocation18], 32
    $region113: #{tpu_custom_call.1} parent=1 // pred_fallthru
      _
    %v188 = vld [vmem:[%s0] sm:$0xff]
    %v189 = vld [vmem:[%s0 + $0x8] sm:$0xff]
    %v190 = vld [vmem:[%s0 + $0x10] sm:$0xff]
    %v191 = vld [vmem:[%s0 + $0x18] sm:$0xff]
    %v192 = vld [vmem:[%s0 + $0x20] sm:$0xff]
    %v193 = vld [vmem:[%s0 + $0x28] sm:$0xff]
    %v194 = vld [vmem:[%s0 + $0x30] sm:$0xff]
    %v195 = vld [vmem:[%s0 + $0x38] sm:$0xff]
    %v196 = vld [vmem:[#allocation5] sm:$0xff]
    %v197 = vld [vmem:[#allocation5 + $0x8] sm:$0xff]
    %vm198 = vcmask 130048
    %v200 = vsel %vm198, %v188, 0
    %v203 = vsel %vm198, %v189, 0
    %v206 = vsel %vm198, %v190, 0
    %v209 = vsel %vm198, %v191, 0
    %v212 = vsel %vm198, %v192, 0
    %v215 = vsel %vm198, %v193, 0
    %v218 = vsel %vm198, %v194, 0
    %v221 = vsel %vm198, %v195, 0
    %223 = vmatprep.subr.mxu0 0.0
    %224 = vmatpush1.msra.mxu0 %v196
    %225 = vmatprep.subr.mxu0 0.0
    %226 = vmatpush1.msra.mxu0 %v197
    %227 = vmatprep.subr.mxu0 0.0
    %228 = vmatpush1.msra.mxu0 0.0
    %229 = vmatprep.subr.mxu0 0.0
    %230 = vmatpush1.msra.mxu0 0.0
    %231 = vmatprep.subr.mxu0 0.0
    %232 = vmatpush1.msra.mxu0 0.0
    %233 = vmatprep.subr.mxu0 0.0
    %234 = vmatpush1.msra.mxu0 0.0
    %235 = vmatprep.subr.mxu0 0.0
    %236 = vmatpush1.msra.mxu0 0.0
    %237 = vmatprep.subr.mxu0 0.0
    %238 = vmatpush1.msra.mxu0 0.0
    %239 = vmatprep.subr.mxu0 0.0
    %240 = vmatpush1.msra.mxu0 0.0
    %241 = vmatprep.subr.mxu0 0.0
    %242 = vmatpush1.msra.mxu0 0.0
    %243 = vmatprep.subr.mxu0 0.0
    %244 = vmatpush1.msra.mxu0 0.0
    %245 = vmatprep.subr.mxu0 0.0
    %246 = vmatpush1.msra.mxu0 0.0
    %247 = vmatprep.subr.mxu0 0.0
    %248 = vmatpush1.msra.mxu0 0.0
    %249 = vmatprep.subr.mxu0 0.0
    %250 = vmatpush1.msra.mxu0 0.0
    %251 = vmatprep.subr.mxu0 0.0
    %252 = vmatpush1.msra.mxu0 0.0
    %253 = vmatprep.subr.mxu0 0.0
    %254 = vmatpush1.msra.mxu0 0.0
    %255 = vmatprep.subr.mxu0 0.0
    %256 = vmatpush1.msra.mxu0 0.0
    %257 = vmatprep.subr.mxu0 0.0
    %258 = vmatpush1.msra.mxu0 0.0
    %259 = vmatprep.subr.mxu0 0.0
    %260 = vmatpush1.msra.mxu0 0.0
    %261 = vmatprep.subr.mxu0 0.0
    %262 = vmatpush1.msra.mxu0 0.0
    %263 = vmatprep.subr.mxu0 0.0
    %264 = vmatpush1.msra.mxu0 0.0
    %265 = vmatprep.subr.mxu0 0.0
    %266 = vmatpush1.msra.mxu0 0.0
    %267 = vmatprep.subr.mxu0 0.0
    %268 = vmatpush1.msra.mxu0 0.0
    %269 = vmatprep.subr.mxu0 0.0
    %270 = vmatpush1.msra.mxu0 0.0
    %271 = vmatprep.subr.mxu0 0.0
    %272 = vmatpush1.msra.mxu0 0.0
    %273 = vmatprep.subr.mxu0 0.0
    %274 = vmatpush1.msra.mxu0 0.0
    %275 = vmatprep.subr.mxu0 0.0
    %276 = vmatpush1.msra.mxu0 0.0
    %277 = vmatprep.subr.mxu0 0.0
    %278 = vmatpush1.msra.mxu0 0.0
    %279 = vmatprep.subr.mxu0 0.0
    %280 = vmatpush1.msra.mxu0 0.0
    %281 = vmatprep.subr.mxu0 0.0
    %282 = vmatpush1.msra.mxu0 0.0
    %283 = vmatprep.subr.mxu0 0.0
    %284 = vmatpush1.msra.mxu0 0.0
    %285 = vmatprep.subr.mxu0 0.0
    %286 = vmatpush1.msra.mxu0 0.0
    %287 = vmatprep.mubr.f32.mxu0 0.0
    %288 = vmatmul.mubr.f32.gmra.mrb[0].mxu0 %v200
    %v289 = vpop.f32.mrb[0].mxu0
    %v290 = vadd.f32 0.0, %v289
    %v291 = vpop.f32.mrb[0].mxu0
    %292 = vmatprep.mubr.f32.mxu0 0.0
    %293 = vmatmul.mubr.f32.gmra.mrb[0].mxu0 %v203
    %v294 = vpop.f32.mrb[0].mxu0
    %v295 = vadd.f32 0.0, %v294
    %v296 = vpop.f32.mrb[0].mxu0
    %297 = vmatprep.mubr.f32.mxu0 0.0
    %298 = vmatmul.mubr.f32.gmra.mrb[0].mxu0 %v206
    %v299 = vpop.f32.mrb[0].mxu0
    %v300 = vadd.f32 0.0, %v299
    %v301 = vpop.f32.mrb[0].mxu0
    %302 = vmatprep.mubr.f32.mxu0 0.0
    %303 = vmatmul.mubr.f32.gmra.mrb[0].mxu0 %v209
    %v304 = vpop.f32.mrb[0].mxu0
    %v305 = vadd.f32 0.0, %v304
    %v306 = vpop.f32.mrb[0].mxu0
    %307 = vmatprep.mubr.f32.mxu0 0.0
    %308 = vmatmul.mubr.f32.gmra.mrb[0].mxu0 %v212
    %v309 = vpop.f32.mrb[0].mxu0
    %v310 = vadd.f32 0.0, %v309
    %v311 = vpop.f32.mrb[0].mxu0
    %312 = vmatprep.mubr.f32.mxu0 0.0
    %313 = vmatmul.mubr.f32.gmra.mrb[0].mxu0 %v215
    %v314 = vpop.f32.mrb[0].mxu0
    %v315 = vadd.f32 0.0, %v314
    %v316 = vpop.f32.mrb[0].mxu0
    %317 = vmatprep.mubr.f32.mxu0 0.0
    %318 = vmatmul.mubr.f32.gmra.mrb[0].mxu0 %v218
    %v319 = vpop.f32.mrb[0].mxu0
    %v320 = vadd.f32 0.0, %v319
    %v321 = vpop.f32.mrb[0].mxu0
    %322 = vmatprep.mubr.f32.mxu0 0.0
    %323 = vmatmul.mubr.f32.gmra.mrb[0].mxu0 %v221
    %v324 = vpop.f32.mrb[0].mxu0
    %v325 = vadd.f32 0.0, %v324
    %v326 = vpop.f32.mrb[0].mxu0
    %327 = vdwg.mxu0
    %v328 = vld [vmem:[#allocation2] sm:$0xff]
    %v329 = vld [vmem:[#allocation2 + $0x8] sm:$0xff]
    %v330 = vld [vmem:[#allocation2 + $0x10] sm:$0xff]
    %v331 = vld [vmem:[#allocation2 + $0x18] sm:$0xff]
    %v332 = vld [vmem:[#allocation2 + $0x20] sm:$0xff]
    %v333 = vld [vmem:[#allocation2 + $0x28] sm:$0xff]
    %v334 = vld [vmem:[#allocation2 + $0x30] sm:$0xff]
    %v335 = vld [vmem:[#allocation2 + $0x38] sm:$0xf]
    %s336 = scalar_lea.vmem [#allocation5], 16
    %v337 = vld [vmem:[%s336] sm:$0xff]
    %v338 = vld [vmem:[%s336 + $0x8] sm:$0xff]
    %339 = vmatprep.subr.mxu0 0.0
    %340 = vmatpush1.msra.mxu0 %v337
    %341 = vmatprep.subr.mxu0 0.0
    %342 = vmatpush1.msra.mxu0 %v338
    %343 = vmatprep.subr.mxu0 0.0
    %344 = vmatpush1.msra.mxu0 0.0
    %345 = vmatprep.subr.mxu0 0.0
    %346 = vmatpush1.msra.mxu0 0.0
    %347 = vmatprep.subr.mxu0 0.0
    %348 = vmatpush1.msra.mxu0 0.0
    %349 = vmatprep.subr.mxu0 0.0
    %350 = vmatpush1.msra.mxu0 0.0
    %351 = vmatprep.subr.mxu0 0.0
    %352 = vmatpush1.msra.mxu0 0.0
    %353 = vmatprep.subr.mxu0 0.0
    %354 = vmatpush1.msra.mxu0 0.0
    %355 = vmatprep.subr.mxu0 0.0
    %356 = vmatpush1.msra.mxu0 0.0
    %357 = vmatprep.subr.mxu0 0.0
    %358 = vmatpush1.msra.mxu0 0.0
    %359 = vmatprep.subr.mxu0 0.0
    %360 = vmatpush1.msra.mxu0 0.0
    %361 = vmatprep.subr.mxu0 0.0
    %362 = vmatpush1.msra.mxu0 0.0
    %363 = vmatprep.subr.mxu0 0.0
    %364 = vmatpush1.msra.mxu0 0.0
    %365 = vmatprep.subr.mxu0 0.0
    %366 = vmatpush1.msra.mxu0 0.0
    %367 = vmatprep.subr.mxu0 0.0
    %368 = vmatpush1.msra.mxu0 0.0
    %369 = vmatprep.subr.mxu0 0.0
    %370 = vmatpush1.msra.mxu0 0.0
    %371 = vmatprep.subr.mxu0 0.0
    %372 = vmatpush1.msra.mxu0 0.0
    %373 = vmatprep.subr.mxu0 0.0
    %374 = vmatpush1.msra.mxu0 0.0
    %375 = vmatprep.subr.mxu0 0.0
    %376 = vmatpush1.msra.mxu0 0.0
    %377 = vmatprep.subr.mxu0 0.0
    %378 = vmatpush1.msra.mxu0 0.0
    %379 = vmatprep.subr.mxu0 0.0
    %380 = vmatpush1.msra.mxu0 0.0
    %381 = vmatprep.subr.mxu0 0.0
    %382 = vmatpush1.msra.mxu0 0.0
    %383 = vmatprep.subr.mxu0 0.0
    %384 = vmatpush1.msra.mxu0 0.0
    %385 = vmatprep.subr.mxu0 0.0
    %386 = vmatpush1.msra.mxu0 0.0
    %387 = vmatprep.subr.mxu0 0.0
    %388 = vmatpush1.msra.mxu0 0.0
    %389 = vmatprep.subr.mxu0 0.0
    %390 = vmatpush1.msra.mxu0 0.0
    %391 = vmatprep.subr.mxu0 0.0
    %392 = vmatpush1.msra.mxu0 0.0
    %393 = vmatprep.subr.mxu0 0.0
    %394 = vmatpush1.msra.mxu0 0.0
    %395 = vmatprep.subr.mxu0 0.0
    %396 = vmatpush1.msra.mxu0 0.0
    %397 = vmatprep.subr.mxu0 0.0
    %398 = vmatpush1.msra.mxu0 0.0
    %399 = vmatprep.subr.mxu0 0.0
    %400 = vmatpush1.msra.mxu0 0.0
    %401 = vmatprep.subr.mxu0 0.0
    %402 = vmatpush1.msra.mxu0 0.0
    %403 = vmatprep.mubr.f32.mxu0 0.0
    %404 = vmatmul.mubr.f32.gmra.mrb[0].mxu0 %v200
    %v405 = vpop.f32.mrb[0].mxu0
    %v406 = vadd.f32 0.0, %v405
    %v407 = vpop.f32.mrb[0].mxu0
    %408 = vmatprep.mubr.f32.mxu0 0.0
    %409 = vmatmul.mubr.f32.gmra.mrb[0].mxu0 %v203
    %v410 = vpop.f32.mrb[0].mxu0
    %v411 = vadd.f32 0.0, %v410
    %v412 = vpop.f32.mrb[0].mxu0
    %413 = vmatprep.mubr.f32.mxu0 0.0
    %414 = vmatmul.mubr.f32.gmra.mrb[0].mxu0 %v206
    %v415 = vpop.f32.mrb[0].mxu0
    %v416 = vadd.f32 0.0, %v415
    %v417 = vpop.f32.mrb[0].mxu0
    %418 = vmatprep.mubr.f32.mxu0 0.0
    %419 = vmatmul.mubr.f32.gmra.mrb[0].mxu0 %v209
    %v420 = vpop.f32.mrb[0].mxu0
    %v421 = vadd.f32 0.0, %v420
    %v422 = vpop.f32.mrb[0].mxu0
    %423 = vmatprep.mubr.f32.mxu0 0.0
    %424 = vmatmul.mubr.f32.gmra.mrb[0].mxu0 %v212
    %v425 = vpop.f32.mrb[0].mxu0
    %v426 = vadd.f32 0.0, %v425
    %v427 = vpop.f32.mrb[0].mxu0
    %428 = vmatprep.mubr.f32.mxu0 0.0
    %429 = vmatmul.mubr.f32.gmra.mrb[0].mxu0 %v215
    %v430 = vpop.f32.mrb[0].mxu0
    %v431 = vadd.f32 0.0, %v430
    %v432 = vpop.f32.mrb[0].mxu0
    %433 = vmatprep.mubr.f32.mxu0 0.0
    %434 = vmatmul.mubr.f32.gmra.mrb[0].mxu0 %v218
    %v435 = vpop.f32.mrb[0].mxu0
    %v436 = vadd.f32 0.0, %v435
    %v437 = vpop.f32.mrb[0].mxu0
    %438 = vmatprep.mubr.f32.mxu0 0.0
    %439 = vmatmul.mubr.f32.gmra.mrb[0].mxu0 %v221
    %v440 = vpop.f32.mrb[0].mxu0
    %v441 = vadd.f32 0.0, %v440
    %v442 = vpop.f32.mrb[0].mxu0
    %443 = vdwg.mxu0
    %s444 = scalar_lea.vmem [#allocation2], 64
    %v445 = vld [vmem:[%s444] sm:$0xff]
    %v446 = vld [vmem:[%s444 + $0x8] sm:$0xff]
    %v447 = vld [vmem:[%s444 + $0x10] sm:$0xff]
    %v448 = vld [vmem:[%s444 + $0x18] sm:$0xff]
    %v449 = vld [vmem:[%s444 + $0x20] sm:$0xff]
    %v450 = vld [vmem:[%s444 + $0x28] sm:$0xff]
    %v451 = vld [vmem:[%s444 + $0x30] sm:$0xff]
    %v452 = vld [vmem:[%s444 + $0x38] sm:$0xf]
    %vm453 = vcmask 523264
    %v455 = vsel %vm453, %v445, 0
    %v458 = vsel %vm453, %v446, 0
    %v461 = vsel %vm453, %v447, 0
    %v464 = vsel %vm453, %v448, 0
    %v467 = vsel %vm453, %v449, 0
    %v470 = vsel %vm453, %v450, 0
    %v473 = vsel %vm453, %v451, 0
    %v476 = vsel %vm453, %v452, 0
    %478 = vmatprep.subr.mxu0 0.0
    %479 = vmatpush1.msra.mxu0 %v406
    %480 = vmatprep.subr.mxu0 0.0
    %481 = vmatpush1.msra.mxu0 %v411
    %482 = vmatprep.subr.mxu0 0.0
    %483 = vmatpush1.msra.mxu0 %v416
    %484 = vmatprep.subr.mxu0 0.0
    %485 = vmatpush1.msra.mxu0 %v421
    %486 = vmatprep.subr.mxu0 0.0
    %487 = vmatpush1.msra.mxu0 %v426
    %488 = vmatprep.subr.mxu0 0.0
    %489 = vmatpush1.msra.mxu0 %v431
    %490 = vmatprep.subr.mxu0 0.0
    %491 = vmatpush1.msra.mxu0 %v436
    %492 = vmatprep.subr.mxu0 0.0
    %493 = vmatpush1.msra.mxu0 %v441
    %494 = vmatprep.subr.mxu0 0.0
    %495 = vmatpush1.msra.mxu0 0.0
    %496 = vmatprep.subr.mxu0 0.0
    %497 = vmatpush1.msra.mxu0 0.0
    %498 = vmatprep.subr.mxu0 0.0
    %499 = vmatpush1.msra.mxu0 0.0
    %500 = vmatprep.subr.mxu0 0.0
    %501 = vmatpush1.msra.mxu0 0.0
    %502 = vmatprep.subr.mxu0 0.0
    %503 = vmatpush1.msra.mxu0 0.0
    %504 = vmatprep.subr.mxu0 0.0
    %505 = vmatpush1.msra.mxu0 0.0
    %506 = vmatprep.subr.mxu0 0.0
    %507 = vmatpush1.msra.mxu0 0.0
    %508 = vmatprep.subr.mxu0 0.0
    %509 = vmatpush1.msra.mxu0 0.0
    %510 = vmatprep.subr.mxu0 0.0
    %511 = vmatpush1.msra.mxu0 0.0
    %512 = vmatprep.subr.mxu0 0.0
    %513 = vmatpush1.msra.mxu0 0.0
    %514 = vmatprep.subr.mxu0 0.0
    %515 = vmatpush1.msra.mxu0 0.0
    %516 = vmatprep.subr.mxu0 0.0
    %517 = vmatpush1.msra.mxu0 0.0
    %518 = vmatprep.subr.mxu0 0.0
    %519 = vmatpush1.msra.mxu0 0.0
    %520 = vmatprep.subr.mxu0 0.0
    %521 = vmatpush1.msra.mxu0 0.0
    %522 = vmatprep.subr.mxu0 0.0
    %523 = vmatpush1.msra.mxu0 0.0
    %524 = vmatprep.subr.mxu0 0.0
    %525 = vmatpush1.msra.mxu0 0.0
    %526 = vmatprep.subr.mxu0 0.0
    %527 = vmatpush1.msra.mxu0 0.0
    %528 = vmatprep.subr.mxu0 0.0
    %529 = vmatpush1.msra.mxu0 0.0
    %530 = vmatprep.subr.mxu0 0.0
    %531 = vmatpush1.msra.mxu0 0.0
    %532 = vmatprep.subr.mxu0 0.0
    %533 = vmatpush1.msra.mxu0 0.0
    %534 = vmatprep.subr.mxu0 0.0
    %535 = vmatpush1.msra.mxu0 0.0
    %536 = vmatprep.subr.mxu0 0.0
    %537 = vmatpush1.msra.mxu0 0.0
    %538 = vmatprep.subr.mxu0 0.0
    %539 = vmatpush1.msra.mxu0 0.0
    %540 = vmatprep.subr.mxu0 0.0
    %541 = vmatpush1.msra.mxu0 0.0
    %542 = vmatprep.mubr.f32.mxu0 0.0
    %543 = vmatmul.mubr.f32.gmra.mrb[0].mxu0 %v455
    %v544 = vpop.f32.mrb[0].mxu0
    %v545 = vadd.f32 0.0, %v544
    %v546 = vpop.f32.mrb[0].mxu0
    %547 = vmatprep.mubr.f32.mxu0 0.0
    %548 = vmatmul.mubr.f32.gmra.mrb[0].mxu0 %v458
    %v549 = vpop.f32.mrb[0].mxu0
    %v550 = vadd.f32 0.0, %v549
    %v551 = vpop.f32.mrb[0].mxu0
    %552 = vmatprep.mubr.f32.mxu0 0.0
    %553 = vmatmul.mubr.f32.gmra.mrb[0].mxu0 %v461
    %v554 = vpop.f32.mrb[0].mxu0
    %v555 = vadd.f32 0.0, %v554
    %v556 = vpop.f32.mrb[0].mxu0
    %557 = vmatprep.mubr.f32.mxu0 0.0
    %558 = vmatmul.mubr.f32.gmra.mrb[0].mxu0 %v464
    %v559 = vpop.f32.mrb[0].mxu0
    %v560 = vadd.f32 0.0, %v559
    %v561 = vpop.f32.mrb[0].mxu0
    %562 = vmatprep.mubr.f32.mxu0 0.0
    %563 = vmatmul.mubr.f32.gmra.mrb[0].mxu0 %v467
    %v564 = vpop.f32.mrb[0].mxu0
    %v565 = vadd.f32 0.0, %v564
    %v566 = vpop.f32.mrb[0].mxu0
    %567 = vmatprep.mubr.f32.mxu0 0.0
    %568 = vmatmul.mubr.f32.gmra.mrb[0].mxu0 %v470
    %v569 = vpop.f32.mrb[0].mxu0
    %v570 = vadd.f32 0.0, %v569
    %v571 = vpop.f32.mrb[0].mxu0
    %572 = vmatprep.mubr.f32.mxu0 0.0
    %573 = vmatmul.mubr.f32.gmra.mrb[0].mxu0 %v473
    %v574 = vpop.f32.mrb[0].mxu0
    %v575 = vadd.f32 0.0, %v574
    %v576 = vpop.f32.mrb[0].mxu0
    %577 = vmatprep.mubr.f32.mxu0 0.0
    %578 = vmatmul.mubr.f32.gmra.mrb[0].mxu0 %v476
    %v579 = vpop.f32.mrb[0].mxu0
    %v580 = vadd.f32 0.0, %v579
    %v581 = vpop.f32.mrb[0].mxu0
    %582 = vdwg.mxu0
    %v584 = vsel %vm453, %v328, 0
    %v587 = vsel %vm453, %v329, 0
    %v590 = vsel %vm453, %v330, 0
    %v593 = vsel %vm453, %v331, 0
    %v596 = vsel %vm453, %v332, 0
    %v599 = vsel %vm453, %v333, 0
    %v602 = vsel %vm453, %v334, 0
    %v605 = vsel %vm453, %v335, 0
    %607 = vmatprep.subr.mxu0 0.0
    %608 = vmatpush1.msra.mxu0 %v290
    %609 = vmatprep.subr.mxu0 0.0
    %610 = vmatpush1.msra.mxu0 %v295
    %611 = vmatprep.subr.mxu0 0.0
    %612 = vmatpush1.msra.mxu0 %v300
    %613 = vmatprep.subr.mxu0 0.0
    %614 = vmatpush1.msra.mxu0 %v305
    %615 = vmatprep.subr.mxu0 0.0
    %616 = vmatpush1.msra.mxu0 %v310
    %617 = vmatprep.subr.mxu0 0.0
    %618 = vmatpush1.msra.mxu0 %v315
    %619 = vmatprep.subr.mxu0 0.0
    %620 = vmatpush1.msra.mxu0 %v320
    %621 = vmatprep.subr.mxu0 0.0
    %622 = vmatpush1.msra.mxu0 %v325
    %623 = vmatprep.subr.mxu0 0.0
    %624 = vmatpush1.msra.mxu0 0.0
    %625 = vmatprep.subr.mxu0 0.0
    %626 = vmatpush1.msra.mxu0 0.0
    %627 = vmatprep.subr.mxu0 0.0
    %628 = vmatpush1.msra.mxu0 0.0
    %629 = vmatprep.subr.mxu0 0.0
    %630 = vmatpush1.msra.mxu0 0.0
    %631 = vmatprep.subr.mxu0 0.0
    %632 = vmatpush1.msra.mxu0 0.0
    %633 = vmatprep.subr.mxu0 0.0
    %634 = vmatpush1.msra.mxu0 0.0
    %635 = vmatprep.subr.mxu0 0.0
    %636 = vmatpush1.msra.mxu0 0.0
    %637 = vmatprep.subr.mxu0 0.0
    %638 = vmatpush1.msra.mxu0 0.0
    %639 = vmatprep.subr.mxu0 0.0
    %640 = vmatpush1.msra.mxu0 0.0
    %641 = vmatprep.subr.mxu0 0.0
    %642 = vmatpush1.msra.mxu0 0.0
    %643 = vmatprep.subr.mxu0 0.0
    %644 = vmatpush1.msra.mxu0 0.0
    %645 = vmatprep.subr.mxu0 0.0
    %646 = vmatpush1.msra.mxu0 0.0
    %647 = vmatprep.subr.mxu0 0.0
    %648 = vmatpush1.msra.mxu0 0.0
    %649 = vmatprep.subr.mxu0 0.0
    %650 = vmatpush1.msra.mxu0 0.0
    %651 = vmatprep.subr.mxu0 0.0
    %652 = vmatpush1.msra.mxu0 0.0
    %653 = vmatprep.subr.mxu0 0.0
    %654 = vmatpush1.msra.mxu0 0.0
    %655 = vmatprep.subr.mxu0 0.0
    %656 = vmatpush1.msra.mxu0 0.0
    %657 = vmatprep.subr.mxu0 0.0
    %658 = vmatpush1.msra.mxu0 0.0
    %659 = vmatprep.subr.mxu0 0.0
    %660 = vmatpush1.msra.mxu0 0.0
    %661 = vmatprep.subr.mxu0 0.0
    %662 = vmatpush1.msra.mxu0 0.0
    %663 = vmatprep.subr.mxu0 0.0
    %664 = vmatpush1.msra.mxu0 0.0
    %665 = vmatprep.subr.mxu0 0.0
    %666 = vmatpush1.msra.mxu0 0.0
    %667 = vmatprep.subr.mxu0 0.0
    %668 = vmatpush1.msra.mxu0 0.0
    %669 = vmatprep.subr.mxu0 0.0
    %670 = vmatpush1.msra.mxu0 0.0
    %671 = vmatprep.mubr.f32.mxu0 0.0
    %672 = vmatmul.mubr.f32.gmra.mrb[0].mxu0 %v584
    %v673 = vpop.f32.mrb[0].mxu0
    %v674 = vadd.f32 %v545, %v673
    %v675 = vpop.f32.mrb[0].mxu0
    %676 = vmatprep.mubr.f32.mxu0 0.0
    %677 = vmatmul.mubr.f32.gmra.mrb[0].mxu0 %v587
    %v678 = vpop.f32.mrb[0].mxu0
    %v679 = vadd.f32 %v550, %v678
    %v680 = vpop.f32.mrb[0].mxu0
    %681 = vmatprep.mubr.f32.mxu0 0.0
    %682 = vmatmul.mubr.f32.gmra.mrb[0].mxu0 %v590
    %v683 = vpop.f32.mrb[0].mxu0
    %v684 = vadd.f32 %v555, %v683
    %v685 = vpop.f32.mrb[0].mxu0
    %686 = vmatprep.mubr.f32.mxu0 0.0
    %687 = vmatmul.mubr.f32.gmra.mrb[0].mxu0 %v593
    %v688 = vpop.f32.mrb[0].mxu0
    %v689 = vadd.f32 %v560, %v688
    %v690 = vpop.f32.mrb[0].mxu0
    %691 = vmatprep.mubr.f32.mxu0 0.0
    %692 = vmatmul.mubr.f32.gmra.mrb[0].mxu0 %v596
    %v693 = vpop.f32.mrb[0].mxu0
    %v694 = vadd.f32 %v565, %v693
    %v695 = vpop.f32.mrb[0].mxu0
    %696 = vmatprep.mubr.f32.mxu0 0.0
    %697 = vmatmul.mubr.f32.gmra.mrb[0].mxu0 %v599
    %v698 = vpop.f32.mrb[0].mxu0
    %v699 = vadd.f32 %v570, %v698
    %v700 = vpop.f32.mrb[0].mxu0
    %701 = vmatprep.mubr.f32.mxu0 0.0
    %702 = vmatmul.mubr.f32.gmra.mrb[0].mxu0 %v602
    %v703 = vpop.f32.mrb[0].mxu0
    %v704 = vadd.f32 %v575, %v703
    %v705 = vpop.f32.mrb[0].mxu0
    %706 = vmatprep.mubr.f32.mxu0 0.0
    %707 = vmatmul.mubr.f32.gmra.mrb[0].mxu0 %v605
    %v708 = vpop.f32.mrb[0].mxu0
    %v709 = vadd.f32 %v580, %v708
    %v710 = vpop.f32.mrb[0].mxu0
    %711 = vdwg.mxu0
    %s712 = scalar_lea.vmem [#allocation5], 32
    %v713 = vld [vmem:[%s712] sm:$0xff]
    %v714 = vld [vmem:[%s712 + $0x8] sm:$0xff]
    %715 = vmatprep.subr.mxu0 0.0
    %716 = vmatpush1.msra.mxu0 %v713
    %717 = vmatprep.subr.mxu0 0.0
    %718 = vmatpush1.msra.mxu0 %v714
    %719 = vmatprep.subr.mxu0 0.0
    %720 = vmatpush1.msra.mxu0 0.0
    %721 = vmatprep.subr.mxu0 0.0
    %722 = vmatpush1.msra.mxu0 0.0
    %723 = vmatprep.subr.mxu0 0.0
    %724 = vmatpush1.msra.mxu0 0.0
    %725 = vmatprep.subr.mxu0 0.0
    %726 = vmatpush1.msra.mxu0 0.0
    %727 = vmatprep.subr.mxu0 0.0
    %728 = vmatpush1.msra.mxu0 0.0
    %729 = vmatprep.subr.mxu0 0.0
    %730 = vmatpush1.msra.mxu0 0.0
    %731 = vmatprep.subr.mxu0 0.0
    %732 = vmatpush1.msra.mxu0 0.0
    %733 = vmatprep.subr.mxu0 0.0
    %734 = vmatpush1.msra.mxu0 0.0
    %735 = vmatprep.subr.mxu0 0.0
    %736 = vmatpush1.msra.mxu0 0.0
    %737 = vmatprep.subr.mxu0 0.0
    %738 = vmatpush1.msra.mxu0 0.0
    %739 = vmatprep.subr.mxu0 0.0
    %740 = vmatpush1.msra.mxu0 0.0
    %741 = vmatprep.subr.mxu0 0.0
    %742 = vmatpush1.msra.mxu0 0.0
    %743 = vmatprep.subr.mxu0 0.0
    %744 = vmatpush1.msra.mxu0 0.0
    %745 = vmatprep.subr.mxu0 0.0
    %746 = vmatpush1.msra.mxu0 0.0
    %747 = vmatprep.subr.mxu0 0.0
    %748 = vmatpush1.msra.mxu0 0.0
    %749 = vmatprep.subr.mxu0 0.0
    %750 = vmatpush1.msra.mxu0 0.0
    %751 = vmatprep.subr.mxu0 0.0
    %752 = vmatpush1.msra.mxu0 0.0
    %753 = vmatprep.subr.mxu0 0.0
    %754 = vmatpush1.msra.mxu0 0.0
    %755 = vmatprep.subr.mxu0 0.0
    %756 = vmatpush1.msra.mxu0 0.0
    %757 = vmatprep.subr.mxu0 0.0
    %758 = vmatpush1.msra.mxu0 0.0
    %759 = vmatprep.subr.mxu0 0.0
    %760 = vmatpush1.msra.mxu0 0.0
    %761 = vmatprep.subr.mxu0 0.0
    %762 = vmatpush1.msra.mxu0 0.0
    %763 = vmatprep.subr.mxu0 0.0
    %764 = vmatpush1.msra.mxu0 0.0
    %765 = vmatprep.subr.mxu0 0.0
    %766 = vmatpush1.msra.mxu0 0.0
    %767 = vmatprep.subr.mxu0 0.0
    %768 = vmatpush1.msra.mxu0 0.0
    %769 = vmatprep.subr.mxu0 0.0
    %770 = vmatpush1.msra.mxu0 0.0
    %771 = vmatprep.subr.mxu0 0.0
    %772 = vmatpush1.msra.mxu0 0.0
    %773 = vmatprep.subr.mxu0 0.0
    %774 = vmatpush1.msra.mxu0 0.0
    %775 = vmatprep.subr.mxu0 0.0
    %776 = vmatpush1.msra.mxu0 0.0
    %777 = vmatprep.subr.mxu0 0.0
    %778 = vmatpush1.msra.mxu0 0.0
    %779 = vmatprep.mubr.f32.mxu0 0.0
    %780 = vmatmul.mubr.f32.gmra.mrb[0].mxu0 %v200
    %v781 = vpop.f32.mrb[0].mxu0
    %v782 = vadd.f32 0.0, %v781
    %v783 = vpop.f32.mrb[0].mxu0
    %784 = vmatprep.mubr.f32.mxu0 0.0
    %785 = vmatmul.mubr.f32.gmra.mrb[0].mxu0 %v203
    %v786 = vpop.f32.mrb[0].mxu0
    %v787 = vadd.f32 0.0, %v786
    %v788 = vpop.f32.mrb[0].mxu0
    %789 = vmatprep.mubr.f32.mxu0 0.0
    %790 = vmatmul.mubr.f32.gmra.mrb[0].mxu0 %v206
    %v791 = vpop.f32.mrb[0].mxu0
    %v792 = vadd.f32 0.0, %v791
    %v793 = vpop.f32.mrb[0].mxu0
    %794 = vmatprep.mubr.f32.mxu0 0.0
    %795 = vmatmul.mubr.f32.gmra.mrb[0].mxu0 %v209
    %v796 = vpop.f32.mrb[0].mxu0
    %v797 = vadd.f32 0.0, %v796
    %v798 = vpop.f32.mrb[0].mxu0
    %799 = vmatprep.mubr.f32.mxu0 0.0
    %800 = vmatmul.mubr.f32.gmra.mrb[0].mxu0 %v212
    %v801 = vpop.f32.mrb[0].mxu0
    %v802 = vadd.f32 0.0, %v801
    %v803 = vpop.f32.mrb[0].mxu0
    %804 = vmatprep.mubr.f32.mxu0 0.0
    %805 = vmatmul.mubr.f32.gmra.mrb[0].mxu0 %v215
    %v806 = vpop.f32.mrb[0].mxu0
    %v807 = vadd.f32 0.0, %v806
    %v808 = vpop.f32.mrb[0].mxu0
    %809 = vmatprep.mubr.f32.mxu0 0.0
    %810 = vmatmul.mubr.f32.gmra.mrb[0].mxu0 %v218
    %v811 = vpop.f32.mrb[0].mxu0
    %v812 = vadd.f32 0.0, %v811
    %v813 = vpop.f32.mrb[0].mxu0
    %814 = vmatprep.mubr.f32.mxu0 0.0
    %815 = vmatmul.mubr.f32.gmra.mrb[0].mxu0 %v221
    %v816 = vpop.f32.mrb[0].mxu0
    %v817 = vadd.f32 0.0, %v816
    %v818 = vpop.f32.mrb[0].mxu0
    %819 = vdwg.mxu0
    %s820 = scalar_lea.vmem [#allocation2], 128
    %v821 = vld [vmem:[%s820] sm:$0xff]
    %v822 = vld [vmem:[%s820 + $0x8] sm:$0xff]
    %v823 = vld [vmem:[%s820 + $0x10] sm:$0xff]
    %v824 = vld [vmem:[%s820 + $0x18] sm:$0xff]
    %v825 = vld [vmem:[%s820 + $0x20] sm:$0xff]
    %v826 = vld [vmem:[%s820 + $0x28] sm:$0xff]
    %v827 = vld [vmem:[%s820 + $0x30] sm:$0xff]
    %v828 = vld [vmem:[%s820 + $0x38] sm:$0xf]
    %v830 = vsel %vm453, %v821, 0
    %v833 = vsel %vm453, %v822, 0
    %v836 = vsel %vm453, %v823, 0
    %v839 = vsel %vm453, %v824, 0
    %v842 = vsel %vm453, %v825, 0
    %v845 = vsel %vm453, %v826, 0
    %v848 = vsel %vm453, %v827, 0
    %v851 = vsel %vm453, %v828, 0
    %853 = vmatprep.subr.mxu0 0.0
    %854 = vmatpush1.msra.mxu0 %v782
    %855 = vmatprep.subr.mxu0 0.0
    %856 = vmatpush1.msra.mxu0 %v787
    %857 = vmatprep.subr.mxu0 0.0
    %858 = vmatpush1.msra.mxu0 %v792
    %859 = vmatprep.subr.mxu0 0.0
    %860 = vmatpush1.msra.mxu0 %v797
    %861 = vmatprep.subr.mxu0 0.0
    %862 = vmatpush1.msra.mxu0 %v802
    %863 = vmatprep.subr.mxu0 0.0
    %864 = vmatpush1.msra.mxu0 %v807
    %865 = vmatprep.subr.mxu0 0.0
    %866 = vmatpush1.msra.mxu0 %v812
    %867 = vmatprep.subr.mxu0 0.0
    %868 = vmatpush1.msra.mxu0 %v817
    %869 = vmatprep.subr.mxu0 0.0
    %870 = vmatpush1.msra.mxu0 0.0
    %871 = vmatprep.subr.mxu0 0.0
    %872 = vmatpush1.msra.mxu0 0.0
    %873 = vmatprep.subr.mxu0 0.0
    %874 = vmatpush1.msra.mxu0 0.0
    %875 = vmatprep.subr.mxu0 0.0
    %876 = vmatpush1.msra.mxu0 0.0
    %877 = vmatprep.subr.mxu0 0.0
    %878 = vmatpush1.msra.mxu0 0.0
    %879 = vmatprep.subr.mxu0 0.0
    %880 = vmatpush1.msra.mxu0 0.0
    %881 = vmatprep.subr.mxu0 0.0
    %882 = vmatpush1.msra.mxu0 0.0
    %883 = vmatprep.subr.mxu0 0.0
    %884 = vmatpush1.msra.mxu0 0.0
    %885 = vmatprep.subr.mxu0 0.0
    %886 = vmatpush1.msra.mxu0 0.0
    %887 = vmatprep.subr.mxu0 0.0
    %888 = vmatpush1.msra.mxu0 0.0
    %889 = vmatprep.subr.mxu0 0.0
    %890 = vmatpush1.msra.mxu0 0.0
    %891 = vmatprep.subr.mxu0 0.0
    %892 = vmatpush1.msra.mxu0 0.0
    %893 = vmatprep.subr.mxu0 0.0
    %894 = vmatpush1.msra.mxu0 0.0
    %895 = vmatprep.subr.mxu0 0.0
    %896 = vmatpush1.msra.mxu0 0.0
    %897 = vmatprep.subr.mxu0 0.0
    %898 = vmatpush1.msra.mxu0 0.0
    %899 = vmatprep.subr.mxu0 0.0
    %900 = vmatpush1.msra.mxu0 0.0
    %901 = vmatprep.subr.mxu0 0.0
    %902 = vmatpush1.msra.mxu0 0.0
    %903 = vmatprep.subr.mxu0 0.0
    %904 = vmatpush1.msra.mxu0 0.0
    %905 = vmatprep.subr.mxu0 0.0
    %906 = vmatpush1.msra.mxu0 0.0
    %907 = vmatprep.subr.mxu0 0.0
    %908 = vmatpush1.msra.mxu0 0.0
    %909 = vmatprep.subr.mxu0 0.0
    %910 = vmatpush1.msra.mxu0 0.0
    %911 = vmatprep.subr.mxu0 0.0
    %912 = vmatpush1.msra.mxu0 0.0
    %913 = vmatprep.subr.mxu0 0.0
    %914 = vmatpush1.msra.mxu0 0.0
    %915 = vmatprep.subr.mxu0 0.0
    %916 = vmatpush1.msra.mxu0 0.0
    %917 = vmatprep.mubr.f32.mxu0 0.0
    %918 = vmatmul.mubr.f32.gmra.mrb[0].mxu0 %v830
    %v919 = vpop.f32.mrb[0].mxu0
    %v920 = vadd.f32 0.0, %v919
    %v921 = vpop.f32.mrb[0].mxu0
    %922 = vmatprep.mubr.f32.mxu0 0.0
    %923 = vmatmul.mubr.f32.gmra.mrb[0].mxu0 %v833
    %v924 = vpop.f32.mrb[0].mxu0
    %v925 = vadd.f32 0.0, %v924
    %v926 = vpop.f32.mrb[0].mxu0
    %927 = vmatprep.mubr.f32.mxu0 0.0
    %928 = vmatmul.mubr.f32.gmra.mrb[0].mxu0 %v836
    %v929 = vpop.f32.mrb[0].mxu0
    %v930 = vadd.f32 0.0, %v929
    %v931 = vpop.f32.mrb[0].mxu0
    %932 = vmatprep.mubr.f32.mxu0 0.0
    %933 = vmatmul.mubr.f32.gmra.mrb[0].mxu0 %v839
    %v934 = vpop.f32.mrb[0].mxu0
    %v935 = vadd.f32 0.0, %v934
    %v936 = vpop.f32.mrb[0].mxu0
    %937 = vmatprep.mubr.f32.mxu0 0.0
    %938 = vmatmul.mubr.f32.gmra.mrb[0].mxu0 %v842
    %v939 = vpop.f32.mrb[0].mxu0
    %v940 = vadd.f32 0.0, %v939
    %v941 = vpop.f32.mrb[0].mxu0
    %942 = vmatprep.mubr.f32.mxu0 0.0
    %943 = vmatmul.mubr.f32.gmra.mrb[0].mxu0 %v845
    %v944 = vpop.f32.mrb[0].mxu0
    %v945 = vadd.f32 0.0, %v944
    %v946 = vpop.f32.mrb[0].mxu0
    %947 = vmatprep.mubr.f32.mxu0 0.0
    %948 = vmatmul.mubr.f32.gmra.mrb[0].mxu0 %v848
    %v949 = vpop.f32.mrb[0].mxu0
    %v950 = vadd.f32 0.0, %v949
    %v951 = vpop.f32.mrb[0].mxu0
    %952 = vmatprep.mubr.f32.mxu0 0.0
    %953 = vmatmul.mubr.f32.gmra.mrb[0].mxu0 %v851
    %v954 = vpop.f32.mrb[0].mxu0
    %v955 = vadd.f32 0.0, %v954
    %v956 = vpop.f32.mrb[0].mxu0
    %957 = vdwg.mxu0
    %v958 = vadd.f32 %v674, %v920
    %v959 = vadd.f32 %v679, %v925
    %v960 = vadd.f32 %v684, %v930
    %v961 = vadd.f32 %v689, %v935
    %v962 = vadd.f32 %v694, %v940
    %v963 = vadd.f32 %v699, %v945
    %v964 = vadd.f32 %v704, %v950
    %v965 = vadd.f32 %v709, %v955
    %v966 = vld [vmem:[%s3] sm:$0x1]
    %v968 = vlaneseq
    %v969 = vshrl.u32 %v968, 7
    %v970 = vsub.s32 0, %v969
    %v971 = vrot.slane %v966, %v970
    %v973 = vadd.f32 %v958, %v971
    %v974 = vadd.f32 %v959, %v971
    %v975 = vadd.f32 %v960, %v971
    %v976 = vadd.f32 %v961, %v971
    %v977 = vadd.f32 %v962, %v971
    %v978 = vadd.f32 %v963, %v971
    %v979 = vadd.f32 %v964, %v971
    %v980 = vadd.f32 %v965, %v971
    %vm981 = vcmp.gt.f32.partialorder %v973, 0.0
    %vm982 = vcmp.gt.f32.partialorder %v974, 0.0
    %vm983 = vcmp.gt.f32.partialorder %v975, 0.0
    %vm984 = vcmp.gt.f32.partialorder %v976, 0.0
    %vm985 = vcmp.gt.f32.partialorder %v977, 0.0
    %vm986 = vcmp.gt.f32.partialorder %v978, 0.0
    %vm987 = vcmp.gt.f32.partialorder %v979, 0.0
    %vm988 = vcmp.gt.f32.partialorder %v980, 0.0
    %v989 = vmin.f32 %v973, 0.0
    %v990 = vmin.f32 %v974, 0.0
    %v991 = vmin.f32 %v975, 0.0
    %v992 = vmin.f32 %v976, 0.0
    %v993 = vmin.f32 %v977, 0.0
    %v994 = vmin.f32 %v978, 0.0
    %v995 = vmin.f32 %v979, 0.0
    %v996 = vmin.f32 %v980, 0.0
    %v997 = vmul.f32 %v989, 1.442695
    %v998 = vpow.pop %v997
    %v999 = vmul.f32 %v990, 1.442695
    %v1000 = vpow.pop %v999
    %v1001 = vmul.f32 %v991, 1.442695
    %v1002 = vpow.pop %v1001
    %v1003 = vmul.f32 %v992, 1.442695
    %v1004 = vpow.pop %v1003
    %v1005 = vmul.f32 %v993, 1.442695
    %v1006 = vpow.pop %v1005
    %v1007 = vmul.f32 %v994, 1.442695
    %v1008 = vpow.pop %v1007
    %v1009 = vmul.f32 %v995, 1.442695
    %v1010 = vpow.pop %v1009
    %v1011 = vmul.f32 %v996, 1.442695
    %v1012 = vpow.pop %v1011
    %v1013 = vsub.f32 %v998, 1.0
    %v1014 = vsub.f32 %v1000, 1.0
    %v1015 = vsub.f32 %v1002, 1.0
    %v1016 = vsub.f32 %v1004, 1.0
    %v1017 = vsub.f32 %v1006, 1.0
    %v1018 = vsub.f32 %v1008, 1.0
    %v1019 = vsub.f32 %v1010, 1.0
    %v1020 = vsub.f32 %v1012, 1.0
    %v1021 = vsel %vm981, %v973, %v1013
    %v1022 = vsel %vm982, %v974, %v1014
    %v1023 = vsel %vm983, %v975, %v1015
    %v1024 = vsel %vm984, %v976, %v1016
    %v1025 = vsel %vm985, %v977, %v1017
    %v1026 = vsel %vm986, %v978, %v1018
    %v1027 = vsel %vm987, %v979, %v1019
    %v1028 = vsel %vm988, %v980, %v1020
    %v1029 = vld [vmem:[#allocation7] sm:$0xff]
    %v1030 = vld [vmem:[#allocation7 + $0x8] sm:$0xff]
    %v1032 = vsel %vm198, %v1021, 0
    %v1035 = vsel %vm198, %v1022, 0
    %v1038 = vsel %vm198, %v1023, 0
    %v1041 = vsel %vm198, %v1024, 0
    %v1044 = vsel %vm198, %v1025, 0
    %v1047 = vsel %vm198, %v1026, 0
    %v1050 = vsel %vm198, %v1027, 0
    %v1053 = vsel %vm198, %v1028, 0
    %1055 = vmatprep.subr.mxu0 0.0
    %1056 = vmatpush1.msra.mxu0 %v1029
    %1057 = vmatprep.subr.mxu0 0.0
    %1058 = vmatpush1.msra.mxu0 %v1030
    %1059 = vmatprep.subr.mxu0 0.0
    %1060 = vmatpush1.msra.mxu0 0.0
    %1061 = vmatprep.subr.mxu0 0.0
    %1062 = vmatpush1.msra.mxu0 0.0
    %1063 = vmatprep.subr.mxu0 0.0
    %1064 = vmatpush1.msra.mxu0 0.0
    %1065 = vmatprep.subr.mxu0 0.0
    %1066 = vmatpush1.msra.mxu0 0.0
    %1067 = vmatprep.subr.mxu0 0.0
    %1068 = vmatpush1.msra.mxu0 0.0
    %1069 = vmatprep.subr.mxu0 0.0
    %1070 = vmatpush1.msra.mxu0 0.0
    %1071 = vmatprep.subr.mxu0 0.0
    %1072 = vmatpush1.msra.mxu0 0.0
    %1073 = vmatprep.subr.mxu0 0.0
    %1074 = vmatpush1.msra.mxu0 0.0
    %1075 = vmatprep.subr.mxu0 0.0
    %1076 = vmatpush1.msra.mxu0 0.0
    %1077 = vmatprep.subr.mxu0 0.0
    %1078 = vmatpush1.msra.mxu0 0.0
    %1079 = vmatprep.subr.mxu0 0.0
    %1080 = vmatpush1.msra.mxu0 0.0
    %1081 = vmatprep.subr.mxu0 0.0
    %1082 = vmatpush1.msra.mxu0 0.0
    %1083 = vmatprep.subr.mxu0 0.0
    %1084 = vmatpush1.msra.mxu0 0.0
    %1085 = vmatprep.subr.mxu0 0.0
    %1086 = vmatpush1.msra.mxu0 0.0
    %1087 = vmatprep.subr.mxu0 0.0
    %1088 = vmatpush1.msra.mxu0 0.0
    %1089 = vmatprep.subr.mxu0 0.0
    %1090 = vmatpush1.msra.mxu0 0.0
    %1091 = vmatprep.subr.mxu0 0.0
    %1092 = vmatpush1.msra.mxu0 0.0
    %1093 = vmatprep.subr.mxu0 0.0
    %1094 = vmatpush1.msra.mxu0 0.0
    %1095 = vmatprep.subr.mxu0 0.0
    %1096 = vmatpush1.msra.mxu0 0.0
    %1097 = vmatprep.subr.mxu0 0.0
    %1098 = vmatpush1.msra.mxu0 0.0
    %1099 = vmatprep.subr.mxu0 0.0
    %1100 = vmatpush1.msra.mxu0 0.0
    %1101 = vmatprep.subr.mxu0 0.0
    %1102 = vmatpush1.msra.mxu0 0.0
    %1103 = vmatprep.subr.mxu0 0.0
    %1104 = vmatpush1.msra.mxu0 0.0
    %1105 = vmatprep.subr.mxu0 0.0
    %1106 = vmatpush1.msra.mxu0 0.0
    %1107 = vmatprep.subr.mxu0 0.0
    %1108 = vmatpush1.msra.mxu0 0.0
    %1109 = vmatprep.subr.mxu0 0.0
    %1110 = vmatpush1.msra.mxu0 0.0
    %1111 = vmatprep.subr.mxu0 0.0
    %1112 = vmatpush1.msra.mxu0 0.0
    %1113 = vmatprep.subr.mxu0 0.0
    %1114 = vmatpush1.msra.mxu0 0.0
    %1115 = vmatprep.subr.mxu0 0.0
    %1116 = vmatpush1.msra.mxu0 0.0
    %1117 = vmatprep.subr.mxu0 0.0
    %1118 = vmatpush1.msra.mxu0 0.0
    %1119 = vmatprep.mubr.f32.mxu0 0.0
    %1120 = vmatmul.mubr.f32.gmra.mrb[0].mxu0 %v1032
    %v1121 = vpop.f32.mrb[0].mxu0
    %v1122 = vadd.f32 0.0, %v1121
    %v1123 = vpop.f32.mrb[0].mxu0
    %1124 = vmatprep.mubr.f32.mxu0 0.0
    %1125 = vmatmul.mubr.f32.gmra.mrb[0].mxu0 %v1035
    %v1126 = vpop.f32.mrb[0].mxu0
    %v1127 = vadd.f32 0.0, %v1126
    %v1128 = vpop.f32.mrb[0].mxu0
    %1129 = vmatprep.mubr.f32.mxu0 0.0
    %1130 = vmatmul.mubr.f32.gmra.mrb[0].mxu0 %v1038
    %v1131 = vpop.f32.mrb[0].mxu0
    %v1132 = vadd.f32 0.0, %v1131
    %v1133 = vpop.f32.mrb[0].mxu0
    %1134 = vmatprep.mubr.f32.mxu0 0.0
    %1135 = vmatmul.mubr.f32.gmra.mrb[0].mxu0 %v1041
    %v1136 = vpop.f32.mrb[0].mxu0
    %v1137 = vadd.f32 0.0, %v1136
    %v1138 = vpop.f32.mrb[0].mxu0
    %1139 = vmatprep.mubr.f32.mxu0 0.0
    %1140 = vmatmul.mubr.f32.gmra.mrb[0].mxu0 %v1044
    %v1141 = vpop.f32.mrb[0].mxu0
    %v1142 = vadd.f32 0.0, %v1141
    %v1143 = vpop.f32.mrb[0].mxu0
    %1144 = vmatprep.mubr.f32.mxu0 0.0
    %1145 = vmatmul.mubr.f32.gmra.mrb[0].mxu0 %v1047
    %v1146 = vpop.f32.mrb[0].mxu0
    %v1147 = vadd.f32 0.0, %v1146
    %v1148 = vpop.f32.mrb[0].mxu0
    %1149 = vmatprep.mubr.f32.mxu0 0.0
    %1150 = vmatmul.mubr.f32.gmra.mrb[0].mxu0 %v1050
    %v1151 = vpop.f32.mrb[0].mxu0
    %v1152 = vadd.f32 0.0, %v1151
    %v1153 = vpop.f32.mrb[0].mxu0
    %1154 = vmatprep.mubr.f32.mxu0 0.0
    %1155 = vmatmul.mubr.f32.gmra.mrb[0].mxu0 %v1053
    %v1156 = vpop.f32.mrb[0].mxu0
    %v1157 = vadd.f32 0.0, %v1156
    %v1158 = vpop.f32.mrb[0].mxu0
    %1159 = vdwg.mxu0
    %v1160 = vld [vmem:[%s4] sm:$0xff]
    %v1161 = vld [vmem:[%s4 + $0x8] sm:$0xff]
    %v1162 = vld [vmem:[%s4 + $0x10] sm:$0xff]
    %v1163 = vld [vmem:[%s4 + $0x18] sm:$0xf]
    %s1164 = scalar_lea.vmem [#allocation7], 16
    %v1165 = vld [vmem:[%s1164] sm:$0xff]
    %v1166 = vld [vmem:[%s1164 + $0x8] sm:$0xff]
    %1167 = vmatprep.subr.mxu0 0.0
    %1168 = vmatpush1.msra.mxu0 %v1165
    %1169 = vmatprep.subr.mxu0 0.0
    %1170 = vmatpush1.msra.mxu0 %v1166
    %1171 = vmatprep.subr.mxu0 0.0
    %1172 = vmatpush1.msra.mxu0 0.0
    %1173 = vmatprep.subr.mxu0 0.0
    %1174 = vmatpush1.msra.mxu0 0.0
    %1175 = vmatprep.subr.mxu0 0.0
    %1176 = vmatpush1.msra.mxu0 0.0
    %1177 = vmatprep.subr.mxu0 0.0
    %1178 = vmatpush1.msra.mxu0 0.0
    %1179 = vmatprep.subr.mxu0 0.0
    %1180 = vmatpush1.msra.mxu0 0.0
    %1181 = vmatprep.subr.mxu0 0.0
    %1182 = vmatpush1.msra.mxu0 0.0
    %1183 = vmatprep.subr.mxu0 0.0
    %1184 = vmatpush1.msra.mxu0 0.0
    %1185 = vmatprep.subr.mxu0 0.0
    %1186 = vmatpush1.msra.mxu0 0.0
    %1187 = vmatprep.subr.mxu0 0.0
    %1188 = vmatpush1.msra.mxu0 0.0
    %1189 = vmatprep.subr.mxu0 0.0
    %1190 = vmatpush1.msra.mxu0 0.0
    %1191 = vmatprep.subr.mxu0 0.0
    %1192 = vmatpush1.msra.mxu0 0.0
    %1193 = vmatprep.subr.mxu0 0.0
    %1194 = vmatpush1.msra.mxu0 0.0
    %1195 = vmatprep.subr.mxu0 0.0
    %1196 = vmatpush1.msra.mxu0 0.0
    %1197 = vmatprep.subr.mxu0 0.0
    %1198 = vmatpush1.msra.mxu0 0.0
    %1199 = vmatprep.subr.mxu0 0.0
    %1200 = vmatpush1.msra.mxu0 0.0
    %1201 = vmatprep.subr.mxu0 0.0
    %1202 = vmatpush1.msra.mxu0 0.0
    %1203 = vmatprep.subr.mxu0 0.0
    %1204 = vmatpush1.msra.mxu0 0.0
    %1205 = vmatprep.subr.mxu0 0.0
    %1206 = vmatpush1.msra.mxu0 0.0
    %1207 = vmatprep.subr.mxu0 0.0
    %1208 = vmatpush1.msra.mxu0 0.0
    %1209 = vmatprep.subr.mxu0 0.0
    %1210 = vmatpush1.msra.mxu0 0.0
    %1211 = vmatprep.subr.mxu0 0.0
    %1212 = vmatpush1.msra.mxu0 0.0
    %1213 = vmatprep.subr.mxu0 0.0
    %1214 = vmatpush1.msra.mxu0 0.0
    %1215 = vmatprep.subr.mxu0 0.0
    %1216 = vmatpush1.msra.mxu0 0.0
    %1217 = vmatprep.subr.mxu0 0.0
    %1218 = vmatpush1.msra.mxu0 0.0
    %1219 = vmatprep.subr.mxu0 0.0
    %1220 = vmatpush1.msra.mxu0 0.0
    %1221 = vmatprep.subr.mxu0 0.0
    %1222 = vmatpush1.msra.mxu0 0.0
    %1223 = vmatprep.subr.mxu0 0.0
    %1224 = vmatpush1.msra.mxu0 0.0
    %1225 = vmatprep.subr.mxu0 0.0
    %1226 = vmatpush1.msra.mxu0 0.0
    %1227 = vmatprep.subr.mxu0 0.0
    %1228 = vmatpush1.msra.mxu0 0.0
    %1229 = vmatprep.subr.mxu0 0.0
    %1230 = vmatpush1.msra.mxu0 0.0
    %1231 = vmatprep.mubr.f32.mxu0 0.0
    %1232 = vmatmul.mubr.f32.gmra.mrb[0].mxu0 %v1032
    %v1233 = vpop.f32.mrb[0].mxu0
    %v1234 = vadd.f32 0.0, %v1233
    %v1235 = vpop.f32.mrb[0].mxu0
    %1236 = vmatprep.mubr.f32.mxu0 0.0
    %1237 = vmatmul.mubr.f32.gmra.mrb[0].mxu0 %v1035
    %v1238 = vpop.f32.mrb[0].mxu0
    %v1239 = vadd.f32 0.0, %v1238
    %v1240 = vpop.f32.mrb[0].mxu0
    %1241 = vmatprep.mubr.f32.mxu0 0.0
    %1242 = vmatmul.mubr.f32.gmra.mrb[0].mxu0 %v1038
    %v1243 = vpop.f32.mrb[0].mxu0
    %v1244 = vadd.f32 0.0, %v1243
    %v1245 = vpop.f32.mrb[0].mxu0
    %1246 = vmatprep.mubr.f32.mxu0 0.0
    %1247 = vmatmul.mubr.f32.gmra.mrb[0].mxu0 %v1041
    %v1248 = vpop.f32.mrb[0].mxu0
    %v1249 = vadd.f32 0.0, %v1248
    %v1250 = vpop.f32.mrb[0].mxu0
    %1251 = vmatprep.mubr.f32.mxu0 0.0
    %1252 = vmatmul.mubr.f32.gmra.mrb[0].mxu0 %v1044
    %v1253 = vpop.f32.mrb[0].mxu0
    %v1254 = vadd.f32 0.0, %v1253
    %v1255 = vpop.f32.mrb[0].mxu0
    %1256 = vmatprep.mubr.f32.mxu0 0.0
    %1257 = vmatmul.mubr.f32.gmra.mrb[0].mxu0 %v1047
    %v1258 = vpop.f32.mrb[0].mxu0
    %v1259 = vadd.f32 0.0, %v1258
    %v1260 = vpop.f32.mrb[0].mxu0
    %1261 = vmatprep.mubr.f32.mxu0 0.0
    %1262 = vmatmul.mubr.f32.gmra.mrb[0].mxu0 %v1050
    %v1263 = vpop.f32.mrb[0].mxu0
    %v1264 = vadd.f32 0.0, %v1263
    %v1265 = vpop.f32.mrb[0].mxu0
    %1266 = vmatprep.mubr.f32.mxu0 0.0
    %1267 = vmatmul.mubr.f32.gmra.mrb[0].mxu0 %v1053
    %v1268 = vpop.f32.mrb[0].mxu0
    %v1269 = vadd.f32 0.0, %v1268
    %v1270 = vpop.f32.mrb[0].mxu0
    %1271 = vdwg.mxu0
    %s1272 = scalar_lea.vmem %s4, 32
    %v1273 = vld [vmem:[%s1272] sm:$0xff]
    %v1274 = vld [vmem:[%s1272 + $0x8] sm:$0xff]
    %v1275 = vld [vmem:[%s1272 + $0x10] sm:$0xff]
    %v1276 = vld [vmem:[%s1272 + $0x18] sm:$0xf]
    %vm1277 = vcmask 490496
    %v1279 = vsel %vm1277, %v1273, 0
    %v1282 = vsel %vm1277, %v1274, 0
    %v1285 = vsel %vm1277, %v1275, 0
    %v1288 = vsel %vm1277, %v1276, 0
    %vm1290 = vcmask 1043456
    %v1292 = vsel %vm1290, %v1269, 0
    %1294 = vmatprep.subr.mxu0 0.0
    %1295 = vmatpush1.msra.mxu0 %v1234
    %1296 = vmatprep.subr.mxu0 0.0
    %1297 = vmatpush1.msra.mxu0 %v1239
    %1298 = vmatprep.subr.mxu0 0.0
    %1299 = vmatpush1.msra.mxu0 %v1244
    %1300 = vmatprep.subr.mxu0 0.0
    %1301 = vmatpush1.msra.mxu0 %v1249
    %1302 = vmatprep.subr.mxu0 0.0
    %1303 = vmatpush1.msra.mxu0 %v1254
    %1304 = vmatprep.subr.mxu0 0.0
    %1305 = vmatpush1.msra.mxu0 %v1259
    %1306 = vmatprep.subr.mxu0 0.0
    %1307 = vmatpush1.msra.mxu0 %v1264
    %1308 = vmatprep.subr.mxu0 0.0
    %1309 = vmatpush1.msra.mxu0 %v1292
    %1310 = vmatprep.subr.mxu0 0.0
    %1311 = vmatpush1.msra.mxu0 0.0
    %1312 = vmatprep.subr.mxu0 0.0
    %1313 = vmatpush1.msra.mxu0 0.0
    %1314 = vmatprep.subr.mxu0 0.0
    %1315 = vmatpush1.msra.mxu0 0.0
    %1316 = vmatprep.subr.mxu0 0.0
    %1317 = vmatpush1.msra.mxu0 0.0
    %1318 = vmatprep.subr.mxu0 0.0
    %1319 = vmatpush1.msra.mxu0 0.0
    %1320 = vmatprep.subr.mxu0 0.0
    %1321 = vmatpush1.msra.mxu0 0.0
    %1322 = vmatprep.subr.mxu0 0.0
    %1323 = vmatpush1.msra.mxu0 0.0
    %1324 = vmatprep.subr.mxu0 0.0
    %1325 = vmatpush1.msra.mxu0 0.0
    %1326 = vmatprep.subr.mxu0 0.0
    %1327 = vmatpush1.msra.mxu0 0.0
    %1328 = vmatprep.subr.mxu0 0.0
    %1329 = vmatpush1.msra.mxu0 0.0
    %1330 = vmatprep.subr.mxu0 0.0
    %1331 = vmatpush1.msra.mxu0 0.0
    %1332 = vmatprep.subr.mxu0 0.0
    %1333 = vmatpush1.msra.mxu0 0.0
    %1334 = vmatprep.subr.mxu0 0.0
    %1335 = vmatpush1.msra.mxu0 0.0
    %1336 = vmatprep.subr.mxu0 0.0
    %1337 = vmatpush1.msra.mxu0 0.0
    %1338 = vmatprep.subr.mxu0 0.0
    %1339 = vmatpush1.msra.mxu0 0.0
    %1340 = vmatprep.subr.mxu0 0.0
    %1341 = vmatpush1.msra.mxu0 0.0
    %1342 = vmatprep.subr.mxu0 0.0
    %1343 = vmatpush1.msra.mxu0 0.0
    %1344 = vmatprep.subr.mxu0 0.0
    %1345 = vmatpush1.msra.mxu0 0.0
    %1346 = vmatprep.subr.mxu0 0.0
    %1347 = vmatpush1.msra.mxu0 0.0
    %1348 = vmatprep.subr.mxu0 0.0
    %1349 = vmatpush1.msra.mxu0 0.0
    %1350 = vmatprep.subr.mxu0 0.0
    %1351 = vmatpush1.msra.mxu0 0.0
    %1352 = vmatprep.subr.mxu0 0.0
    %1353 = vmatpush1.msra.mxu0 0.0
    %1354 = vmatprep.subr.mxu0 0.0
    %1355 = vmatpush1.msra.mxu0 0.0
    %1356 = vmatprep.subr.mxu0 0.0
    %1357 = vmatpush1.msra.mxu0 0.0
    %1358 = vmatprep.mubr.f32.mxu0 0.0
    %1359 = vmatmul.mubr.f32.gmra.mrb[0].mxu0 %v1279
    %v1360 = vpop.f32.mrb[0].mxu0
    %v1361 = vadd.f32 0.0, %v1360
    %v1362 = vpop.f32.mrb[0].mxu0
    %1363 = vmatprep.mubr.f32.mxu0 0.0
    %1364 = vmatmul.mubr.f32.gmra.mrb[0].mxu0 %v1282
    %v1365 = vpop.f32.mrb[0].mxu0
    %v1366 = vadd.f32 0.0, %v1365
    %v1367 = vpop.f32.mrb[0].mxu0
    %1368 = vmatprep.mubr.f32.mxu0 0.0
    %1369 = vmatmul.mubr.f32.gmra.mrb[0].mxu0 %v1285
    %v1370 = vpop.f32.mrb[0].mxu0
    %v1371 = vadd.f32 0.0, %v1370
    %v1372 = vpop.f32.mrb[0].mxu0
    %1373 = vmatprep.mubr.f32.mxu0 0.0
    %1374 = vmatmul.mubr.f32.gmra.mrb[0].mxu0 %v1288
    %v1375 = vpop.f32.mrb[0].mxu0
    %v1376 = vadd.f32 0.0, %v1375
    %v1377 = vpop.f32.mrb[0].mxu0
    %1378 = vdwg.mxu0
    %v1380 = vsel %vm1277, %v1160, 0
    %v1383 = vsel %vm1277, %v1161, 0
    %v1386 = vsel %vm1277, %v1162, 0
    %v1389 = vsel %vm1277, %v1163, 0
    %v1392 = vsel %vm1290, %v1157, 0
    %1394 = vmatprep.subr.mxu0 0.0
    %1395 = vmatpush1.msra.mxu0 %v1122
    %1396 = vmatprep.subr.mxu0 0.0
    %1397 = vmatpush1.msra.mxu0 %v1127
    %1398 = vmatprep.subr.mxu0 0.0
    %1399 = vmatpush1.msra.mxu0 %v1132
    %1400 = vmatprep.subr.mxu0 0.0
    %1401 = vmatpush1.msra.mxu0 %v1137
    %1402 = vmatprep.subr.mxu0 0.0
    %1403 = vmatpush1.msra.mxu0 %v1142
    %1404 = vmatprep.subr.mxu0 0.0
    %1405 = vmatpush1.msra.mxu0 %v1147
    %1406 = vmatprep.subr.mxu0 0.0
    %1407 = vmatpush1.msra.mxu0 %v1152
    %1408 = vmatprep.subr.mxu0 0.0
    %1409 = vmatpush1.msra.mxu0 %v1392
    %1410 = vmatprep.subr.mxu0 0.0
    %1411 = vmatpush1.msra.mxu0 0.0
    %1412 = vmatprep.subr.mxu0 0.0
    %1413 = vmatpush1.msra.mxu0 0.0
    %1414 = vmatprep.subr.mxu0 0.0
    %1415 = vmatpush1.msra.mxu0 0.0
    %1416 = vmatprep.subr.mxu0 0.0
    %1417 = vmatpush1.msra.mxu0 0.0
    %1418 = vmatprep.subr.mxu0 0.0
    %1419 = vmatpush1.msra.mxu0 0.0
    %1420 = vmatprep.subr.mxu0 0.0
    %1421 = vmatpush1.msra.mxu0 0.0
    %1422 = vmatprep.subr.mxu0 0.0
    %1423 = vmatpush1.msra.mxu0 0.0
    %1424 = vmatprep.subr.mxu0 0.0
    %1425 = vmatpush1.msra.mxu0 0.0
    %1426 = vmatprep.subr.mxu0 0.0
    %1427 = vmatpush1.msra.mxu0 0.0
    %1428 = vmatprep.subr.mxu0 0.0
    %1429 = vmatpush1.msra.mxu0 0.0
    %1430 = vmatprep.subr.mxu0 0.0
    %1431 = vmatpush1.msra.mxu0 0.0
    %1432 = vmatprep.subr.mxu0 0.0
    %1433 = vmatpush1.msra.mxu0 0.0
    %1434 = vmatprep.subr.mxu0 0.0
    %1435 = vmatpush1.msra.mxu0 0.0
    %1436 = vmatprep.subr.mxu0 0.0
    %1437 = vmatpush1.msra.mxu0 0.0
    %1438 = vmatprep.subr.mxu0 0.0
    %1439 = vmatpush1.msra.mxu0 0.0
    %1440 = vmatprep.subr.mxu0 0.0
    %1441 = vmatpush1.msra.mxu0 0.0
    %1442 = vmatprep.subr.mxu0 0.0
    %1443 = vmatpush1.msra.mxu0 0.0
    %1444 = vmatprep.subr.mxu0 0.0
    %1445 = vmatpush1.msra.mxu0 0.0
    %1446 = vmatprep.subr.mxu0 0.0
    %1447 = vmatpush1.msra.mxu0 0.0
    %1448 = vmatprep.subr.mxu0 0.0
    %1449 = vmatpush1.msra.mxu0 0.0
    %1450 = vmatprep.subr.mxu0 0.0
    %1451 = vmatpush1.msra.mxu0 0.0
    %1452 = vmatprep.subr.mxu0 0.0
    %1453 = vmatpush1.msra.mxu0 0.0
    %1454 = vmatprep.subr.mxu0 0.0
    %1455 = vmatpush1.msra.mxu0 0.0
    %1456 = vmatprep.subr.mxu0 0.0
    %1457 = vmatpush1.msra.mxu0 0.0
    %1458 = vmatprep.mubr.f32.mxu0 0.0
    %1459 = vmatmul.mubr.f32.gmra.mrb[0].mxu0 %v1380
    %v1460 = vpop.f32.mrb[0].mxu0
    %v1461 = vadd.f32 %v1361, %v1460
    %v1462 = vpop.f32.mrb[0].mxu0
    %1463 = vmatprep.mubr.f32.mxu0 0.0
    %1464 = vmatmul.mubr.f32.gmra.mrb[0].mxu0 %v1383
    %v1465 = vpop.f32.mrb[0].mxu0
    %v1466 = vadd.f32 %v1366, %v1465
    %v1467 = vpop.f32.mrb[0].mxu0
    %1468 = vmatprep.mubr.f32.mxu0 0.0
    %1469 = vmatmul.mubr.f32.gmra.mrb[0].mxu0 %v1386
    %v1470 = vpop.f32.mrb[0].mxu0
    %v1471 = vadd.f32 %v1371, %v1470
    %v1472 = vpop.f32.mrb[0].mxu0
    %1473 = vmatprep.mubr.f32.mxu0 0.0
    %1474 = vmatmul.mubr.f32.gmra.mrb[0].mxu0 %v1389
    %v1475 = vpop.f32.mrb[0].mxu0
    %v1476 = vadd.f32 %v1376, %v1475
    %v1477 = vpop.f32.mrb[0].mxu0
    %1478 = vdwg.mxu0
    %s1479 = scalar_lea.vmem [#allocation7], 32
    %v1480 = vld [vmem:[%s1479] sm:$0xff]
    %v1481 = vld [vmem:[%s1479 + $0x8] sm:$0xff]
    %1482 = vmatprep.subr.mxu0 0.0
    %1483 = vmatpush1.msra.mxu0 %v1480
    %1484 = vmatprep.subr.mxu0 0.0
    %1485 = vmatpush1.msra.mxu0 %v1481
    %1486 = vmatprep.subr.mxu0 0.0
    %1487 = vmatpush1.msra.mxu0 0.0
    %1488 = vmatprep.subr.mxu0 0.0
    %1489 = vmatpush1.msra.mxu0 0.0
    %1490 = vmatprep.subr.mxu0 0.0
    %1491 = vmatpush1.msra.mxu0 0.0
    %1492 = vmatprep.subr.mxu0 0.0
    %1493 = vmatpush1.msra.mxu0 0.0
    %1494 = vmatprep.subr.mxu0 0.0
    %1495 = vmatpush1.msra.mxu0 0.0
    %1496 = vmatprep.subr.mxu0 0.0
    %1497 = vmatpush1.msra.mxu0 0.0
    %1498 = vmatprep.subr.mxu0 0.0
    %1499 = vmatpush1.msra.mxu0 0.0
    %1500 = vmatprep.subr.mxu0 0.0
    %1501 = vmatpush1.msra.mxu0 0.0
    %1502 = vmatprep.subr.mxu0 0.0
    %1503 = vmatpush1.msra.mxu0 0.0
    %1504 = vmatprep.subr.mxu0 0.0
    %1505 = vmatpush1.msra.mxu0 0.0
    %1506 = vmatprep.subr.mxu0 0.0
    %1507 = vmatpush1.msra.mxu0 0.0
    %1508 = vmatprep.subr.mxu0 0.0
    %1509 = vmatpush1.msra.mxu0 0.0
    %1510 = vmatprep.subr.mxu0 0.0
    %1511 = vmatpush1.msra.mxu0 0.0
    %1512 = vmatprep.subr.mxu0 0.0
    %1513 = vmatpush1.msra.mxu0 0.0
    %1514 = vmatprep.subr.mxu0 0.0
    %1515 = vmatpush1.msra.mxu0 0.0
    %1516 = vmatprep.subr.mxu0 0.0
    %1517 = vmatpush1.msra.mxu0 0.0
    %1518 = vmatprep.subr.mxu0 0.0
    %1519 = vmatpush1.msra.mxu0 0.0
    %1520 = vmatprep.subr.mxu0 0.0
    %1521 = vmatpush1.msra.mxu0 0.0
    %1522 = vmatprep.subr.mxu0 0.0
    %1523 = vmatpush1.msra.mxu0 0.0
    %1524 = vmatprep.subr.mxu0 0.0
    %1525 = vmatpush1.msra.mxu0 0.0
    %1526 = vmatprep.subr.mxu0 0.0
    %1527 = vmatpush1.msra.mxu0 0.0
    %1528 = vmatprep.subr.mxu0 0.0
    %1529 = vmatpush1.msra.mxu0 0.0
    %1530 = vmatprep.subr.mxu0 0.0
    %1531 = vmatpush1.msra.mxu0 0.0
    %1532 = vmatprep.subr.mxu0 0.0
    %1533 = vmatpush1.msra.mxu0 0.0
    %1534 = vmatprep.subr.mxu0 0.0
    %1535 = vmatpush1.msra.mxu0 0.0
    %1536 = vmatprep.subr.mxu0 0.0
    %1537 = vmatpush1.msra.mxu0 0.0
    %1538 = vmatprep.subr.mxu0 0.0
    %1539 = vmatpush1.msra.mxu0 0.0
    %1540 = vmatprep.subr.mxu0 0.0
    %1541 = vmatpush1.msra.mxu0 0.0
    %1542 = vmatprep.subr.mxu0 0.0
    %1543 = vmatpush1.msra.mxu0 0.0
    %1544 = vmatprep.subr.mxu0 0.0
    %1545 = vmatpush1.msra.mxu0 0.0
    %1546 = vmatprep.mubr.f32.mxu0 0.0
    %1547 = vmatmul.mubr.f32.gmra.mrb[0].mxu0 %v1032
    %v1548 = vpop.f32.mrb[0].mxu0
    %v1549 = vadd.f32 0.0, %v1548
    %v1550 = vpop.f32.mrb[0].mxu0
    %1551 = vmatprep.mubr.f32.mxu0 0.0
    %1552 = vmatmul.mubr.f32.gmra.mrb[0].mxu0 %v1035
    %v1553 = vpop.f32.mrb[0].mxu0
    %v1554 = vadd.f32 0.0, %v1553
    %v1555 = vpop.f32.mrb[0].mxu0
    %1556 = vmatprep.mubr.f32.mxu0 0.0
    %1557 = vmatmul.mubr.f32.gmra.mrb[0].mxu0 %v1038
    %v1558 = vpop.f32.mrb[0].mxu0
    %v1559 = vadd.f32 0.0, %v1558
    %v1560 = vpop.f32.mrb[0].mxu0
    %1561 = vmatprep.mubr.f32.mxu0 0.0
    %1562 = vmatmul.mubr.f32.gmra.mrb[0].mxu0 %v1041
    %v1563 = vpop.f32.mrb[0].mxu0
    %v1564 = vadd.f32 0.0, %v1563
    %v1565 = vpop.f32.mrb[0].mxu0
    %1566 = vmatprep.mubr.f32.mxu0 0.0
    %1567 = vmatmul.mubr.f32.gmra.mrb[0].mxu0 %v1044
    %v1568 = vpop.f32.mrb[0].mxu0
    %v1569 = vadd.f32 0.0, %v1568
    %v1570 = vpop.f32.mrb[0].mxu0
    %1571 = vmatprep.mubr.f32.mxu0 0.0
    %1572 = vmatmul.mubr.f32.gmra.mrb[0].mxu0 %v1047
    %v1573 = vpop.f32.mrb[0].mxu0
    %v1574 = vadd.f32 0.0, %v1573
    %v1575 = vpop.f32.mrb[0].mxu0
    %1576 = vmatprep.mubr.f32.mxu0 0.0
    %1577 = vmatmul.mubr.f32.gmra.mrb[0].mxu0 %v1050
    %v1578 = vpop.f32.mrb[0].mxu0
    %v1579 = vadd.f32 0.0, %v1578
    %v1580 = vpop.f32.mrb[0].mxu0
    %1581 = vmatprep.mubr.f32.mxu0 0.0
    %1582 = vmatmul.mubr.f32.gmra.mrb[0].mxu0 %v1053
    %v1583 = vpop.f32.mrb[0].mxu0
    %v1584 = vadd.f32 0.0, %v1583
    %v1585 = vpop.f32.mrb[0].mxu0
    %1586 = vdwg.mxu0
    %s1587 = scalar_lea.vmem %s4, 64
    %v1588 = vld [vmem:[%s1587] sm:$0xff]
    %v1589 = vld [vmem:[%s1587 + $0x8] sm:$0xff]
    %v1590 = vld [vmem:[%s1587 + $0x10] sm:$0xff]
    %v1591 = vld [vmem:[%s1587 + $0x18] sm:$0xf]
    %v1593 = vsel %vm1277, %v1588, 0
    %v1596 = vsel %vm1277, %v1589, 0
    %v1599 = vsel %vm1277, %v1590, 0
    %v1602 = vsel %vm1277, %v1591, 0
    %v1605 = vsel %vm1290, %v1584, 0
    %1607 = vmatprep.subr.mxu0 0.0
    %1608 = vmatpush1.msra.mxu0 %v1549
    %1609 = vmatprep.subr.mxu0 0.0
    %1610 = vmatpush1.msra.mxu0 %v1554
    %1611 = vmatprep.subr.mxu0 0.0
    %1612 = vmatpush1.msra.mxu0 %v1559
    %1613 = vmatprep.subr.mxu0 0.0
    %1614 = vmatpush1.msra.mxu0 %v1564
    %1615 = vmatprep.subr.mxu0 0.0
    %1616 = vmatpush1.msra.mxu0 %v1569
    %1617 = vmatprep.subr.mxu0 0.0
    %1618 = vmatpush1.msra.mxu0 %v1574
    %1619 = vmatprep.subr.mxu0 0.0
    %1620 = vmatpush1.msra.mxu0 %v1579
    %1621 = vmatprep.subr.mxu0 0.0
    %1622 = vmatpush1.msra.mxu0 %v1605
    %1623 = vmatprep.subr.mxu0 0.0
    %1624 = vmatpush1.msra.mxu0 0.0
    %1625 = vmatprep.subr.mxu0 0.0
    %1626 = vmatpush1.msra.mxu0 0.0
    %1627 = vmatprep.subr.mxu0 0.0
    %1628 = vmatpush1.msra.mxu0 0.0
    %1629 = vmatprep.subr.mxu0 0.0
    %1630 = vmatpush1.msra.mxu0 0.0
    %1631 = vmatprep.subr.mxu0 0.0
    %1632 = vmatpush1.msra.mxu0 0.0
    %1633 = vmatprep.subr.mxu0 0.0
    %1634 = vmatpush1.msra.mxu0 0.0
    %1635 = vmatprep.subr.mxu0 0.0
    %1636 = vmatpush1.msra.mxu0 0.0
    %1637 = vmatprep.subr.mxu0 0.0
    %1638 = vmatpush1.msra.mxu0 0.0
    %1639 = vmatprep.subr.mxu0 0.0
    %1640 = vmatpush1.msra.mxu0 0.0
    %1641 = vmatprep.subr.mxu0 0.0
    %1642 = vmatpush1.msra.mxu0 0.0
    %1643 = vmatprep.subr.mxu0 0.0
    %1644 = vmatpush1.msra.mxu0 0.0
    %1645 = vmatprep.subr.mxu0 0.0
    %1646 = vmatpush1.msra.mxu0 0.0
    %1647 = vmatprep.subr.mxu0 0.0
    %1648 = vmatpush1.msra.mxu0 0.0
    %1649 = vmatprep.subr.mxu0 0.0
    %1650 = vmatpush1.msra.mxu0 0.0
    %1651 = vmatprep.subr.mxu0 0.0
    %1652 = vmatpush1.msra.mxu0 0.0
    %1653 = vmatprep.subr.mxu0 0.0
    %1654 = vmatpush1.msra.mxu0 0.0
    %1655 = vmatprep.subr.mxu0 0.0
    %1656 = vmatpush1.msra.mxu0 0.0
    %1657 = vmatprep.subr.mxu0 0.0
    %1658 = vmatpush1.msra.mxu0 0.0
    %1659 = vmatprep.subr.mxu0 0.0
    %1660 = vmatpush1.msra.mxu0 0.0
    %1661 = vmatprep.subr.mxu0 0.0
    %1662 = vmatpush1.msra.mxu0 0.0
    %1663 = vmatprep.subr.mxu0 0.0
    %1664 = vmatpush1.msra.mxu0 0.0
    %1665 = vmatprep.subr.mxu0 0.0
    %1666 = vmatpush1.msra.mxu0 0.0
    %1667 = vmatprep.subr.mxu0 0.0
    %1668 = vmatpush1.msra.mxu0 0.0
    %1669 = vmatprep.subr.mxu0 0.0
    %1670 = vmatpush1.msra.mxu0 0.0
    %1671 = vmatprep.mubr.f32.mxu0 0.0
    %1672 = vmatmul.mubr.f32.gmra.mrb[0].mxu0 %v1593
    %v1673 = vpop.f32.mrb[0].mxu0
    %v1674 = vadd.f32 0.0, %v1673
    %v1675 = vpop.f32.mrb[0].mxu0
    %1676 = vmatprep.mubr.f32.mxu0 0.0
    %1677 = vmatmul.mubr.f32.gmra.mrb[0].mxu0 %v1596
    %v1678 = vpop.f32.mrb[0].mxu0
    %v1679 = vadd.f32 0.0, %v1678
    %v1680 = vpop.f32.mrb[0].mxu0
    %1681 = vmatprep.mubr.f32.mxu0 0.0
    %1682 = vmatmul.mubr.f32.gmra.mrb[0].mxu0 %v1599
    %v1683 = vpop.f32.mrb[0].mxu0
    %v1684 = vadd.f32 0.0, %v1683
    %v1685 = vpop.f32.mrb[0].mxu0
    %1686 = vmatprep.mubr.f32.mxu0 0.0
    %1687 = vmatmul.mubr.f32.gmra.mrb[0].mxu0 %v1602
    %v1688 = vpop.f32.mrb[0].mxu0
    %v1689 = vadd.f32 0.0, %v1688
    %v1690 = vpop.f32.mrb[0].mxu0
    %1691 = vdwg.mxu0
    %v1692 = vadd.f32 %v1461, %v1674
    %v1693 = vadd.f32 %v1466, %v1679
    %v1694 = vadd.f32 %v1471, %v1684
    %v1695 = vadd.f32 %v1476, %v1689
    %v1696 = vld [vmem:[#allocation8] sm:$0x1]
    %v1698 = vlaneseq
    %v1699 = vshrl.u32 %v1698, 7
    %v1700 = vsub.s32 0, %v1699
    %v1701 = vrot.slane %v1696, %v1700
    %v1703 = vadd.f32 %v1692, %v1701
    %v1704 = vadd.f32 %v1693, %v1701
    %v1705 = vadd.f32 %v1694, %v1701
    %v1706 = vadd.f32 %v1695, %v1701
    %vm1707 = vcmp.gt.f32.partialorder %v1703, 0.0
    %vm1708 = vcmp.gt.f32.partialorder %v1704, 0.0
    %vm1709 = vcmp.gt.f32.partialorder %v1705, 0.0
    %vm1710 = vcmp.gt.f32.partialorder %v1706, 0.0
    %v1711 = vmin.f32 %v1703, 0.0
    %v1712 = vmin.f32 %v1704, 0.0
    %v1713 = vmin.f32 %v1705, 0.0
    %v1714 = vmin.f32 %v1706, 0.0
    %v1715 = vmul.f32 %v1711, 1.442695
    %v1716 = vpow.pop %v1715
    %v1717 = vmul.f32 %v1712, 1.442695
    %v1718 = vpow.pop %v1717
    %v1719 = vmul.f32 %v1713, 1.442695
    %v1720 = vpow.pop %v1719
    %v1721 = vmul.f32 %v1714, 1.442695
    %v1722 = vpow.pop %v1721
    %v1723 = vsub.f32 %v1716, 1.0
    %v1724 = vsub.f32 %v1718, 1.0
    %v1725 = vsub.f32 %v1720, 1.0
    %v1726 = vsub.f32 %v1722, 1.0
    %v1727 = vsel %vm1707, %v1703, %v1723
    %v1728 = vsel %vm1708, %v1704, %v1724
    %v1729 = vsel %vm1709, %v1705, %v1725
    %v1730 = vsel %vm1710, %v1706, %v1726
    %v1731 = vld [vmem:[%s8] sm:$0xff]
    %v1732 = vld [vmem:[%s8 + $0x8] sm:$0xff]
    %v1734 = vsel %vm198, %v1727, 0
    %v1737 = vsel %vm198, %v1728, 0
    %v1740 = vsel %vm198, %v1729, 0
    %v1743 = vsel %vm198, %v1730, 0
    %1745 = vmatprep.subr.mxu0 0.0
    %1746 = vmatpush1.msra.mxu0 %v1731
    %1747 = vmatprep.subr.mxu0 0.0
    %1748 = vmatpush1.msra.mxu0 %v1732
    %1749 = vmatprep.subr.mxu0 0.0
    %1750 = vmatpush1.msra.mxu0 0.0
    %1751 = vmatprep.subr.mxu0 0.0
    %1752 = vmatpush1.msra.mxu0 0.0
    %1753 = vmatprep.subr.mxu0 0.0
    %1754 = vmatpush1.msra.mxu0 0.0
    %1755 = vmatprep.subr.mxu0 0.0
    %1756 = vmatpush1.msra.mxu0 0.0
    %1757 = vmatprep.subr.mxu0 0.0
    %1758 = vmatpush1.msra.mxu0 0.0
    %1759 = vmatprep.subr.mxu0 0.0
    %1760 = vmatpush1.msra.mxu0 0.0
    %1761 = vmatprep.subr.mxu0 0.0
    %1762 = vmatpush1.msra.mxu0 0.0
    %1763 = vmatprep.subr.mxu0 0.0
    %1764 = vmatpush1.msra.mxu0 0.0
    %1765 = vmatprep.subr.mxu0 0.0
    %1766 = vmatpush1.msra.mxu0 0.0
    %1767 = vmatprep.subr.mxu0 0.0
    %1768 = vmatpush1.msra.mxu0 0.0
    %1769 = vmatprep.subr.mxu0 0.0
    %1770 = vmatpush1.msra.mxu0 0.0
    %1771 = vmatprep.subr.mxu0 0.0
    %1772 = vmatpush1.msra.mxu0 0.0
    %1773 = vmatprep.subr.mxu0 0.0
    %1774 = vmatpush1.msra.mxu0 0.0
    %1775 = vmatprep.subr.mxu0 0.0
    %1776 = vmatpush1.msra.mxu0 0.0
    %1777 = vmatprep.subr.mxu0 0.0
    %1778 = vmatpush1.msra.mxu0 0.0
    %1779 = vmatprep.subr.mxu0 0.0
    %1780 = vmatpush1.msra.mxu0 0.0
    %1781 = vmatprep.subr.mxu0 0.0
    %1782 = vmatpush1.msra.mxu0 0.0
    %1783 = vmatprep.subr.mxu0 0.0
    %1784 = vmatpush1.msra.mxu0 0.0
    %1785 = vmatprep.subr.mxu0 0.0
    %1786 = vmatpush1.msra.mxu0 0.0
    %1787 = vmatprep.subr.mxu0 0.0
    %1788 = vmatpush1.msra.mxu0 0.0
    %1789 = vmatprep.subr.mxu0 0.0
    %1790 = vmatpush1.msra.mxu0 0.0
    %1791 = vmatprep.subr.mxu0 0.0
    %1792 = vmatpush1.msra.mxu0 0.0
    %1793 = vmatprep.subr.mxu0 0.0
    %1794 = vmatpush1.msra.mxu0 0.0
    %1795 = vmatprep.subr.mxu0 0.0
    %1796 = vmatpush1.msra.mxu0 0.0
    %1797 = vmatprep.subr.mxu0 0.0
    %1798 = vmatpush1.msra.mxu0 0.0
    %1799 = vmatprep.subr.mxu0 0.0
    %1800 = vmatpush1.msra.mxu0 0.0
    %1801 = vmatprep.subr.mxu0 0.0
    %1802 = vmatpush1.msra.mxu0 0.0
    %1803 = vmatprep.subr.mxu0 0.0
    %1804 = vmatpush1.msra.mxu0 0.0
    %1805 = vmatprep.subr.mxu0 0.0
    %1806 = vmatpush1.msra.mxu0 0.0
    %1807 = vmatprep.subr.mxu0 0.0
    %1808 = vmatpush1.msra.mxu0 0.0
    %1809 = vmatprep.mubr.f32.mxu0 0.0
    %1810 = vmatmul.mubr.f32.gmra.mrb[0].mxu0 %v1734
    %v1811 = vpop.f32.mrb[0].mxu0
    %v1812 = vadd.f32 0.0, %v1811
    %v1813 = vpop.f32.mrb[0].mxu0
    %1814 = vmatprep.mubr.f32.mxu0 0.0
    %1815 = vmatmul.mubr.f32.gmra.mrb[0].mxu0 %v1737
    %v1816 = vpop.f32.mrb[0].mxu0
    %v1817 = vadd.f32 0.0, %v1816
    %v1818 = vpop.f32.mrb[0].mxu0
    %1819 = vmatprep.mubr.f32.mxu0 0.0
    %1820 = vmatmul.mubr.f32.gmra.mrb[0].mxu0 %v1740
    %v1821 = vpop.f32.mrb[0].mxu0
    %v1822 = vadd.f32 0.0, %v1821
    %v1823 = vpop.f32.mrb[0].mxu0
    %1824 = vmatprep.mubr.f32.mxu0 0.0
    %1825 = vmatmul.mubr.f32.gmra.mrb[0].mxu0 %v1743
    %v1826 = vpop.f32.mrb[0].mxu0
    %v1827 = vadd.f32 0.0, %v1826
    %v1828 = vpop.f32.mrb[0].mxu0
    %1829 = vdwg.mxu0
    %v1830 = vld [vmem:[#allocation10] sm:$0xff]
    %v1831 = vld [vmem:[#allocation10 + $0x8] sm:$0xf]
    %s1832 = scalar_lea.vmem %s8, 16
    %v1833 = vld [vmem:[%s1832] sm:$0xff]
    %v1834 = vld [vmem:[%s1832 + $0x8] sm:$0xff]
    %1835 = vmatprep.subr.mxu0 0.0
    %1836 = vmatpush1.msra.mxu0 %v1833
    %1837 = vmatprep.subr.mxu0 0.0
    %1838 = vmatpush1.msra.mxu0 %v1834
    %1839 = vmatprep.subr.mxu0 0.0
    %1840 = vmatpush1.msra.mxu0 0.0
    %1841 = vmatprep.subr.mxu0 0.0
    %1842 = vmatpush1.msra.mxu0 0.0
    %1843 = vmatprep.subr.mxu0 0.0
    %1844 = vmatpush1.msra.mxu0 0.0
    %1845 = vmatprep.subr.mxu0 0.0
    %1846 = vmatpush1.msra.mxu0 0.0
    %1847 = vmatprep.subr.mxu0 0.0
    %1848 = vmatpush1.msra.mxu0 0.0
    %1849 = vmatprep.subr.mxu0 0.0
    %1850 = vmatpush1.msra.mxu0 0.0
    %1851 = vmatprep.subr.mxu0 0.0
    %1852 = vmatpush1.msra.mxu0 0.0
    %1853 = vmatprep.subr.mxu0 0.0
    %1854 = vmatpush1.msra.mxu0 0.0
    %1855 = vmatprep.subr.mxu0 0.0
    %1856 = vmatpush1.msra.mxu0 0.0
    %1857 = vmatprep.subr.mxu0 0.0
    %1858 = vmatpush1.msra.mxu0 0.0
    %1859 = vmatprep.subr.mxu0 0.0
    %1860 = vmatpush1.msra.mxu0 0.0
    %1861 = vmatprep.subr.mxu0 0.0
    %1862 = vmatpush1.msra.mxu0 0.0
    %1863 = vmatprep.subr.mxu0 0.0
    %1864 = vmatpush1.msra.mxu0 0.0
    %1865 = vmatprep.subr.mxu0 0.0
    %1866 = vmatpush1.msra.mxu0 0.0
    %1867 = vmatprep.subr.mxu0 0.0
    %1868 = vmatpush1.msra.mxu0 0.0
    %1869 = vmatprep.subr.mxu0 0.0
    %1870 = vmatpush1.msra.mxu0 0.0
    %1871 = vmatprep.subr.mxu0 0.0
    %1872 = vmatpush1.msra.mxu0 0.0
    %1873 = vmatprep.subr.mxu0 0.0
    %1874 = vmatpush1.msra.mxu0 0.0
    %1875 = vmatprep.subr.mxu0 0.0
    %1876 = vmatpush1.msra.mxu0 0.0
    %1877 = vmatprep.subr.mxu0 0.0
    %1878 = vmatpush1.msra.mxu0 0.0
    %1879 = vmatprep.subr.mxu0 0.0
    %1880 = vmatpush1.msra.mxu0 0.0
    %1881 = vmatprep.subr.mxu0 0.0
    %1882 = vmatpush1.msra.mxu0 0.0
    %1883 = vmatprep.subr.mxu0 0.0
    %1884 = vmatpush1.msra.mxu0 0.0
    %1885 = vmatprep.subr.mxu0 0.0
    %1886 = vmatpush1.msra.mxu0 0.0
    %1887 = vmatprep.subr.mxu0 0.0
    %1888 = vmatpush1.msra.mxu0 0.0
    %1889 = vmatprep.subr.mxu0 0.0
    %1890 = vmatpush1.msra.mxu0 0.0
    %1891 = vmatprep.subr.mxu0 0.0
    %1892 = vmatpush1.msra.mxu0 0.0
    %1893 = vmatprep.subr.mxu0 0.0
    %1894 = vmatpush1.msra.mxu0 0.0
    %1895 = vmatprep.subr.mxu0 0.0
    %1896 = vmatpush1.msra.mxu0 0.0
    %1897 = vmatprep.subr.mxu0 0.0
    %1898 = vmatpush1.msra.mxu0 0.0
    %1899 = vmatprep.mubr.f32.mxu0 0.0
    %1900 = vmatmul.mubr.f32.gmra.mrb[0].mxu0 %v1734
    %v1901 = vpop.f32.mrb[0].mxu0
    %v1902 = vadd.f32 0.0, %v1901
    %v1903 = vpop.f32.mrb[0].mxu0
    %1904 = vmatprep.mubr.f32.mxu0 0.0
    %1905 = vmatmul.mubr.f32.gmra.mrb[0].mxu0 %v1737
    %v1906 = vpop.f32.mrb[0].mxu0
    %v1907 = vadd.f32 0.0, %v1906
    %v1908 = vpop.f32.mrb[0].mxu0
    %1909 = vmatprep.mubr.f32.mxu0 0.0
    %1910 = vmatmul.mubr.f32.gmra.mrb[0].mxu0 %v1740
    %v1911 = vpop.f32.mrb[0].mxu0
    %v1912 = vadd.f32 0.0, %v1911
    %v1913 = vpop.f32.mrb[0].mxu0
    %1914 = vmatprep.mubr.f32.mxu0 0.0
    %1915 = vmatmul.mubr.f32.gmra.mrb[0].mxu0 %v1743
    %v1916 = vpop.f32.mrb[0].mxu0
    %v1917 = vadd.f32 0.0, %v1916
    %v1918 = vpop.f32.mrb[0].mxu0
    %1919 = vdwg.mxu0
    %s1920 = scalar_lea.vmem [#allocation10], 16
    %v1921 = vld [vmem:[%s1920] sm:$0xff]
    %v1922 = vld [vmem:[%s1920 + $0x8] sm:$0xf]
    %vm1923 = vcmask 228352
    %v1925 = vsel %vm1923, %v1921, 0
    %v1928 = vsel %vm1923, %v1922, 0
    %v1931 = vsel %vm1290, %v1917, 0
    %1933 = vmatprep.subr.mxu0 0.0
    %1934 = vmatpush1.msra.mxu0 %v1902
    %1935 = vmatprep.subr.mxu0 0.0
    %1936 = vmatpush1.msra.mxu0 %v1907
    %1937 = vmatprep.subr.mxu0 0.0
    %1938 = vmatpush1.msra.mxu0 %v1912
    %1939 = vmatprep.subr.mxu0 0.0
    %1940 = vmatpush1.msra.mxu0 %v1931
    %1941 = vmatprep.subr.mxu0 0.0
    %1942 = vmatpush1.msra.mxu0 0.0
    %1943 = vmatprep.subr.mxu0 0.0
    %1944 = vmatpush1.msra.mxu0 0.0
    %1945 = vmatprep.subr.mxu0 0.0
    %1946 = vmatpush1.msra.mxu0 0.0
    %1947 = vmatprep.subr.mxu0 0.0
    %1948 = vmatpush1.msra.mxu0 0.0
    %1949 = vmatprep.subr.mxu0 0.0
    %1950 = vmatpush1.msra.mxu0 0.0
    %1951 = vmatprep.subr.mxu0 0.0
    %1952 = vmatpush1.msra.mxu0 0.0
    %1953 = vmatprep.subr.mxu0 0.0
    %1954 = vmatpush1.msra.mxu0 0.0
    %1955 = vmatprep.subr.mxu0 0.0
    %1956 = vmatpush1.msra.mxu0 0.0
    %1957 = vmatprep.subr.mxu0 0.0
    %1958 = vmatpush1.msra.mxu0 0.0
    %1959 = vmatprep.subr.mxu0 0.0
    %1960 = vmatpush1.msra.mxu0 0.0
    %1961 = vmatprep.subr.mxu0 0.0
    %1962 = vmatpush1.msra.mxu0 0.0
    %1963 = vmatprep.subr.mxu0 0.0
    %1964 = vmatpush1.msra.mxu0 0.0
    %1965 = vmatprep.subr.mxu0 0.0
    %1966 = vmatpush1.msra.mxu0 0.0
    %1967 = vmatprep.subr.mxu0 0.0
    %1968 = vmatpush1.msra.mxu0 0.0
    %1969 = vmatprep.subr.mxu0 0.0
    %1970 = vmatpush1.msra.mxu0 0.0
    %1971 = vmatprep.subr.mxu0 0.0
    %1972 = vmatpush1.msra.mxu0 0.0
    %1973 = vmatprep.subr.mxu0 0.0
    %1974 = vmatpush1.msra.mxu0 0.0
    %1975 = vmatprep.subr.mxu0 0.0
    %1976 = vmatpush1.msra.mxu0 0.0
    %1977 = vmatprep.subr.mxu0 0.0
    %1978 = vmatpush1.msra.mxu0 0.0
    %1979 = vmatprep.subr.mxu0 0.0
    %1980 = vmatpush1.msra.mxu0 0.0
    %1981 = vmatprep.subr.mxu0 0.0
    %1982 = vmatpush1.msra.mxu0 0.0
    %1983 = vmatprep.subr.mxu0 0.0
    %1984 = vmatpush1.msra.mxu0 0.0
    %1985 = vmatprep.subr.mxu0 0.0
    %1986 = vmatpush1.msra.mxu0 0.0
    %1987 = vmatprep.subr.mxu0 0.0
    %1988 = vmatpush1.msra.mxu0 0.0
    %1989 = vmatprep.subr.mxu0 0.0
    %1990 = vmatpush1.msra.mxu0 0.0
    %1991 = vmatprep.subr.mxu0 0.0
    %1992 = vmatpush1.msra.mxu0 0.0
    %1993 = vmatprep.subr.mxu0 0.0
    %1994 = vmatpush1.msra.mxu0 0.0
    %1995 = vmatprep.subr.mxu0 0.0
    %1996 = vmatpush1.msra.mxu0 0.0
    %1997 = vmatprep.mubr.f32.mxu0 0.0
    %1998 = vmatmul.mubr.f32.gmra.mrb[0].mxu0 %v1925
    %v1999 = vpop.f32.mrb[0].mxu0
    %v2000 = vadd.f32 0.0, %v1999
    %v2001 = vpop.f32.mrb[0].mxu0
    %2002 = vmatprep.mubr.f32.mxu0 0.0
    %2003 = vmatmul.mubr.f32.gmra.mrb[0].mxu0 %v1928
    %v2004 = vpop.f32.mrb[0].mxu0
    %v2005 = vadd.f32 0.0, %v2004
    %v2006 = vpop.f32.mrb[0].mxu0
    %2007 = vdwg.mxu0
    %v2009 = vsel %vm1923, %v1830, 0
    %v2012 = vsel %vm1923, %v1831, 0
    %v2015 = vsel %vm1290, %v1827, 0
    %2017 = vmatprep.subr.mxu0 0.0
    %2018 = vmatpush1.msra.mxu0 %v1812
    %2019 = vmatprep.subr.mxu0 0.0
    %2020 = vmatpush1.msra.mxu0 %v1817
    %2021 = vmatprep.subr.mxu0 0.0
    %2022 = vmatpush1.msra.mxu0 %v1822
    %2023 = vmatprep.subr.mxu0 0.0
    %2024 = vmatpush1.msra.mxu0 %v2015
    %2025 = vmatprep.subr.mxu0 0.0
    %2026 = vmatpush1.msra.mxu0 0.0
    %2027 = vmatprep.subr.mxu0 0.0
    %2028 = vmatpush1.msra.mxu0 0.0
    %2029 = vmatprep.subr.mxu0 0.0
    %2030 = vmatpush1.msra.mxu0 0.0
    %2031 = vmatprep.subr.mxu0 0.0
    %2032 = vmatpush1.msra.mxu0 0.0
    %2033 = vmatprep.subr.mxu0 0.0
    %2034 = vmatpush1.msra.mxu0 0.0
    %2035 = vmatprep.subr.mxu0 0.0
    %2036 = vmatpush1.msra.mxu0 0.0
    %2037 = vmatprep.subr.mxu0 0.0
    %2038 = vmatpush1.msra.mxu0 0.0
    %2039 = vmatprep.subr.mxu0 0.0
    %2040 = vmatpush1.msra.mxu0 0.0
    %2041 = vmatprep.subr.mxu0 0.0
    %2042 = vmatpush1.msra.mxu0 0.0
    %2043 = vmatprep.subr.mxu0 0.0
    %2044 = vmatpush1.msra.mxu0 0.0
    %2045 = vmatprep.subr.mxu0 0.0
    %2046 = vmatpush1.msra.mxu0 0.0
    %2047 = vmatprep.subr.mxu0 0.0
    %2048 = vmatpush1.msra.mxu0 0.0
    %2049 = vmatprep.subr.mxu0 0.0
    %2050 = vmatpush1.msra.mxu0 0.0
    %2051 = vmatprep.subr.mxu0 0.0
    %2052 = vmatpush1.msra.mxu0 0.0
    %2053 = vmatprep.subr.mxu0 0.0
    %2054 = vmatpush1.msra.mxu0 0.0
    %2055 = vmatprep.subr.mxu0 0.0
    %2056 = vmatpush1.msra.mxu0 0.0
    %2057 = vmatprep.subr.mxu0 0.0
    %2058 = vmatpush1.msra.mxu0 0.0
    %2059 = vmatprep.subr.mxu0 0.0
    %2060 = vmatpush1.msra.mxu0 0.0
    %2061 = vmatprep.subr.mxu0 0.0
    %2062 = vmatpush1.msra.mxu0 0.0
    %2063 = vmatprep.subr.mxu0 0.0
    %2064 = vmatpush1.msra.mxu0 0.0
    %2065 = vmatprep.subr.mxu0 0.0
    %2066 = vmatpush1.msra.mxu0 0.0
    %2067 = vmatprep.subr.mxu0 0.0
    %2068 = vmatpush1.msra.mxu0 0.0
    %2069 = vmatprep.subr.mxu0 0.0
    %2070 = vmatpush1.msra.mxu0 0.0
    %2071 = vmatprep.subr.mxu0 0.0
    %2072 = vmatpush1.msra.mxu0 0.0
    %2073 = vmatprep.subr.mxu0 0.0
    %2074 = vmatpush1.msra.mxu0 0.0
    %2075 = vmatprep.subr.mxu0 0.0
    %2076 = vmatpush1.msra.mxu0 0.0
    %2077 = vmatprep.subr.mxu0 0.0
    %2078 = vmatpush1.msra.mxu0 0.0
    %2079 = vmatprep.subr.mxu0 0.0
    %2080 = vmatpush1.msra.mxu0 0.0
    %2081 = vmatprep.mubr.f32.mxu0 0.0
    %2082 = vmatmul.mubr.f32.gmra.mrb[0].mxu0 %v2009
    %v2083 = vpop.f32.mrb[0].mxu0
    %v2084 = vadd.f32 %v2000, %v2083
    %v2085 = vpop.f32.mrb[0].mxu0
    %2086 = vmatprep.mubr.f32.mxu0 0.0
    %2087 = vmatmul.mubr.f32.gmra.mrb[0].mxu0 %v2012
    %v2088 = vpop.f32.mrb[0].mxu0
    %v2089 = vadd.f32 %v2005, %v2088
    %v2090 = vpop.f32.mrb[0].mxu0
    %2091 = vdwg.mxu0
    %s2092 = scalar_lea.vmem %s8, 32
    %v2093 = vld [vmem:[%s2092] sm:$0xff]
    %v2094 = vld [vmem:[%s2092 + $0x8] sm:$0xff]
    %2095 = vmatprep.subr.mxu0 0.0
    %2096 = vmatpush1.msra.mxu0 %v2093
    %2097 = vmatprep.subr.mxu0 0.0
    %2098 = vmatpush1.msra.mxu0 %v2094
    %2099 = vmatprep.subr.mxu0 0.0
    %2100 = vmatpush1.msra.mxu0 0.0
    %2101 = vmatprep.subr.mxu0 0.0
    %2102 = vmatpush1.msra.mxu0 0.0
    %2103 = vmatprep.subr.mxu0 0.0
    %2104 = vmatpush1.msra.mxu0 0.0
    %2105 = vmatprep.subr.mxu0 0.0
    %2106 = vmatpush1.msra.mxu0 0.0
    %2107 = vmatprep.subr.mxu0 0.0
    %2108 = vmatpush1.msra.mxu0 0.0
    %2109 = vmatprep.subr.mxu0 0.0
    %2110 = vmatpush1.msra.mxu0 0.0
    %2111 = vmatprep.subr.mxu0 0.0
    %2112 = vmatpush1.msra.mxu0 0.0
    %2113 = vmatprep.subr.mxu0 0.0
    %2114 = vmatpush1.msra.mxu0 0.0
    %2115 = vmatprep.subr.mxu0 0.0
    %2116 = vmatpush1.msra.mxu0 0.0
    %2117 = vmatprep.subr.mxu0 0.0
    %2118 = vmatpush1.msra.mxu0 0.0
    %2119 = vmatprep.subr.mxu0 0.0
    %2120 = vmatpush1.msra.mxu0 0.0
    %2121 = vmatprep.subr.mxu0 0.0
    %2122 = vmatpush1.msra.mxu0 0.0
    %2123 = vmatprep.subr.mxu0 0.0
    %2124 = vmatpush1.msra.mxu0 0.0
    %2125 = vmatprep.subr.mxu0 0.0
    %2126 = vmatpush1.msra.mxu0 0.0
    %2127 = vmatprep.subr.mxu0 0.0
    %2128 = vmatpush1.msra.mxu0 0.0
    %2129 = vmatprep.subr.mxu0 0.0
    %2130 = vmatpush1.msra.mxu0 0.0
    %2131 = vmatprep.subr.mxu0 0.0
    %2132 = vmatpush1.msra.mxu0 0.0
    %2133 = vmatprep.subr.mxu0 0.0
    %2134 = vmatpush1.msra.mxu0 0.0
    %2135 = vmatprep.subr.mxu0 0.0
    %2136 = vmatpush1.msra.mxu0 0.0
    %2137 = vmatprep.subr.mxu0 0.0
    %2138 = vmatpush1.msra.mxu0 0.0
    %2139 = vmatprep.subr.mxu0 0.0
    %2140 = vmatpush1.msra.mxu0 0.0
    %2141 = vmatprep.subr.mxu0 0.0
    %2142 = vmatpush1.msra.mxu0 0.0
    %2143 = vmatprep.subr.mxu0 0.0
    %2144 = vmatpush1.msra.mxu0 0.0
    %2145 = vmatprep.subr.mxu0 0.0
    %2146 = vmatpush1.msra.mxu0 0.0
    %2147 = vmatprep.subr.mxu0 0.0
    %2148 = vmatpush1.msra.mxu0 0.0
    %2149 = vmatprep.subr.mxu0 0.0
    %2150 = vmatpush1.msra.mxu0 0.0
    %2151 = vmatprep.subr.mxu0 0.0
    %2152 = vmatpush1.msra.mxu0 0.0
    %2153 = vmatprep.subr.mxu0 0.0
    %2154 = vmatpush1.msra.mxu0 0.0
    %2155 = vmatprep.subr.mxu0 0.0
    %2156 = vmatpush1.msra.mxu0 0.0
    %2157 = vmatprep.subr.mxu0 0.0
    %2158 = vmatpush1.msra.mxu0 0.0
    %2159 = vmatprep.mubr.f32.mxu0 0.0
    %2160 = vmatmul.mubr.f32.gmra.mrb[0].mxu0 %v1734
    %v2161 = vpop.f32.mrb[0].mxu0
    %v2162 = vadd.f32 0.0, %v2161
    %v2163 = vpop.f32.mrb[0].mxu0
    %2164 = vmatprep.mubr.f32.mxu0 0.0
    %2165 = vmatmul.mubr.f32.gmra.mrb[0].mxu0 %v1737
    %v2166 = vpop.f32.mrb[0].mxu0
    %v2167 = vadd.f32 0.0, %v2166
    %v2168 = vpop.f32.mrb[0].mxu0
    %2169 = vmatprep.mubr.f32.mxu0 0.0
    %2170 = vmatmul.mubr.f32.gmra.mrb[0].mxu0 %v1740
    %v2171 = vpop.f32.mrb[0].mxu0
    %v2172 = vadd.f32 0.0, %v2171
    %v2173 = vpop.f32.mrb[0].mxu0
    %2174 = vmatprep.mubr.f32.mxu0 0.0
    %2175 = vmatmul.mubr.f32.gmra.mrb[0].mxu0 %v1743
    %v2176 = vpop.f32.mrb[0].mxu0
    %v2177 = vadd.f32 0.0, %v2176
    %v2178 = vpop.f32.mrb[0].mxu0
    %2179 = vdwg.mxu0
    %s2180 = scalar_lea.vmem [#allocation10], 32
    %v2181 = vld [vmem:[%s2180] sm:$0xff]
    %v2182 = vld [vmem:[%s2180 + $0x8] sm:$0xf]
    %v2184 = vsel %vm1923, %v2181, 0
    %v2187 = vsel %vm1923, %v2182, 0
    %v2190 = vsel %vm1290, %v2177, 0
    %2192 = vmatprep.subr.mxu0 0.0
    %2193 = vmatpush1.msra.mxu0 %v2162
    %2194 = vmatprep.subr.mxu0 0.0
    %2195 = vmatpush1.msra.mxu0 %v2167
    %2196 = vmatprep.subr.mxu0 0.0
    %2197 = vmatpush1.msra.mxu0 %v2172
    %2198 = vmatprep.subr.mxu0 0.0
    %2199 = vmatpush1.msra.mxu0 %v2190
    %2200 = vmatprep.subr.mxu0 0.0
    %2201 = vmatpush1.msra.mxu0 0.0
    %2202 = vmatprep.subr.mxu0 0.0
    %2203 = vmatpush1.msra.mxu0 0.0
    %2204 = vmatprep.subr.mxu0 0.0
    %2205 = vmatpush1.msra.mxu0 0.0
    %2206 = vmatprep.subr.mxu0 0.0
    %2207 = vmatpush1.msra.mxu0 0.0
    %2208 = vmatprep.subr.mxu0 0.0
    %2209 = vmatpush1.msra.mxu0 0.0
    %2210 = vmatprep.subr.mxu0 0.0
    %2211 = vmatpush1.msra.mxu0 0.0
    %2212 = vmatprep.subr.mxu0 0.0
    %2213 = vmatpush1.msra.mxu0 0.0
    %2214 = vmatprep.subr.mxu0 0.0
    %2215 = vmatpush1.msra.mxu0 0.0
    %2216 = vmatprep.subr.mxu0 0.0
    %2217 = vmatpush1.msra.mxu0 0.0
    %2218 = vmatprep.subr.mxu0 0.0
    %2219 = vmatpush1.msra.mxu0 0.0
    %2220 = vmatprep.subr.mxu0 0.0
    %2221 = vmatpush1.msra.mxu0 0.0
    %2222 = vmatprep.subr.mxu0 0.0
    %2223 = vmatpush1.msra.mxu0 0.0
    %2224 = vmatprep.subr.mxu0 0.0
    %2225 = vmatpush1.msra.mxu0 0.0
    %2226 = vmatprep.subr.mxu0 0.0
    %2227 = vmatpush1.msra.mxu0 0.0
    %2228 = vmatprep.subr.mxu0 0.0
    %2229 = vmatpush1.msra.mxu0 0.0
    %2230 = vmatprep.subr.mxu0 0.0
    %2231 = vmatpush1.msra.mxu0 0.0
    %2232 = vmatprep.subr.mxu0 0.0
    %2233 = vmatpush1.msra.mxu0 0.0
    %2234 = vmatprep.subr.mxu0 0.0
    %2235 = vmatpush1.msra.mxu0 0.0
    %2236 = vmatprep.subr.mxu0 0.0
    %2237 = vmatpush1.msra.mxu0 0.0
    %2238 = vmatprep.subr.mxu0 0.0
    %2239 = vmatpush1.msra.mxu0 0.0
    %2240 = vmatprep.subr.mxu0 0.0
    %2241 = vmatpush1.msra.mxu0 0.0
    %2242 = vmatprep.subr.mxu0 0.0
    %2243 = vmatpush1.msra.mxu0 0.0
    %2244 = vmatprep.subr.mxu0 0.0
    %2245 = vmatpush1.msra.mxu0 0.0
    %2246 = vmatprep.subr.mxu0 0.0
    %2247 = vmatpush1.msra.mxu0 0.0
    %2248 = vmatprep.subr.mxu0 0.0
    %2249 = vmatpush1.msra.mxu0 0.0
    %2250 = vmatprep.subr.mxu0 0.0
    %2251 = vmatpush1.msra.mxu0 0.0
    %2252 = vmatprep.subr.mxu0 0.0
    %2253 = vmatpush1.msra.mxu0 0.0
    %2254 = vmatprep.subr.mxu0 0.0
    %2255 = vmatpush1.msra.mxu0 0.0
    %2256 = vmatprep.mubr.f32.mxu0 0.0
    %2257 = vmatmul.mubr.f32.gmra.mrb[0].mxu0 %v2184
    %v2258 = vpop.f32.mrb[0].mxu0
    %v2259 = vadd.f32 0.0, %v2258
    %v2260 = vpop.f32.mrb[0].mxu0
    %2261 = vmatprep.mubr.f32.mxu0 0.0
    %2262 = vmatmul.mubr.f32.gmra.mrb[0].mxu0 %v2187
    %v2263 = vpop.f32.mrb[0].mxu0
    %v2264 = vadd.f32 0.0, %v2263
    %v2265 = vpop.f32.mrb[0].mxu0
    %2266 = vdwg.mxu0
    %v2267 = vadd.f32 %v2084, %v2259
    %v2268 = vadd.f32 %v2089, %v2264
    %v2269 = vld [vmem:[#allocation11] sm:$0x1]
    %v2271 = vlaneseq
    %v2272 = vshrl.u32 %v2271, 7
    %v2273 = vsub.s32 0, %v2272
    %v2274 = vrot.slane %v2269, %v2273
    %v2276 = vadd.f32 %v2267, %v2274
    %v2277 = vadd.f32 %v2268, %v2274
    %vm2278 = vcmp.gt.f32.partialorder %v2276, 0.0
    %vm2279 = vcmp.gt.f32.partialorder %v2277, 0.0
    %v2280 = vmin.f32 %v2276, 0.0
    %v2281 = vmin.f32 %v2277, 0.0
    %v2282 = vmul.f32 %v2280, 1.442695
    %v2283 = vpow.pop %v2282
    %v2284 = vmul.f32 %v2281, 1.442695
    %v2285 = vpow.pop %v2284
    %v2286 = vsub.f32 %v2283, 1.0
    %v2287 = vsub.f32 %v2285, 1.0
    %v2288 = vsel %vm2278, %v2276, %v2286
    %v2289 = vsel %vm2279, %v2277, %v2287
    %v2290 = vld [vmem:[#allocation14] sm:$0xff]
    %v2291 = vld [vmem:[#allocation14 + $0x8] sm:$0xff]
    %v2293 = vsel %vm198, %v2288, 0
    %v2296 = vsel %vm198, %v2289, 0
    %2298 = vmatprep.subr.mxu0 0.0
    %2299 = vmatpush1.msra.mxu0 %v2290
    %2300 = vmatprep.subr.mxu0 0.0
    %2301 = vmatpush1.msra.mxu0 %v2291
    %2302 = vmatprep.subr.mxu0 0.0
    %2303 = vmatpush1.msra.mxu0 0.0
    %2304 = vmatprep.subr.mxu0 0.0
    %2305 = vmatpush1.msra.mxu0 0.0
    %2306 = vmatprep.subr.mxu0 0.0
    %2307 = vmatpush1.msra.mxu0 0.0
    %2308 = vmatprep.subr.mxu0 0.0
    %2309 = vmatpush1.msra.mxu0 0.0
    %2310 = vmatprep.subr.mxu0 0.0
    %2311 = vmatpush1.msra.mxu0 0.0
    %2312 = vmatprep.subr.mxu0 0.0
    %2313 = vmatpush1.msra.mxu0 0.0
    %2314 = vmatprep.subr.mxu0 0.0
    %2315 = vmatpush1.msra.mxu0 0.0
    %2316 = vmatprep.subr.mxu0 0.0
    %2317 = vmatpush1.msra.mxu0 0.0
    %2318 = vmatprep.subr.mxu0 0.0
    %2319 = vmatpush1.msra.mxu0 0.0
    %2320 = vmatprep.subr.mxu0 0.0
    %2321 = vmatpush1.msra.mxu0 0.0
    %2322 = vmatprep.subr.mxu0 0.0
    %2323 = vmatpush1.msra.mxu0 0.0
    %2324 = vmatprep.subr.mxu0 0.0
    %2325 = vmatpush1.msra.mxu0 0.0
    %2326 = vmatprep.subr.mxu0 0.0
    %2327 = vmatpush1.msra.mxu0 0.0
    %2328 = vmatprep.subr.mxu0 0.0
    %2329 = vmatpush1.msra.mxu0 0.0
    %2330 = vmatprep.subr.mxu0 0.0
    %2331 = vmatpush1.msra.mxu0 0.0
    %2332 = vmatprep.subr.mxu0 0.0
    %2333 = vmatpush1.msra.mxu0 0.0
    %2334 = vmatprep.subr.mxu0 0.0
    %2335 = vmatpush1.msra.mxu0 0.0
    %2336 = vmatprep.subr.mxu0 0.0
    %2337 = vmatpush1.msra.mxu0 0.0
    %2338 = vmatprep.subr.mxu0 0.0
    %2339 = vmatpush1.msra.mxu0 0.0
    %2340 = vmatprep.subr.mxu0 0.0
    %2341 = vmatpush1.msra.mxu0 0.0
    %2342 = vmatprep.subr.mxu0 0.0
    %2343 = vmatpush1.msra.mxu0 0.0
    %2344 = vmatprep.subr.mxu0 0.0
    %2345 = vmatpush1.msra.mxu0 0.0
    %2346 = vmatprep.subr.mxu0 0.0
    %2347 = vmatpush1.msra.mxu0 0.0
    %2348 = vmatprep.subr.mxu0 0.0
    %2349 = vmatpush1.msra.mxu0 0.0
    %2350 = vmatprep.subr.mxu0 0.0
    %2351 = vmatpush1.msra.mxu0 0.0
    %2352 = vmatprep.subr.mxu0 0.0
    %2353 = vmatpush1.msra.mxu0 0.0
    %2354 = vmatprep.subr.mxu0 0.0
    %2355 = vmatpush1.msra.mxu0 0.0
    %2356 = vmatprep.subr.mxu0 0.0
    %2357 = vmatpush1.msra.mxu0 0.0
    %2358 = vmatprep.subr.mxu0 0.0
    %2359 = vmatpush1.msra.mxu0 0.0
    %2360 = vmatprep.subr.mxu0 0.0
    %2361 = vmatpush1.msra.mxu0 0.0
    %2362 = vmatprep.mubr.f32.mxu0 0.0
    %2363 = vmatmul.mubr.f32.gmra.mrb[0].mxu0 %v2293
    %v2364 = vpop.f32.mrb[0].mxu0
    %v2365 = vadd.f32 0.0, %v2364
    %v2366 = vpop.f32.mrb[0].mxu0
    %2367 = vmatprep.mubr.f32.mxu0 0.0
    %2368 = vmatmul.mubr.f32.gmra.mrb[0].mxu0 %v2296
    %v2369 = vpop.f32.mrb[0].mxu0
    %v2370 = vadd.f32 0.0, %v2369
    %v2371 = vpop.f32.mrb[0].mxu0
    %2372 = vdwg.mxu0
    %v2373 = vld [vmem:[#allocation13] sm:$0xff]
    %s2374 = scalar_lea.vmem [#allocation14], 16
    %v2375 = vld [vmem:[%s2374] sm:$0xff]
    %v2376 = vld [vmem:[%s2374 + $0x8] sm:$0xff]
    %2377 = vmatprep.subr.mxu0 0.0
    %2378 = vmatpush1.msra.mxu0 %v2375
    %2379 = vmatprep.subr.mxu0 0.0
    %2380 = vmatpush1.msra.mxu0 %v2376
    %2381 = vmatprep.subr.mxu0 0.0
    %2382 = vmatpush1.msra.mxu0 0.0
    %2383 = vmatprep.subr.mxu0 0.0
    %2384 = vmatpush1.msra.mxu0 0.0
    %2385 = vmatprep.subr.mxu0 0.0
    %2386 = vmatpush1.msra.mxu0 0.0
    %2387 = vmatprep.subr.mxu0 0.0
    %2388 = vmatpush1.msra.mxu0 0.0
    %2389 = vmatprep.subr.mxu0 0.0
    %2390 = vmatpush1.msra.mxu0 0.0
    %2391 = vmatprep.subr.mxu0 0.0
    %2392 = vmatpush1.msra.mxu0 0.0
    %2393 = vmatprep.subr.mxu0 0.0
    %2394 = vmatpush1.msra.mxu0 0.0
    %2395 = vmatprep.subr.mxu0 0.0
    %2396 = vmatpush1.msra.mxu0 0.0
    %2397 = vmatprep.subr.mxu0 0.0
    %2398 = vmatpush1.msra.mxu0 0.0
    %2399 = vmatprep.subr.mxu0 0.0
    %2400 = vmatpush1.msra.mxu0 0.0
    %2401 = vmatprep.subr.mxu0 0.0
    %2402 = vmatpush1.msra.mxu0 0.0
    %2403 = vmatprep.subr.mxu0 0.0
    %2404 = vmatpush1.msra.mxu0 0.0
    %2405 = vmatprep.subr.mxu0 0.0
    %2406 = vmatpush1.msra.mxu0 0.0
    %2407 = vmatprep.subr.mxu0 0.0
    %2408 = vmatpush1.msra.mxu0 0.0
    %2409 = vmatprep.subr.mxu0 0.0
    %2410 = vmatpush1.msra.mxu0 0.0
    %2411 = vmatprep.subr.mxu0 0.0
    %2412 = vmatpush1.msra.mxu0 0.0
    %2413 = vmatprep.subr.mxu0 0.0
    %2414 = vmatpush1.msra.mxu0 0.0
    %2415 = vmatprep.subr.mxu0 0.0
    %2416 = vmatpush1.msra.mxu0 0.0
    %2417 = vmatprep.subr.mxu0 0.0
    %2418 = vmatpush1.msra.mxu0 0.0
    %2419 = vmatprep.subr.mxu0 0.0
    %2420 = vmatpush1.msra.mxu0 0.0
    %2421 = vmatprep.subr.mxu0 0.0
    %2422 = vmatpush1.msra.mxu0 0.0
    %2423 = vmatprep.subr.mxu0 0.0
    %2424 = vmatpush1.msra.mxu0 0.0
    %2425 = vmatprep.subr.mxu0 0.0
    %2426 = vmatpush1.msra.mxu0 0.0
    %2427 = vmatprep.subr.mxu0 0.0
    %2428 = vmatpush1.msra.mxu0 0.0
    %2429 = vmatprep.subr.mxu0 0.0
    %2430 = vmatpush1.msra.mxu0 0.0
    %2431 = vmatprep.subr.mxu0 0.0
    %2432 = vmatpush1.msra.mxu0 0.0
    %2433 = vmatprep.subr.mxu0 0.0
    %2434 = vmatpush1.msra.mxu0 0.0
    %2435 = vmatprep.subr.mxu0 0.0
    %2436 = vmatpush1.msra.mxu0 0.0
    %2437 = vmatprep.subr.mxu0 0.0
    %2438 = vmatpush1.msra.mxu0 0.0
    %2439 = vmatprep.subr.mxu0 0.0
    %2440 = vmatpush1.msra.mxu0 0.0
    %2441 = vmatprep.mubr.f32.mxu0 0.0
    %2442 = vmatmul.mubr.f32.gmra.mrb[0].mxu0 %v2293
    %v2443 = vpop.f32.mrb[0].mxu0
    %v2444 = vadd.f32 0.0, %v2443
    %v2445 = vpop.f32.mrb[0].mxu0
    %2446 = vmatprep.mubr.f32.mxu0 0.0
    %2447 = vmatmul.mubr.f32.gmra.mrb[0].mxu0 %v2296
    %v2448 = vpop.f32.mrb[0].mxu0
    %v2449 = vadd.f32 0.0, %v2448
    %v2450 = vpop.f32.mrb[0].mxu0
    %2451 = vdwg.mxu0
    %s2452 = scalar_lea.vmem [#allocation13], 8
    %v2453 = vld [vmem:[%s2452] sm:$0xff]
    %vm2454 = vcmask 97280
    %v2456 = vsel %vm2454, %v2453, 0
    %v2459 = vsel %vm1290, %v2449, 0
    %2461 = vmatprep.subr.mxu0 0.0
    %2462 = vmatpush1.msra.mxu0 %v2444
    %2463 = vmatprep.subr.mxu0 0.0
    %2464 = vmatpush1.msra.mxu0 %v2459
    %2465 = vmatprep.subr.mxu0 0.0
    %2466 = vmatpush1.msra.mxu0 0.0
    %2467 = vmatprep.subr.mxu0 0.0
    %2468 = vmatpush1.msra.mxu0 0.0
    %2469 = vmatprep.subr.mxu0 0.0
    %2470 = vmatpush1.msra.mxu0 0.0
    %2471 = vmatprep.subr.mxu0 0.0
    %2472 = vmatpush1.msra.mxu0 0.0
    %2473 = vmatprep.subr.mxu0 0.0
    %2474 = vmatpush1.msra.mxu0 0.0
    %2475 = vmatprep.subr.mxu0 0.0
    %2476 = vmatpush1.msra.mxu0 0.0
    %2477 = vmatprep.subr.mxu0 0.0
    %2478 = vmatpush1.msra.mxu0 0.0
    %2479 = vmatprep.subr.mxu0 0.0
    %2480 = vmatpush1.msra.mxu0 0.0
    %2481 = vmatprep.subr.mxu0 0.0
    %2482 = vmatpush1.msra.mxu0 0.0
    %2483 = vmatprep.subr.mxu0 0.0
    %2484 = vmatpush1.msra.mxu0 0.0
    %2485 = vmatprep.subr.mxu0 0.0
    %2486 = vmatpush1.msra.mxu0 0.0
    %2487 = vmatprep.subr.mxu0 0.0
    %2488 = vmatpush1.msra.mxu0 0.0
    %2489 = vmatprep.subr.mxu0 0.0
    %2490 = vmatpush1.msra.mxu0 0.0
    %2491 = vmatprep.subr.mxu0 0.0
    %2492 = vmatpush1.msra.mxu0 0.0
    %2493 = vmatprep.subr.mxu0 0.0
    %2494 = vmatpush1.msra.mxu0 0.0
    %2495 = vmatprep.subr.mxu0 0.0
    %2496 = vmatpush1.msra.mxu0 0.0
    %2497 = vmatprep.subr.mxu0 0.0
    %2498 = vmatpush1.msra.mxu0 0.0
    %2499 = vmatprep.subr.mxu0 0.0
    %2500 = vmatpush1.msra.mxu0 0.0
    %2501 = vmatprep.subr.mxu0 0.0
    %2502 = vmatpush1.msra.mxu0 0.0
    %2503 = vmatprep.subr.mxu0 0.0
    %2504 = vmatpush1.msra.mxu0 0.0
    %2505 = vmatprep.subr.mxu0 0.0
    %2506 = vmatpush1.msra.mxu0 0.0
    %2507 = vmatprep.subr.mxu0 0.0
    %2508 = vmatpush1.msra.mxu0 0.0
    %2509 = vmatprep.subr.mxu0 0.0
    %2510 = vmatpush1.msra.mxu0 0.0
    %2511 = vmatprep.subr.mxu0 0.0
    %2512 = vmatpush1.msra.mxu0 0.0
    %2513 = vmatprep.subr.mxu0 0.0
    %2514 = vmatpush1.msra.mxu0 0.0
    %2515 = vmatprep.subr.mxu0 0.0
    %2516 = vmatpush1.msra.mxu0 0.0
    %2517 = vmatprep.subr.mxu0 0.0
    %2518 = vmatpush1.msra.mxu0 0.0
    %2519 = vmatprep.subr.mxu0 0.0
    %2520 = vmatpush1.msra.mxu0 0.0
    %2521 = vmatprep.subr.mxu0 0.0
    %2522 = vmatpush1.msra.mxu0 0.0
    %2523 = vmatprep.subr.mxu0 0.0
    %2524 = vmatpush1.msra.mxu0 0.0
    %2525 = vmatprep.mubr.f32.mxu0 0.0
    %2526 = vmatmul.mubr.f32.gmra.mrb[0].mxu0 %v2456
    %v2527 = vpop.f32.mrb[0].mxu0
    %v2528 = vadd.f32 0.0, %v2527
    %v2529 = vpop.f32.mrb[0].mxu0
    %2530 = vdwg.mxu0
    %v2532 = vsel %vm2454, %v2373, 0
    %v2535 = vsel %vm1290, %v2370, 0
    %2537 = vmatprep.subr.mxu0 0.0
    %2538 = vmatpush1.msra.mxu0 %v2365
    %2539 = vmatprep.subr.mxu0 0.0
    %2540 = vmatpush1.msra.mxu0 %v2535
    %2541 = vmatprep.subr.mxu0 0.0
    %2542 = vmatpush1.msra.mxu0 0.0
    %2543 = vmatprep.subr.mxu0 0.0
    %2544 = vmatpush1.msra.mxu0 0.0
    %2545 = vmatprep.subr.mxu0 0.0
    %2546 = vmatpush1.msra.mxu0 0.0
    %2547 = vmatprep.subr.mxu0 0.0
    %2548 = vmatpush1.msra.mxu0 0.0
    %2549 = vmatprep.subr.mxu0 0.0
    %2550 = vmatpush1.msra.mxu0 0.0
    %2551 = vmatprep.subr.mxu0 0.0
    %2552 = vmatpush1.msra.mxu0 0.0
    %2553 = vmatprep.subr.mxu0 0.0
    %2554 = vmatpush1.msra.mxu0 0.0
    %2555 = vmatprep.subr.mxu0 0.0
    %2556 = vmatpush1.msra.mxu0 0.0
    %2557 = vmatprep.subr.mxu0 0.0
    %2558 = vmatpush1.msra.mxu0 0.0
    %2559 = vmatprep.subr.mxu0 0.0
    %2560 = vmatpush1.msra.mxu0 0.0
    %2561 = vmatprep.subr.mxu0 0.0
    %2562 = vmatpush1.msra.mxu0 0.0
    %2563 = vmatprep.subr.mxu0 0.0
    %2564 = vmatpush1.msra.mxu0 0.0
    %2565 = vmatprep.subr.mxu0 0.0
    %2566 = vmatpush1.msra.mxu0 0.0
    %2567 = vmatprep.subr.mxu0 0.0
    %2568 = vmatpush1.msra.mxu0 0.0
    %2569 = vmatprep.subr.mxu0 0.0
    %2570 = vmatpush1.msra.mxu0 0.0
    %2571 = vmatprep.subr.mxu0 0.0
    %2572 = vmatpush1.msra.mxu0 0.0
    %2573 = vmatprep.subr.mxu0 0.0
    %2574 = vmatpush1.msra.mxu0 0.0
    %2575 = vmatprep.subr.mxu0 0.0
    %2576 = vmatpush1.msra.mxu0 0.0
    %2577 = vmatprep.subr.mxu0 0.0
    %2578 = vmatpush1.msra.mxu0 0.0
    %2579 = vmatprep.subr.mxu0 0.0
    %2580 = vmatpush1.msra.mxu0 0.0
    %2581 = vmatprep.subr.mxu0 0.0
    %2582 = vmatpush1.msra.mxu0 0.0
    %2583 = vmatprep.subr.mxu0 0.0
    %2584 = vmatpush1.msra.mxu0 0.0
    %2585 = vmatprep.subr.mxu0 0.0
    %2586 = vmatpush1.msra.mxu0 0.0
    %2587 = vmatprep.subr.mxu0 0.0
    %2588 = vmatpush1.msra.mxu0 0.0
    %2589 = vmatprep.subr.mxu0 0.0
    %2590 = vmatpush1.msra.mxu0 0.0
    %2591 = vmatprep.subr.mxu0 0.0
    %2592 = vmatpush1.msra.mxu0 0.0
    %2593 = vmatprep.subr.mxu0 0.0
    %2594 = vmatpush1.msra.mxu0 0.0
    %2595 = vmatprep.subr.mxu0 0.0
    %2596 = vmatpush1.msra.mxu0 0.0
    %2597 = vmatprep.subr.mxu0 0.0
    %2598 = vmatpush1.msra.mxu0 0.0
    %2599 = vmatprep.subr.mxu0 0.0
    %2600 = vmatpush1.msra.mxu0 0.0
    %2601 = vmatprep.mubr.f32.mxu0 0.0
    %2602 = vmatmul.mubr.f32.gmra.mrb[0].mxu0 %v2532
    %v2603 = vpop.f32.mrb[0].mxu0
    %v2604 = vadd.f32 %v2528, %v2603
    %v2605 = vpop.f32.mrb[0].mxu0
    %2606 = vdwg.mxu0
    %s2607 = scalar_lea.vmem [#allocation14], 32
    %v2608 = vld [vmem:[%s2607] sm:$0xff]
    %v2609 = vld [vmem:[%s2607 + $0x8] sm:$0xff]
    %2610 = vmatprep.subr.mxu0 0.0
    %2611 = vmatpush1.msra.mxu0 %v2608
    %2612 = vmatprep.subr.mxu0 0.0
    %2613 = vmatpush1.msra.mxu0 %v2609
    %2614 = vmatprep.subr.mxu0 0.0
    %2615 = vmatpush1.msra.mxu0 0.0
    %2616 = vmatprep.subr.mxu0 0.0
    %2617 = vmatpush1.msra.mxu0 0.0
    %2618 = vmatprep.subr.mxu0 0.0
    %2619 = vmatpush1.msra.mxu0 0.0
    %2620 = vmatprep.subr.mxu0 0.0
    %2621 = vmatpush1.msra.mxu0 0.0
    %2622 = vmatprep.subr.mxu0 0.0
    %2623 = vmatpush1.msra.mxu0 0.0
    %2624 = vmatprep.subr.mxu0 0.0
    %2625 = vmatpush1.msra.mxu0 0.0
    %2626 = vmatprep.subr.mxu0 0.0
    %2627 = vmatpush1.msra.mxu0 0.0
    %2628 = vmatprep.subr.mxu0 0.0
    %2629 = vmatpush1.msra.mxu0 0.0
    %2630 = vmatprep.subr.mxu0 0.0
    %2631 = vmatpush1.msra.mxu0 0.0
    %2632 = vmatprep.subr.mxu0 0.0
    %2633 = vmatpush1.msra.mxu0 0.0
    %2634 = vmatprep.subr.mxu0 0.0
    %2635 = vmatpush1.msra.mxu0 0.0
    %2636 = vmatprep.subr.mxu0 0.0
    %2637 = vmatpush1.msra.mxu0 0.0
    %2638 = vmatprep.subr.mxu0 0.0
    %2639 = vmatpush1.msra.mxu0 0.0
    %2640 = vmatprep.subr.mxu0 0.0
    %2641 = vmatpush1.msra.mxu0 0.0
    %2642 = vmatprep.subr.mxu0 0.0
    %2643 = vmatpush1.msra.mxu0 0.0
    %2644 = vmatprep.subr.mxu0 0.0
    %2645 = vmatpush1.msra.mxu0 0.0
    %2646 = vmatprep.subr.mxu0 0.0
    %2647 = vmatpush1.msra.mxu0 0.0
    %2648 = vmatprep.subr.mxu0 0.0
    %2649 = vmatpush1.msra.mxu0 0.0
    %2650 = vmatprep.subr.mxu0 0.0
    %2651 = vmatpush1.msra.mxu0 0.0
    %2652 = vmatprep.subr.mxu0 0.0
    %2653 = vmatpush1.msra.mxu0 0.0
    %2654 = vmatprep.subr.mxu0 0.0
    %2655 = vmatpush1.msra.mxu0 0.0
    %2656 = vmatprep.subr.mxu0 0.0
    %2657 = vmatpush1.msra.mxu0 0.0
    %2658 = vmatprep.subr.mxu0 0.0
    %2659 = vmatpush1.msra.mxu0 0.0
    %2660 = vmatprep.subr.mxu0 0.0
    %2661 = vmatpush1.msra.mxu0 0.0
    %2662 = vmatprep.subr.mxu0 0.0
    %2663 = vmatpush1.msra.mxu0 0.0
    %2664 = vmatprep.subr.mxu0 0.0
    %2665 = vmatpush1.msra.mxu0 0.0
    %2666 = vmatprep.subr.mxu0 0.0
    %2667 = vmatpush1.msra.mxu0 0.0
    %2668 = vmatprep.subr.mxu0 0.0
    %2669 = vmatpush1.msra.mxu0 0.0
    %2670 = vmatprep.subr.mxu0 0.0
    %2671 = vmatpush1.msra.mxu0 0.0
    %2672 = vmatprep.subr.mxu0 0.0
    %2673 = vmatpush1.msra.mxu0 0.0
    %2674 = vmatprep.mubr.f32.mxu0 0.0
    %2675 = vmatmul.mubr.f32.gmra.mrb[0].mxu0 %v2293
    %v2676 = vpop.f32.mrb[0].mxu0
    %v2677 = vadd.f32 0.0, %v2676
    %v2678 = vpop.f32.mrb[0].mxu0
    %2679 = vmatprep.mubr.f32.mxu0 0.0
    %2680 = vmatmul.mubr.f32.gmra.mrb[0].mxu0 %v2296
    %v2681 = vpop.f32.mrb[0].mxu0
    %v2682 = vadd.f32 0.0, %v2681
    %v2683 = vpop.f32.mrb[0].mxu0
    %2684 = vdwg.mxu0
    %s2685 = scalar_lea.vmem [#allocation13], 16
    %v2686 = vld [vmem:[%s2685] sm:$0xff]
    %v2688 = vsel %vm2454, %v2686, 0
    %v2691 = vsel %vm1290, %v2682, 0
    %2693 = vmatprep.subr.mxu0 0.0
    %2694 = vmatpush1.msra.mxu0 %v2677
    %2695 = vmatprep.subr.mxu0 0.0
    %2696 = vmatpush1.msra.mxu0 %v2691
    %2697 = vmatprep.subr.mxu0 0.0
    %2698 = vmatpush1.msra.mxu0 0.0
    %2699 = vmatprep.subr.mxu0 0.0
    %2700 = vmatpush1.msra.mxu0 0.0
    %2701 = vmatprep.subr.mxu0 0.0
    %2702 = vmatpush1.msra.mxu0 0.0
    %2703 = vmatprep.subr.mxu0 0.0
    %2704 = vmatpush1.msra.mxu0 0.0
    %2705 = vmatprep.subr.mxu0 0.0
    %2706 = vmatpush1.msra.mxu0 0.0
    %2707 = vmatprep.subr.mxu0 0.0
    %2708 = vmatpush1.msra.mxu0 0.0
    %2709 = vmatprep.subr.mxu0 0.0
    %2710 = vmatpush1.msra.mxu0 0.0
    %2711 = vmatprep.subr.mxu0 0.0
    %2712 = vmatpush1.msra.mxu0 0.0
    %2713 = vmatprep.subr.mxu0 0.0
    %2714 = vmatpush1.msra.mxu0 0.0
    %2715 = vmatprep.subr.mxu0 0.0
    %2716 = vmatpush1.msra.mxu0 0.0
    %2717 = vmatprep.subr.mxu0 0.0
    %2718 = vmatpush1.msra.mxu0 0.0
    %2719 = vmatprep.subr.mxu0 0.0
    %2720 = vmatpush1.msra.mxu0 0.0
    %2721 = vmatprep.subr.mxu0 0.0
    %2722 = vmatpush1.msra.mxu0 0.0
    %2723 = vmatprep.subr.mxu0 0.0
    %2724 = vmatpush1.msra.mxu0 0.0
    %2725 = vmatprep.subr.mxu0 0.0
    %2726 = vmatpush1.msra.mxu0 0.0
    %2727 = vmatprep.subr.mxu0 0.0
    %2728 = vmatpush1.msra.mxu0 0.0
    %2729 = vmatprep.subr.mxu0 0.0
    %2730 = vmatpush1.msra.mxu0 0.0
    %2731 = vmatprep.subr.mxu0 0.0
    %2732 = vmatpush1.msra.mxu0 0.0
    %2733 = vmatprep.subr.mxu0 0.0
    %2734 = vmatpush1.msra.mxu0 0.0
    %2735 = vmatprep.subr.mxu0 0.0
    %2736 = vmatpush1.msra.mxu0 0.0
    %2737 = vmatprep.subr.mxu0 0.0
    %2738 = vmatpush1.msra.mxu0 0.0
    %2739 = vmatprep.subr.mxu0 0.0
    %2740 = vmatpush1.msra.mxu0 0.0
    %2741 = vmatprep.subr.mxu0 0.0
    %2742 = vmatpush1.msra.mxu0 0.0
    %2743 = vmatprep.subr.mxu0 0.0
    %2744 = vmatpush1.msra.mxu0 0.0
    %2745 = vmatprep.subr.mxu0 0.0
    %2746 = vmatpush1.msra.mxu0 0.0
    %2747 = vmatprep.subr.mxu0 0.0
    %2748 = vmatpush1.msra.mxu0 0.0
    %2749 = vmatprep.subr.mxu0 0.0
    %2750 = vmatpush1.msra.mxu0 0.0
    %2751 = vmatprep.subr.mxu0 0.0
    %2752 = vmatpush1.msra.mxu0 0.0
    %2753 = vmatprep.subr.mxu0 0.0
    %2754 = vmatpush1.msra.mxu0 0.0
    %2755 = vmatprep.subr.mxu0 0.0
    %2756 = vmatpush1.msra.mxu0 0.0
    %2757 = vmatprep.mubr.f32.mxu0 0.0
    %2758 = vmatmul.mubr.f32.gmra.mrb[0].mxu0 %v2688
    %v2759 = vpop.f32.mrb[0].mxu0
    %v2760 = vadd.f32 0.0, %v2759
    %v2761 = vpop.f32.mrb[0].mxu0
    %2762 = vdwg.mxu0
    %v2763 = vadd.f32 %v2604, %v2760
    %v2764 = vld [vmem:[#allocation16] sm:$0x1]
    %v2766 = vlaneseq
    %v2767 = vshrl.u32 %v2766, 7
    %v2768 = vsub.s32 0, %v2767
    %v2769 = vrot.slane %v2764, %v2768
    %v2771 = vadd.f32 %v2763, %v2769
    %vm2772 = vcmp.gt.f32.partialorder %v2771, 0.0
    %v2773 = vmin.f32 %v2771, 0.0
    %v2774 = vmul.f32 %v2773, 1.442695
    %v2775 = vpow.pop %v2774
    %v2776 = vsub.f32 %v2775, 1.0
    %v2777 = vsel %vm2772, %v2771, %v2776
    %v2778 = vld [vmem:[#allocation17] sm:$0x3]
    %vm2779 = vcmask 64512
    %v2781 = vsel %vm2779, %v2778, 0
    %2783 = vmatprep.subr.mxu0 0.0
    %2784 = vmatpush1.msra.mxu0 %v2777
    %2785 = vmatprep.subr.mxu0 0.0
    %2786 = vmatpush1.msra.mxu0 0.0
    %2787 = vmatprep.subr.mxu0 0.0
    %2788 = vmatpush1.msra.mxu0 0.0
    %2789 = vmatprep.subr.mxu0 0.0
    %2790 = vmatpush1.msra.mxu0 0.0
    %2791 = vmatprep.subr.mxu0 0.0
    %2792 = vmatpush1.msra.mxu0 0.0
    %2793 = vmatprep.subr.mxu0 0.0
    %2794 = vmatpush1.msra.mxu0 0.0
    %2795 = vmatprep.subr.mxu0 0.0
    %2796 = vmatpush1.msra.mxu0 0.0
    %2797 = vmatprep.subr.mxu0 0.0
    %2798 = vmatpush1.msra.mxu0 0.0
    %2799 = vmatprep.subr.mxu0 0.0
    %2800 = vmatpush1.msra.mxu0 0.0
    %2801 = vmatprep.subr.mxu0 0.0
    %2802 = vmatpush1.msra.mxu0 0.0
    %2803 = vmatprep.subr.mxu0 0.0
    %2804 = vmatpush1.msra.mxu0 0.0
    %2805 = vmatprep.subr.mxu0 0.0
    %2806 = vmatpush1.msra.mxu0 0.0
    %2807 = vmatprep.subr.mxu0 0.0
    %2808 = vmatpush1.msra.mxu0 0.0
    %2809 = vmatprep.subr.mxu0 0.0
    %2810 = vmatpush1.msra.mxu0 0.0
    %2811 = vmatprep.subr.mxu0 0.0
    %2812 = vmatpush1.msra.mxu0 0.0
    %2813 = vmatprep.subr.mxu0 0.0
    %2814 = vmatpush1.msra.mxu0 0.0
    %2815 = vmatprep.subr.mxu0 0.0
    %2816 = vmatpush1.msra.mxu0 0.0
    %2817 = vmatprep.subr.mxu0 0.0
    %2818 = vmatpush1.msra.mxu0 0.0
    %2819 = vmatprep.subr.mxu0 0.0
    %2820 = vmatpush1.msra.mxu0 0.0
    %2821 = vmatprep.subr.mxu0 0.0
    %2822 = vmatpush1.msra.mxu0 0.0
    %2823 = vmatprep.subr.mxu0 0.0
    %2824 = vmatpush1.msra.mxu0 0.0
    %2825 = vmatprep.subr.mxu0 0.0
    %2826 = vmatpush1.msra.mxu0 0.0
    %2827 = vmatprep.subr.mxu0 0.0
    %2828 = vmatpush1.msra.mxu0 0.0
    %2829 = vmatprep.subr.mxu0 0.0
    %2830 = vmatpush1.msra.mxu0 0.0
    %2831 = vmatprep.subr.mxu0 0.0
    %2832 = vmatpush1.msra.mxu0 0.0
    %2833 = vmatprep.subr.mxu0 0.0
    %2834 = vmatpush1.msra.mxu0 0.0
    %2835 = vmatprep.subr.mxu0 0.0
    %2836 = vmatpush1.msra.mxu0 0.0
    %2837 = vmatprep.subr.mxu0 0.0
    %2838 = vmatpush1.msra.mxu0 0.0
    %2839 = vmatprep.subr.mxu0 0.0
    %2840 = vmatpush1.msra.mxu0 0.0
    %2841 = vmatprep.subr.mxu0 0.0
    %2842 = vmatpush1.msra.mxu0 0.0
    %2843 = vmatprep.subr.mxu0 0.0
    %2844 = vmatpush1.msra.mxu0 0.0
    %2845 = vmatprep.subr.mxu0 0.0
    %2846 = vmatpush1.msra.mxu0 0.0
    %2847 = vmatprep.mubr.f32.mxu0 0.0
    %2848 = vmatmul.mubr.f32.gmra.mrb[0].mxu0 %v2781
    %v2849 = vpop.f32.mrb[0].mxu0
    %v2850 = vadd.f32 0.0, %v2849
    %v2851 = vpop.f32.mrb[0].mxu0
    %2852 = vdwg.mxu0
    %v2853 = vld [vmem:[%s14] sm:$0xff]
    %v2854 = vld [vmem:[%s14 + $0x8] sm:$0xff]
    %v2855 = vld [vmem:[%s15] sm:$0x1]
    %v2857 = vlaneseq
    %v2858 = vshrl.u32 %v2857, 7
    %v2859 = vsub.s32 0, %v2858
    %v2860 = vrot.slane %v2855, %v2859
    %v2863 = vsel %vm198, %v2850, 0
    %2865 = vmatprep.subr.mxu0 0.0
    %2866 = vmatpush1.msra.mxu0 %v2853
    %2867 = vmatprep.subr.mxu0 0.0
    %2868 = vmatpush1.msra.mxu0 %v2854
    %2869 = vmatprep.subr.mxu0 0.0
    %2870 = vmatpush1.msra.mxu0 0.0
    %2871 = vmatprep.subr.mxu0 0.0
    %2872 = vmatpush1.msra.mxu0 0.0
    %2873 = vmatprep.subr.mxu0 0.0
    %2874 = vmatpush1.msra.mxu0 0.0
    %2875 = vmatprep.subr.mxu0 0.0
    %2876 = vmatpush1.msra.mxu0 0.0
    %2877 = vmatprep.subr.mxu0 0.0
    %2878 = vmatpush1.msra.mxu0 0.0
    %2879 = vmatprep.subr.mxu0 0.0
    %2880 = vmatpush1.msra.mxu0 0.0
    %2881 = vmatprep.subr.mxu0 0.0
    %2882 = vmatpush1.msra.mxu0 0.0
    %2883 = vmatprep.subr.mxu0 0.0
    %2884 = vmatpush1.msra.mxu0 0.0
    %2885 = vmatprep.subr.mxu0 0.0
    %2886 = vmatpush1.msra.mxu0 0.0
    %2887 = vmatprep.subr.mxu0 0.0
    %2888 = vmatpush1.msra.mxu0 0.0
    %2889 = vmatprep.subr.mxu0 0.0
    %2890 = vmatpush1.msra.mxu0 0.0
    %2891 = vmatprep.subr.mxu0 0.0
    %2892 = vmatpush1.msra.mxu0 0.0
    %2893 = vmatprep.subr.mxu0 0.0
    %2894 = vmatpush1.msra.mxu0 0.0
    %2895 = vmatprep.subr.mxu0 0.0
    %2896 = vmatpush1.msra.mxu0 0.0
    %2897 = vmatprep.subr.mxu0 0.0
    %2898 = vmatpush1.msra.mxu0 0.0
    %2899 = vmatprep.subr.mxu0 0.0
    %2900 = vmatpush1.msra.mxu0 0.0
    %2901 = vmatprep.subr.mxu0 0.0
    %2902 = vmatpush1.msra.mxu0 0.0
    %2903 = vmatprep.subr.mxu0 0.0
    %2904 = vmatpush1.msra.mxu0 0.0
    %2905 = vmatprep.subr.mxu0 0.0
    %2906 = vmatpush1.msra.mxu0 0.0
    %2907 = vmatprep.subr.mxu0 0.0
    %2908 = vmatpush1.msra.mxu0 0.0
    %2909 = vmatprep.subr.mxu0 0.0
    %2910 = vmatpush1.msra.mxu0 0.0
    %2911 = vmatprep.subr.mxu0 0.0
    %2912 = vmatpush1.msra.mxu0 0.0
    %2913 = vmatprep.subr.mxu0 0.0
    %2914 = vmatpush1.msra.mxu0 0.0
    %2915 = vmatprep.subr.mxu0 0.0
    %2916 = vmatpush1.msra.mxu0 0.0
    %2917 = vmatprep.subr.mxu0 0.0
    %2918 = vmatpush1.msra.mxu0 0.0
    %2919 = vmatprep.subr.mxu0 0.0
    %2920 = vmatpush1.msra.mxu0 0.0
    %2921 = vmatprep.subr.mxu0 0.0
    %2922 = vmatpush1.msra.mxu0 0.0
    %2923 = vmatprep.subr.mxu0 0.0
    %2924 = vmatpush1.msra.mxu0 0.0
    %2925 = vmatprep.subr.mxu0 0.0
    %2926 = vmatpush1.msra.mxu0 0.0
    %2927 = vmatprep.subr.mxu0 0.0
    %2928 = vmatpush1.msra.mxu0 0.0
    %2929 = vmatprep.mubr.f32.mxu0 0.0
    %2930 = vmatmul.mubr.f32.gmra.mrb[0].mxu0 %v2863
    %v2931 = vpop.f32.mrb[0].mxu0
    %v2932 = vadd.f32 %v2860, %v2931
    %v2933 = vpop.f32.mrb[0].mxu0
    %2934 = vdwg.mxu0
    %v2935 = vmax.f32 %v2932, 0.0
    %v2936 = vld [vmem:[%s16] sm:$0xff]
    %v2937 = vld [vmem:[%s16 + $0x8] sm:$0xff]
    %v2938 = vld [vmem:[%s16 + $0x10] sm:$0xff]
    %v2939 = vld [vmem:[%s16 + $0x18] sm:$0xff]
    %v2940 = vld [vmem:[%s17] sm:$0x1]
    %v2942 = vlaneseq
    %v2943 = vshrl.u32 %v2942, 7
    %v2944 = vsub.s32 0, %v2943
    %v2945 = vrot.slane %v2940, %v2944
    %vm2947 = vcmask 261120
    %v2949 = vsel %vm2947, %v2935, 0
    %2951 = vmatprep.subr.mxu0 0.0
    %2952 = vmatpush1.msra.mxu0 %v2936
    %2953 = vmatprep.subr.mxu0 0.0
    %2954 = vmatpush1.msra.mxu0 %v2937
    %2955 = vmatprep.subr.mxu0 0.0
    %2956 = vmatpush1.msra.mxu0 %v2938
    %2957 = vmatprep.subr.mxu0 0.0
    %2958 = vmatpush1.msra.mxu0 %v2939
    %2959 = vmatprep.subr.mxu0 0.0
    %2960 = vmatpush1.msra.mxu0 0.0
    %2961 = vmatprep.subr.mxu0 0.0
    %2962 = vmatpush1.msra.mxu0 0.0
    %2963 = vmatprep.subr.mxu0 0.0
    %2964 = vmatpush1.msra.mxu0 0.0
    %2965 = vmatprep.subr.mxu0 0.0
    %2966 = vmatpush1.msra.mxu0 0.0
    %2967 = vmatprep.subr.mxu0 0.0
    %2968 = vmatpush1.msra.mxu0 0.0
    %2969 = vmatprep.subr.mxu0 0.0
    %2970 = vmatpush1.msra.mxu0 0.0
    %2971 = vmatprep.subr.mxu0 0.0
    %2972 = vmatpush1.msra.mxu0 0.0
    %2973 = vmatprep.subr.mxu0 0.0
    %2974 = vmatpush1.msra.mxu0 0.0
    %2975 = vmatprep.subr.mxu0 0.0
    %2976 = vmatpush1.msra.mxu0 0.0
    %2977 = vmatprep.subr.mxu0 0.0
    %2978 = vmatpush1.msra.mxu0 0.0
    %2979 = vmatprep.subr.mxu0 0.0
    %2980 = vmatpush1.msra.mxu0 0.0
    %2981 = vmatprep.subr.mxu0 0.0
    %2982 = vmatpush1.msra.mxu0 0.0
    %2983 = vmatprep.subr.mxu0 0.0
    %2984 = vmatpush1.msra.mxu0 0.0
    %2985 = vmatprep.subr.mxu0 0.0
    %2986 = vmatpush1.msra.mxu0 0.0
    %2987 = vmatprep.subr.mxu0 0.0
    %2988 = vmatpush1.msra.mxu0 0.0
    %2989 = vmatprep.subr.mxu0 0.0
    %2990 = vmatpush1.msra.mxu0 0.0
    %2991 = vmatprep.subr.mxu0 0.0
    %2992 = vmatpush1.msra.mxu0 0.0
    %2993 = vmatprep.subr.mxu0 0.0
    %2994 = vmatpush1.msra.mxu0 0.0
    %2995 = vmatprep.subr.mxu0 0.0
    %2996 = vmatpush1.msra.mxu0 0.0
    %2997 = vmatprep.subr.mxu0 0.0
    %2998 = vmatpush1.msra.mxu0 0.0
    %2999 = vmatprep.subr.mxu0 0.0
    %3000 = vmatpush1.msra.mxu0 0.0
    %3001 = vmatprep.subr.mxu0 0.0
    %3002 = vmatpush1.msra.mxu0 0.0
    %3003 = vmatprep.subr.mxu0 0.0
    %3004 = vmatpush1.msra.mxu0 0.0
    %3005 = vmatprep.subr.mxu0 0.0
    %3006 = vmatpush1.msra.mxu0 0.0
    %3007 = vmatprep.subr.mxu0 0.0
    %3008 = vmatpush1.msra.mxu0 0.0
    %3009 = vmatprep.subr.mxu0 0.0
    %3010 = vmatpush1.msra.mxu0 0.0
    %3011 = vmatprep.subr.mxu0 0.0
    %3012 = vmatpush1.msra.mxu0 0.0
    %3013 = vmatprep.subr.mxu0 0.0
    %3014 = vmatpush1.msra.mxu0 0.0
    %3015 = vmatprep.mubr.f32.mxu0 0.0
    %3016 = vmatmul.mubr.f32.gmra.mrb[0].mxu0 %v2949
    %v3017 = vpop.f32.mrb[0].mxu0
    %v3018 = vadd.f32 %v2945, %v3017
    %v3019 = vpop.f32.mrb[0].mxu0
    %3020 = vdwg.mxu0
    %vm3021 = vcmask 25600
    %3022 = vst.msk [vmem:[#allocation19] sm:$0x3] %vm3021, %v3018
    // Predicated region
    $region114: #{tpu_custom_call.1} parent=1 // pred_check
      _
    $region115: #{tpu_custom_call.1} parent=1 // pred_check_branch
      %3024 = sbr.rel (0) target = $region117
    $region116: #{tpu_custom_call.1} parent=1 // pred_region
      %s3026 = ssub.s32 32, 32
      %3027 = vsyncadd [#allocation4], %s3026
      %s3029 = sshll.u32 [#allocation19], 4
      %s3030 = int_to_ptr.vmem [resolvable:$true] %s3029
      %3032 = dma.vmem_to_hbm [thread:$0]  %s3030, 32, %s18, [#allocation4]
    $region117: #{tpu_custom_call.1} parent=1 // pred_fallthru
      _
    // Predicated region
    $region118: #{tpu_custom_call.1} parent=1 // pred_check
      _
    $region119: #{tpu_custom_call.1} parent=1 // pred_check_branch
      %3034 = sbr.rel (0) target = $region121
    $region120: #{tpu_custom_call.1} parent=1 // pred_region
      %3035 = dma.done [#allocation4], 32
    $region121: #{tpu_custom_call.1} parent=1 // pred_fallthru
      _
    %3036 = vsyncpa [#allocation3], 1
    %3037 = vsyncpa [#allocation6], 1
    %3038 = vsyncpa [#allocation9], 1
    %3039 = vsyncpa [#allocation12], 1
    %3040 = vsyncpa [#allocation15], 1
    %3041 = vsyncpa [#allocation18], 1
    %3042 = vsyncpa [#allocation4], 1

</llo_original>
